<compile_context>
chip_gen: v7x
topology: tpu7x:2x2x1
jax: 0.10.0
libtpu: 0.0.40
codegen_flags: <defaults>
</compile_context>

<pallas_src>
import functools
import math

import jax
import jax.numpy as jnp
from jax import lax
from jax.experimental import pallas as pl
from jax.experimental.pallas import tpu as pltpu


_SINGLE_BUFFER_OK = None  # lazily probed: pipeline_mode=pl.Buffered(1) support


def _device_vmem_bytes():
    """Physical VMEM of the local TPU; conservative (v7x, 64 MiB) fallback."""
    try:
        return int(pltpu.get_tpu_info().vmem_capacity_bytes)
    except Exception:
        return 64 * 1024 * 1024


def _plan_row_tile(B, H, W, Cp):
    """Pick row-tile height tH (a divisor of H) and a VMEM limit.

    Accounts for: resident padded image + phase weights (single-buffered),
    2x the bf16 output block (double-buffered), and ~13 tile-sized bf16
    in-kernel intermediates (column slabs, im2col operand, f32 accumulator,
    casts).  Keeps the total under ~55% of physical VMEM so it fits v7x's
    64 MiB as well as v5e/v6e's 128 MiB, and prefers >= 4 total grid steps
    so both v7x TensorCores get at least two steps each.
    """
    phys = _device_vmem_bytes()
    budget = min(int(phys * 0.55), 72 * 1024 * 1024)

    img = (H + 2) * (W + 2) * Cp * 2            # resident padded image, bf16
    wgt = 4 * (4 * Cp) * Cp * 2                 # per-phase im2col weights, bf16
    fixed = img + wgt + Cp * 4                  # + f32 bias

    def step_bytes(th):
        out_blk = 4 * th * W * Cp * 2           # bf16 phase output block
        scratch = 26 * th * W * Cp              # slabs + operand + f32 acc + casts
        return 2 * out_blk + scratch            # output block double-buffered

    divisors = sorted((d for d in range(1, H + 1) if H % d == 0), reverse=True)
    tH = 1
    for want_steps in (4, 2, 1):                # relax only if B*H is tiny
        fit = [d for d in divisors
               if d <= 256
               and B * (H // d) >= want_steps
               and fixed + step_bytes(d) <= budget]
        if fit:
            tH = fit[0]
            break

    # TODO(synk): if `fixed` alone exceeds the budget (very large H*W*Cp),
    # switch the image in_spec to a halo'd row window (memory_space=pl.ANY +
    # manual make_async_copy) so resident VMEM scales with the tile.
    vmem_limit = fixed + step_bytes(tH) + 8 * 1024 * 1024
    vmem_limit = max(vmem_limit, 32 * 1024 * 1024)
    vmem_limit = min(vmem_limit, int(phys * 0.9))
    return tH, vmem_limit


def _upsample_subpixel_conv_kernel(x_ref, w_ref, b_ref, o_ref):
    """Sub-pixel form of nearest-2x upsample + 3x3 conv (padding=1).

    x_ref: (1, H+2, W+2, C)  zero-padded ORIGINAL image, bf16 NHWC; block index
                             ignores the row-tile axis -> VMEM resident.
    w_ref: (4, 4C, C)        per-phase im2col weights, K ordered (di, dj, Ci).
    b_ref: (1, C)            f32 bias.
    o_ref: (1, 4, tH, W, C)  bf16 phase-separated output rows, phase = 2*py+px.
    """
    _, _, tH, W, C = o_ref.shape
    t = pl.program_id(1)
    r0 = pl.multiple_of(t * tH, tH)

    # Three column-shifted slabs (tH+2 rows cover both row phases x both row
    # taps).  The W shift is the only sublane-misaligned slice -> pay it 3x
    # here; the per-tap row sub-slices below are major-dim slices (cheap).
    slabs = [x_ref[0, pl.ds(r0, tH + 2), dc:dc + W, :] for dc in range(3)]

    bias = b_ref[...].astype(jnp.float32)        # hoisted: cast once, add 4x

    for py in range(2):
        for px in range(2):
            # Per-phase im2col operand (tH*W, 4C); built lazily so only the
            # 3 slabs + this operand + the accumulator are live at once.
            operand = jnp.concatenate(
                [slabs[px + dj][py + di:py + di + tH].reshape(tH * W, C)
                 for di in range(2) for dj in range(2)],
                axis=-1)
            # One K=4C matmul per phase: fills the MXU, no VPU accumulate adds.
            acc = jnp.dot(operand, w_ref[2 * py + px],
                          preferred_element_type=jnp.float32)
            o_ref[0, 2 * py + px] = (acc + bias).reshape(tH, W, C).astype(o_ref.dtype)


def _invariant_spec(shape, index_map, single_buffer):
    """BlockSpec for inputs whose block never changes across the row-tile axis;
    single-buffered when supported (halves their VMEM residency)."""
    if single_buffer:
        return pl.BlockSpec(shape, index_map, pipeline_mode=pl.Buffered(1))
    return pl.BlockSpec(shape, index_map)


@functools.partial(jax.jit, static_argnames=("single_buffer",))
def _upsample_conv(x, weight, bias, *, single_buffer):
    """nearest-2x upsample + Conv2d(C, C, 3, padding=1); x: (B,C,H,W) NCHW."""
    B, C, H, W = x.shape

    # Lane-dense channels: pad C to 128 when smaller so output stores are
    # unmasked full-lane vst's and the MXU N dim is filled.
    # TODO(synk): C >= 128 but not a multiple of 128 is left unpadded (trade
    # bytes vs lane density); typical UNet widths are multiples of 128.
    Cp = 128 if C < 128 else C
    pc = Cp - C

    # NCHW -> NHWC, bf16 compute dtype, 1-px zero halo on the ORIGINAL image
    # (~1.03x input bytes instead of the 4.2x upsampled+padded intermediate).
    x_nhwc = jnp.transpose(x, (0, 2, 3, 1)).astype(jnp.bfloat16)
    xp = jnp.pad(x_nhwc, ((0, 0), (1, 1), (1, 1), (0, pc)))       # (B, H+2, W+2, Cp)

    w_f32 = weight.astype(jnp.float32)
    b_f32 = bias.astype(jnp.float32)
    if pc:
        w_f32 = jnp.pad(w_f32, ((0, pc), (0, pc), (0, 0), (0, 0)))
        b_f32 = jnp.pad(b_f32, ((0, pc),))

    # Phase/tap decomposition of the 3x3 weights (sums in f32, then bf16):
    #   row taps:  py=0 -> {w[0], w[1]+w[2]}   py=1 -> {w[0]+w[1], w[2]}
    #   col taps:  px=0 -> {w[:,0], w[:,1]+w[:,2]} px=1 -> {w[:,0]+w[:,1], w[:,2]}
    R = jnp.array([[[1., 0., 0.], [0., 1., 1.]],
                   [[1., 1., 0.], [0., 0., 1.]]], dtype=jnp.float32)
    wph = jnp.einsum("adh,bew,oihw->abdeio", R, R, w_f32)         # (py,px,di,dj,Ci,Co)
    wph = wph.reshape(4, 4 * Cp, Cp).astype(jnp.bfloat16)         # K = (di, dj, Ci)
    b2d = b_f32.reshape(1, Cp)

    tH, vmem_limit = _plan_row_tile(B, H, W, Cp)
    T = H // tH

    out_ph = pl.pallas_call(
        _upsample_subpixel_conv_kernel,
        out_shape=jax.ShapeDtypeStruct((B, 4, H, W, Cp), jnp.bfloat16),
        grid_spec=pltpu.PrefetchScalarGridSpec(
            num_scalar_prefetch=0,
            grid=(B, T),
            in_specs=[
                # Whole padded image per batch: DMA'd once per batch, resident
                # across the row tiles (block index ignores t).
                _invariant_spec((1, H + 2, W + 2, Cp),
                                lambda b, t: (b, 0, 0, 0), single_buffer),
                _invariant_spec((4, 4 * Cp, Cp),
                                lambda b, t: (0, 0, 0), single_buffer),
                _invariant_spec((1, Cp), lambda b, t: (0, 0), single_buffer),
            ],
            out_specs=pl.BlockSpec((1, 4, tH, W, Cp),
                                   lambda b, t: (b, 0, t, 0, 0)),
        ),
        compiler_params=pltpu.CompilerParams(
            dimension_semantics=("parallel", "parallel"),
            vmem_limit_bytes=vmem_limit),
    )(xp, wph, b2d)

    # Phase interleave + NHWC->NCHW in bf16 (half the copy bytes); the final
    # cast to the caller dtype fuses into the same transpose copy.
    # TODO(synk): if the surrounding model consumes NHWC/bf16, return the phase
    # tensor directly and drop this transpose.
    out6 = out_ph[..., :C].reshape(B, 2, 2, H, W, C)              # (B, py, px, H, W, C)
    out = jnp.transpose(out6, (0, 5, 3, 1, 4, 2)).reshape(B, C, 2 * H, 2 * W)
    return out.astype(x.dtype)


def upsample_forward(x, weight=None, bias=None, *, with_conv=True):
    """Matches models/unet.py::Upsample.forward. x: (B, C, H, W) -> (B, C, 2H, 2W)."""
    global _SINGLE_BUFFER_OK
    if not with_conv:
        # Pure data movement (nearest 2x); no compute worth a kernel.
        return jnp.repeat(jnp.repeat(x, 2, axis=2), 2, axis=3)
    if _SINGLE_BUFFER_OK is None:
        try:
            out = jax.block_until_ready(
                _upsample_conv(x, weight, bias, single_buffer=True))
            _SINGLE_BUFFER_OK = True
            return out
        except Exception:
            # This JAX build rejects pipeline_mode=pl.Buffered(1); fall back to
            # default double buffering of the grid-invariant inputs.
            _SINGLE_BUFFER_OK = False
    return _upsample_conv(x, weight, bias, single_buffer=_SINGLE_BUFFER_OK)


def _reference(x, weight, bias):
    """Pure-JAX f32 reference matching the PyTorch forward (NCHW)."""
    up = jnp.repeat(jnp.repeat(x, 2, axis=2), 2, axis=3)
    out = lax.conv_general_dilated(
        up, weight, window_strides=(1, 1), padding=((1, 1), (1, 1)),
        dimension_numbers=("NCHW", "OIHW", "NCHW"))
    return out + bias[None, :, None, None]


if __name__ == "__main__":
    B, C, H, W = 2, 4, 16, 16

    key = jax.random.PRNGKey(0)
    kx, kw, kb = jax.random.split(key, 3)

    x = jax.random.normal(kx, (B, C, H, W), dtype=jnp.float32)

    # Deterministic Conv2d(C, C, 3, padding=1) params (PyTorch-style uniform init).
    fan_in = C * 3 * 3
    bound = 1.0 / math.sqrt(fan_in)
    weight = jax.random.uniform(kw, (C, C, 3, 3), dtype=jnp.float32,
                                minval=-bound, maxval=bound)
    bias = jax.random.uniform(kb, (C,), dtype=jnp.float32,
                              minval=-bound, maxval=bound)

    out = jax.block_until_ready(upsample_forward(x, weight, bias, with_conv=True))
    assert out.shape == (B, C, 2 * H, 2 * W), out.shape

    ref = jax.block_until_ready(_reference(x, weight, bias))
    # bf16 MXU inputs/outputs with f32 accumulation -> loosened tolerance.
    if not jnp.allclose(out, ref, rtol=5e-2, atol=5e-2):
        raise AssertionError(
            f"mismatch: max abs err = {float(jnp.max(jnp.abs(out - ref)))}")

    # with_conv=False path (pure nearest 2x upsample).
    out_nc = jax.block_until_ready(upsample_forward(x, with_conv=False))
    ref_nc = jnp.repeat(jnp.repeat(x, 2, axis=2), 2, axis=3)
    assert jnp.array_equal(out_nc, ref_nc)

    print("KERNEL_OK")
</pallas_src>

<mosaic_0001>
module attributes {stable_mosaic.version = 11 : i64} {
  func.func @_upsample_subpixel_conv_kernel(%arg0: i32, %arg1: i32, %arg2: memref<1x18x18x128xbf16, #tpu.memory_space<vmem>>, %arg3: memref<4x512x128xbf16, #tpu.memory_space<vmem>>, %arg4: memref<1x128xf32, #tpu.memory_space<vmem>>, %arg5: memref<1x4x8x16x128xbf16, #tpu.memory_space<vmem>>) attributes {dimension_semantics = [#tpu.dimension_semantics<parallel>, #tpu.dimension_semantics<parallel>], iteration_bounds = array<i64: 2, 2>, scalar_prefetch = 0 : i64, scratch_operands = 0 : i64, tpu.core_type = #tpu.core_type<tc>, window_params = [{pipeline_mode = #tpu.pipeline_mode<synchronous>, transform_indices = @transform_0, window_bounds = array<i64: 1, 18, 18, 128>}, {pipeline_mode = #tpu.pipeline_mode<synchronous>, transform_indices = @transform_1, window_bounds = array<i64: 4, 512, 128>}, {pipeline_mode = #tpu.pipeline_mode<synchronous>, transform_indices = @transform_2, window_bounds = array<i64: 1, 128>}, {transform_indices = @transform_3, window_bounds = array<i64: 1, 4, 8, 16, 128>}]} {
    %c8_i32 = arith.constant 8 : i32
    %0 = arith.muli %arg1, %c8_i32 : i32
    %1 = tpu.assume_multiple %0, 8 : i32
    %c0 = arith.constant 0 : index
    %2 = arith.index_cast %1 : i32 to index
    %c0_0 = arith.constant 0 : index
    %c0_1 = arith.constant 0 : index
    %3 = vector.load %arg2[%c0, %2, %c0_0, %c0_1] : memref<1x18x18x128xbf16, #tpu.memory_space<vmem>>, vector<1x10x16x128xbf16>
    %4 = vector.shape_cast %3 : vector<1x10x16x128xbf16> to vector<10x16x128xbf16>
    %c0_2 = arith.constant 0 : index
    %5 = arith.index_cast %1 : i32 to index
    %c1 = arith.constant 1 : index
    %c0_3 = arith.constant 0 : index
    %6 = vector.load %arg2[%c0_2, %5, %c1, %c0_3] : memref<1x18x18x128xbf16, #tpu.memory_space<vmem>>, vector<1x10x16x128xbf16>
    %7 = vector.shape_cast %6 : vector<1x10x16x128xbf16> to vector<10x16x128xbf16>
    %c0_4 = arith.constant 0 : index
    %8 = arith.index_cast %1 : i32 to index
    %c2 = arith.constant 2 : index
    %c0_5 = arith.constant 0 : index
    %9 = vector.load %arg2[%c0_4, %8, %c2, %c0_5] : memref<1x18x18x128xbf16, #tpu.memory_space<vmem>>, vector<1x10x16x128xbf16>
    %10 = vector.shape_cast %9 : vector<1x10x16x128xbf16> to vector<10x16x128xbf16>
    %c0_6 = arith.constant 0 : index
    %c0_7 = arith.constant 0 : index
    %11 = vector.load %arg4[%c0_6, %c0_7] : memref<1x128xf32, #tpu.memory_space<vmem>>, vector<1x128xf32>
    %12 = vector.extract_strided_slice %4 {offsets = [0, 0, 0], sizes = [8, 16, 128], strides = [1, 1, 1]} : vector<10x16x128xbf16> to vector<8x16x128xbf16>
    %13 = vector.shape_cast %12 : vector<8x16x128xbf16> to vector<128x128xbf16>
    %14 = vector.extract_strided_slice %7 {offsets = [0, 0, 0], sizes = [8, 16, 128], strides = [1, 1, 1]} : vector<10x16x128xbf16> to vector<8x16x128xbf16>
    %15 = vector.shape_cast %14 : vector<8x16x128xbf16> to vector<128x128xbf16>
    %16 = vector.extract_strided_slice %4 {offsets = [1, 0, 0], sizes = [8, 16, 128], strides = [1, 1, 1]} : vector<10x16x128xbf16> to vector<8x16x128xbf16>
    %17 = vector.shape_cast %16 : vector<8x16x128xbf16> to vector<128x128xbf16>
    %18 = vector.extract_strided_slice %7 {offsets = [1, 0, 0], sizes = [8, 16, 128], strides = [1, 1, 1]} : vector<10x16x128xbf16> to vector<8x16x128xbf16>
    %19 = vector.shape_cast %18 : vector<8x16x128xbf16> to vector<128x128xbf16>
    %20 = tpu.concatenate %13, %15, %17, %19 in 1 : vector<128x128xbf16>, vector<128x128xbf16>, vector<128x128xbf16>, vector<128x128xbf16> -> vector<128x512xbf16>
    %c0_8 = arith.constant 0 : index
    %c0_9 = arith.constant 0 : index
    %c0_10 = arith.constant 0 : index
    %21 = vector.load %arg3[%c0_8, %c0_9, %c0_10] : memref<4x512x128xbf16, #tpu.memory_space<vmem>>, vector<1x512x128xbf16>
    %22 = vector.shape_cast %21 : vector<1x512x128xbf16> to vector<512x128xbf16>
    %cst = arith.constant dense<0.000000e+00> : vector<128x128xf32>
    %23 = tpu.matmul %20, %22, %cst {dimension_numbers = #tpu.dot_dimension_numbers<[1], [0], [0], [1], [0, 0, 1, 1], [], []>} : vector<128x512xbf16>, vector<512x128xbf16>, vector<128x128xf32> -> vector<128x128xf32>
    %24 = vector.broadcast %11 : vector<1x128xf32> to vector<128x128xf32>
    %25 = arith.addf %23, %24 : vector<128x128xf32>
    %26 = vector.shape_cast %25 : vector<128x128xf32> to vector<8x16x128xf32>
    %27 = arith.truncf %26 : vector<8x16x128xf32> to vector<8x16x128xbf16>
    %c0_11 = arith.constant 0 : index
    %c0_12 = arith.constant 0 : index
    %c0_13 = arith.constant 0 : index
    %c0_14 = arith.constant 0 : index
    %c0_15 = arith.constant 0 : index
    %28 = vector.load %arg5[%c0_11, %c0_12, %c0_13, %c0_14, %c0_15] : memref<1x4x8x16x128xbf16, #tpu.memory_space<vmem>>, vector<1x1x8x16x128xbf16>
    %29 = vector.shape_cast %28 : vector<1x1x8x16x128xbf16> to vector<8x16x128xbf16>
    %30 = vector.shape_cast %27 : vector<8x16x128xbf16> to vector<1x1x8x16x128xbf16>
    tpu.vector_store %arg5[%c0_11, %c0_12, %c0_13, %c0_14, %c0_15], %30 {strides = array<i32>} : memref<1x4x8x16x128xbf16, #tpu.memory_space<vmem>>, vector<1x1x8x16x128xbf16>,
    %31 = vector.extract_strided_slice %7 {offsets = [0, 0, 0], sizes = [8, 16, 128], strides = [1, 1, 1]} : vector<10x16x128xbf16> to vector<8x16x128xbf16>
    %32 = vector.shape_cast %31 : vector<8x16x128xbf16> to vector<128x128xbf16>
    %33 = vector.extract_strided_slice %10 {offsets = [0, 0, 0], sizes = [8, 16, 128], strides = [1, 1, 1]} : vector<10x16x128xbf16> to vector<8x16x128xbf16>
    %34 = vector.shape_cast %33 : vector<8x16x128xbf16> to vector<128x128xbf16>
    %35 = vector.extract_strided_slice %7 {offsets = [1, 0, 0], sizes = [8, 16, 128], strides = [1, 1, 1]} : vector<10x16x128xbf16> to vector<8x16x128xbf16>
    %36 = vector.shape_cast %35 : vector<8x16x128xbf16> to vector<128x128xbf16>
    %37 = vector.extract_strided_slice %10 {offsets = [1, 0, 0], sizes = [8, 16, 128], strides = [1, 1, 1]} : vector<10x16x128xbf16> to vector<8x16x128xbf16>
    %38 = vector.shape_cast %37 : vector<8x16x128xbf16> to vector<128x128xbf16>
    %39 = tpu.concatenate %32, %34, %36, %38 in 1 : vector<128x128xbf16>, vector<128x128xbf16>, vector<128x128xbf16>, vector<128x128xbf16> -> vector<128x512xbf16>
    %c1_16 = arith.constant 1 : index
    %c0_17 = arith.constant 0 : index
    %c0_18 = arith.constant 0 : index
    %40 = vector.load %arg3[%c1_16, %c0_17, %c0_18] : memref<4x512x128xbf16, #tpu.memory_space<vmem>>, vector<1x512x128xbf16>
    %41 = vector.shape_cast %40 : vector<1x512x128xbf16> to vector<512x128xbf16>
    %cst_19 = arith.constant dense<0.000000e+00> : vector<128x128xf32>
    %42 = tpu.matmul %39, %41, %cst_19 {dimension_numbers = #tpu.dot_dimension_numbers<[1], [0], [0], [1], [0, 0, 1, 1], [], []>} : vector<128x512xbf16>, vector<512x128xbf16>, vector<128x128xf32> -> vector<128x128xf32>
    %43 = vector.broadcast %11 : vector<1x128xf32> to vector<128x128xf32>
    %44 = arith.addf %42, %43 : vector<128x128xf32>
    %45 = vector.shape_cast %44 : vector<128x128xf32> to vector<8x16x128xf32>
    %46 = arith.truncf %45 : vector<8x16x128xf32> to vector<8x16x128xbf16>
    %c0_20 = arith.constant 0 : index
    %c1_21 = arith.constant 1 : index
    %c0_22 = arith.constant 0 : index
    %c0_23 = arith.constant 0 : index
    %c0_24 = arith.constant 0 : index
    %47 = vector.load %arg5[%c0_20, %c1_21, %c0_22, %c0_23, %c0_24] : memref<1x4x8x16x128xbf16, #tpu.memory_space<vmem>>, vector<1x1x8x16x128xbf16>
    %48 = vector.shape_cast %47 : vector<1x1x8x16x128xbf16> to vector<8x16x128xbf16>
    %49 = vector.shape_cast %46 : vector<8x16x128xbf16> to vector<1x1x8x16x128xbf16>
    tpu.vector_store %arg5[%c0_20, %c1_21, %c0_22, %c0_23, %c0_24], %49 {strides = array<i32>} : memref<1x4x8x16x128xbf16, #tpu.memory_space<vmem>>, vector<1x1x8x16x128xbf16>,
    %50 = vector.extract_strided_slice %4 {offsets = [1, 0, 0], sizes = [8, 16, 128], strides = [1, 1, 1]} : vector<10x16x128xbf16> to vector<8x16x128xbf16>
    %51 = vector.shape_cast %50 : vector<8x16x128xbf16> to vector<128x128xbf16>
    %52 = vector.extract_strided_slice %7 {offsets = [1, 0, 0], sizes = [8, 16, 128], strides = [1, 1, 1]} : vector<10x16x128xbf16> to vector<8x16x128xbf16>
    %53 = vector.shape_cast %52 : vector<8x16x128xbf16> to vector<128x128xbf16>
    %54 = vector.extract_strided_slice %4 {offsets = [2, 0, 0], sizes = [8, 16, 128], strides = [1, 1, 1]} : vector<10x16x128xbf16> to vector<8x16x128xbf16>
    %55 = vector.shape_cast %54 : vector<8x16x128xbf16> to vector<128x128xbf16>
    %56 = vector.extract_strided_slice %7 {offsets = [2, 0, 0], sizes = [8, 16, 128], strides = [1, 1, 1]} : vector<10x16x128xbf16> to vector<8x16x128xbf16>
    %57 = vector.shape_cast %56 : vector<8x16x128xbf16> to vector<128x128xbf16>
    %58 = tpu.concatenate %51, %53, %55, %57 in 1 : vector<128x128xbf16>, vector<128x128xbf16>, vector<128x128xbf16>, vector<128x128xbf16> -> vector<128x512xbf16>
    %c2_25 = arith.constant 2 : index
    %c0_26 = arith.constant 0 : index
    %c0_27 = arith.constant 0 : index
    %59 = vector.load %arg3[%c2_25, %c0_26, %c0_27] : memref<4x512x128xbf16, #tpu.memory_space<vmem>>, vector<1x512x128xbf16>
    %60 = vector.shape_cast %59 : vector<1x512x128xbf16> to vector<512x128xbf16>
    %cst_28 = arith.constant dense<0.000000e+00> : vector<128x128xf32>
    %61 = tpu.matmul %58, %60, %cst_28 {dimension_numbers = #tpu.dot_dimension_numbers<[1], [0], [0], [1], [0, 0, 1, 1], [], []>} : vector<128x512xbf16>, vector<512x128xbf16>, vector<128x128xf32> -> vector<128x128xf32>
    %62 = vector.broadcast %11 : vector<1x128xf32> to vector<128x128xf32>
    %63 = arith.addf %61, %62 : vector<128x128xf32>
    %64 = vector.shape_cast %63 : vector<128x128xf32> to vector<8x16x128xf32>
    %65 = arith.truncf %64 : vector<8x16x128xf32> to vector<8x16x128xbf16>
    %c0_29 = arith.constant 0 : index
    %c2_30 = arith.constant 2 : index
    %c0_31 = arith.constant 0 : index
    %c0_32 = arith.constant 0 : index
    %c0_33 = arith.constant 0 : index
    %66 = vector.load %arg5[%c0_29, %c2_30, %c0_31, %c0_32, %c0_33] : memref<1x4x8x16x128xbf16, #tpu.memory_space<vmem>>, vector<1x1x8x16x128xbf16>
    %67 = vector.shape_cast %66 : vector<1x1x8x16x128xbf16> to vector<8x16x128xbf16>
    %68 = vector.shape_cast %65 : vector<8x16x128xbf16> to vector<1x1x8x16x128xbf16>
    tpu.vector_store %arg5[%c0_29, %c2_30, %c0_31, %c0_32, %c0_33], %68 {strides = array<i32>} : memref<1x4x8x16x128xbf16, #tpu.memory_space<vmem>>, vector<1x1x8x16x128xbf16>,
    %69 = vector.extract_strided_slice %7 {offsets = [1, 0, 0], sizes = [8, 16, 128], strides = [1, 1, 1]} : vector<10x16x128xbf16> to vector<8x16x128xbf16>
    %70 = vector.shape_cast %69 : vector<8x16x128xbf16> to vector<128x128xbf16>
    %71 = vector.extract_strided_slice %10 {offsets = [1, 0, 0], sizes = [8, 16, 128], strides = [1, 1, 1]} : vector<10x16x128xbf16> to vector<8x16x128xbf16>
    %72 = vector.shape_cast %71 : vector<8x16x128xbf16> to vector<128x128xbf16>
    %73 = vector.extract_strided_slice %7 {offsets = [2, 0, 0], sizes = [8, 16, 128], strides = [1, 1, 1]} : vector<10x16x128xbf16> to vector<8x16x128xbf16>
    %74 = vector.shape_cast %73 : vector<8x16x128xbf16> to vector<128x128xbf16>
    %75 = vector.extract_strided_slice %10 {offsets = [2, 0, 0], sizes = [8, 16, 128], strides = [1, 1, 1]} : vector<10x16x128xbf16> to vector<8x16x128xbf16>
    %76 = vector.shape_cast %75 : vector<8x16x128xbf16> to vector<128x128xbf16>
    %77 = tpu.concatenate %70, %72, %74, %76 in 1 : vector<128x128xbf16>, vector<128x128xbf16>, vector<128x128xbf16>, vector<128x128xbf16> -> vector<128x512xbf16>
    %c3 = arith.constant 3 : index
    %c0_34 = arith.constant 0 : index
    %c0_35 = arith.constant 0 : index
    %78 = vector.load %arg3[%c3, %c0_34, %c0_35] : memref<4x512x128xbf16, #tpu.memory_space<vmem>>, vector<1x512x128xbf16>
    %79 = vector.shape_cast %78 : vector<1x512x128xbf16> to vector<512x128xbf16>
    %cst_36 = arith.constant dense<0.000000e+00> : vector<128x128xf32>
    %80 = tpu.matmul %77, %79, %cst_36 {dimension_numbers = #tpu.dot_dimension_numbers<[1], [0], [0], [1], [0, 0, 1, 1], [], []>} : vector<128x512xbf16>, vector<512x128xbf16>, vector<128x128xf32> -> vector<128x128xf32>
    %81 = vector.broadcast %11 : vector<1x128xf32> to vector<128x128xf32>
    %82 = arith.addf %80, %81 : vector<128x128xf32>
    %83 = vector.shape_cast %82 : vector<128x128xf32> to vector<8x16x128xf32>
    %84 = arith.truncf %83 : vector<8x16x128xf32> to vector<8x16x128xbf16>
    %c0_37 = arith.constant 0 : index
    %c3_38 = arith.constant 3 : index
    %c0_39 = arith.constant 0 : index
    %c0_40 = arith.constant 0 : index
    %c0_41 = arith.constant 0 : index
    %85 = vector.load %arg5[%c0_37, %c3_38, %c0_39, %c0_40, %c0_41] : memref<1x4x8x16x128xbf16, #tpu.memory_space<vmem>>, vector<1x1x8x16x128xbf16>
    %86 = vector.shape_cast %85 : vector<1x1x8x16x128xbf16> to vector<8x16x128xbf16>
    %87 = vector.shape_cast %84 : vector<8x16x128xbf16> to vector<1x1x8x16x128xbf16>
    tpu.vector_store %arg5[%c0_37, %c3_38, %c0_39, %c0_40, %c0_41], %87 {strides = array<i32>} : memref<1x4x8x16x128xbf16, #tpu.memory_space<vmem>>, vector<1x1x8x16x128xbf16>,
    return
  }
  func.func @transform_0(%arg0: i32, %arg1: i32) -> (i32, i32, i32, i32) {
    %c0_i32 = arith.constant 0 : i32
    %c0_i32_0 = arith.constant 0 : i32
    %c0_i32_1 = arith.constant 0 : i32
    %c0_i32_2 = arith.constant 0 : i32
    return %arg0, %c0_i32, %c0_i32_0, %c0_i32_1 : i32, i32, i32, i32
  }
  func.func @transform_1(%arg0: i32, %arg1: i32) -> (i32, i32, i32) {
    %c0_i32 = arith.constant 0 : i32
    %c0_i32_0 = arith.constant 0 : i32
    %c0_i32_1 = arith.constant 0 : i32
    %c0_i32_2 = arith.constant 0 : i32
    return %c0_i32, %c0_i32_0, %c0_i32_1 : i32, i32, i32
  }
  func.func @transform_2(%arg0: i32, %arg1: i32) -> (i32, i32) {
    %c0_i32 = arith.constant 0 : i32
    %c0_i32_0 = arith.constant 0 : i32
    %c0_i32_1 = arith.constant 0 : i32
    return %c0_i32, %c0_i32_0 : i32, i32
  }
  func.func @transform_3(%arg0: i32, %arg1: i32) -> (i32, i32, i32, i32, i32) {
    %c0_i32 = arith.constant 0 : i32
    %c0_i32_0 = arith.constant 0 : i32
    %c0_i32_1 = arith.constant 0 : i32
    %c0_i32_2 = arith.constant 0 : i32
    return %arg0, %c0_i32, %arg1, %c0_i32_0, %c0_i32_1 : i32, i32, i32, i32, i32
  }
}

module attributes {stable_mosaic.version = 11 : i64} {
  func.func @_upsample_subpixel_conv_kernel(%arg0: i32, %arg1: i32, %arg2: memref<1x18x18x128xbf16, #tpu.memory_space<vmem>>, %arg3: memref<4x512x128xbf16, #tpu.memory_space<vmem>>, %arg4: memref<1x128xf32, #tpu.memory_space<vmem>>, %arg5: memref<1x4x8x16x128xbf16, #tpu.memory_space<vmem>>) attributes {dimension_semantics = [#tpu.dimension_semantics<parallel>, #tpu.dimension_semantics<parallel>], iteration_bounds = array<i64: 2, 2>, scalar_prefetch = 0 : i64, scratch_operands = 0 : i64, tpu.core_type = #tpu.core_type<tc>, window_params = [{transform_indices = @transform_0, window_bounds = array<i64: 1, 18, 18, 128>}, {pipeline_mode = #tpu.pipeline_mode<synchronous>, transform_indices = @transform_1, window_bounds = array<i64: 4, 512, 128>}, {pipeline_mode = #tpu.pipeline_mode<synchronous>, transform_indices = @transform_2, window_bounds = array<i64: 1, 128>}, {transform_indices = @transform_3, window_bounds = array<i64: 1, 4, 8, 16, 128>}]} {
    %c8_i32 = arith.constant 8 : i32
    %0 = arith.muli %arg1, %c8_i32 : i32
    %1 = tpu.assume_multiple %0, 8 : i32
    %c0 = arith.constant 0 : index
    %2 = arith.index_cast %1 : i32 to index
    %c0_0 = arith.constant 0 : index
    %c0_1 = arith.constant 0 : index
    %3 = vector.load %arg2[%c0, %2, %c0_0, %c0_1] : memref<1x18x18x128xbf16, #tpu.memory_space<vmem>>, vector<1x10x16x128xbf16>
    %4 = vector.shape_cast %3 : vector<1x10x16x128xbf16> to vector<10x16x128xbf16>
    %c0_2 = arith.constant 0 : index
    %5 = arith.index_cast %1 : i32 to index
    %c1 = arith.constant 1 : index
    %c0_3 = arith.constant 0 : index
    %6 = vector.load %arg2[%c0_2, %5, %c1, %c0_3] : memref<1x18x18x128xbf16, #tpu.memory_space<vmem>>, vector<1x10x16x128xbf16>
    %7 = vector.shape_cast %6 : vector<1x10x16x128xbf16> to vector<10x16x128xbf16>
    %c0_4 = arith.constant 0 : index
    %8 = arith.index_cast %1 : i32 to index
    %c2 = arith.constant 2 : index
    %c0_5 = arith.constant 0 : index
    %9 = vector.load %arg2[%c0_4, %8, %c2, %c0_5] : memref<1x18x18x128xbf16, #tpu.memory_space<vmem>>, vector<1x10x16x128xbf16>
    %10 = vector.shape_cast %9 : vector<1x10x16x128xbf16> to vector<10x16x128xbf16>
    %c0_6 = arith.constant 0 : index
    %c0_7 = arith.constant 0 : index
    %11 = vector.load %arg4[%c0_6, %c0_7] : memref<1x128xf32, #tpu.memory_space<vmem>>, vector<1x128xf32>
    %12 = vector.extract_strided_slice %4 {offsets = [0, 0, 0], sizes = [8, 16, 128], strides = [1, 1, 1]} : vector<10x16x128xbf16> to vector<8x16x128xbf16>
    %13 = vector.shape_cast %12 : vector<8x16x128xbf16> to vector<128x128xbf16>
    %14 = vector.extract_strided_slice %7 {offsets = [0, 0, 0], sizes = [8, 16, 128], strides = [1, 1, 1]} : vector<10x16x128xbf16> to vector<8x16x128xbf16>
    %15 = vector.shape_cast %14 : vector<8x16x128xbf16> to vector<128x128xbf16>
    %16 = vector.extract_strided_slice %4 {offsets = [1, 0, 0], sizes = [8, 16, 128], strides = [1, 1, 1]} : vector<10x16x128xbf16> to vector<8x16x128xbf16>
    %17 = vector.shape_cast %16 : vector<8x16x128xbf16> to vector<128x128xbf16>
    %18 = vector.extract_strided_slice %7 {offsets = [1, 0, 0], sizes = [8, 16, 128], strides = [1, 1, 1]} : vector<10x16x128xbf16> to vector<8x16x128xbf16>
    %19 = vector.shape_cast %18 : vector<8x16x128xbf16> to vector<128x128xbf16>
    %20 = tpu.concatenate %13, %15, %17, %19 in 1 : vector<128x128xbf16>, vector<128x128xbf16>, vector<128x128xbf16>, vector<128x128xbf16> -> vector<128x512xbf16>
    %c0_8 = arith.constant 0 : index
    %c0_9 = arith.constant 0 : index
    %c0_10 = arith.constant 0 : index
    %21 = vector.load %arg3[%c0_8, %c0_9, %c0_10] : memref<4x512x128xbf16, #tpu.memory_space<vmem>>, vector<1x512x128xbf16>
    %22 = vector.shape_cast %21 : vector<1x512x128xbf16> to vector<512x128xbf16>
    %cst = arith.constant dense<0.000000e+00> : vector<128x128xf32>
    %23 = tpu.matmul %20, %22, %cst {dimension_numbers = #tpu.dot_dimension_numbers<[1], [0], [0], [1], [0, 0, 1, 1], [], []>} : vector<128x512xbf16>, vector<512x128xbf16>, vector<128x128xf32> -> vector<128x128xf32>
    %24 = vector.broadcast %11 : vector<1x128xf32> to vector<128x128xf32>
    %25 = arith.addf %23, %24 : vector<128x128xf32>
    %26 = vector.shape_cast %25 : vector<128x128xf32> to vector<8x16x128xf32>
    %27 = arith.truncf %26 : vector<8x16x128xf32> to vector<8x16x128xbf16>
    %c0_11 = arith.constant 0 : index
    %c0_12 = arith.constant 0 : index
    %c0_13 = arith.constant 0 : index
    %c0_14 = arith.constant 0 : index
    %c0_15 = arith.constant 0 : index
    %28 = vector.load %arg5[%c0_11, %c0_12, %c0_13, %c0_14, %c0_15] : memref<1x4x8x16x128xbf16, #tpu.memory_space<vmem>>, vector<1x1x8x16x128xbf16>
    %29 = vector.shape_cast %28 : vector<1x1x8x16x128xbf16> to vector<8x16x128xbf16>
    %30 = vector.shape_cast %27 : vector<8x16x128xbf16> to vector<1x1x8x16x128xbf16>
    tpu.vector_store %arg5[%c0_11, %c0_12, %c0_13, %c0_14, %c0_15], %30 {strides = array<i32>} : memref<1x4x8x16x128xbf16, #tpu.memory_space<vmem>>, vector<1x1x8x16x128xbf16>,
    %31 = vector.extract_strided_slice %7 {offsets = [0, 0, 0], sizes = [8, 16, 128], strides = [1, 1, 1]} : vector<10x16x128xbf16> to vector<8x16x128xbf16>
    %32 = vector.shape_cast %31 : vector<8x16x128xbf16> to vector<128x128xbf16>
    %33 = vector.extract_strided_slice %10 {offsets = [0, 0, 0], sizes = [8, 16, 128], strides = [1, 1, 1]} : vector<10x16x128xbf16> to vector<8x16x128xbf16>
    %34 = vector.shape_cast %33 : vector<8x16x128xbf16> to vector<128x128xbf16>
    %35 = vector.extract_strided_slice %7 {offsets = [1, 0, 0], sizes = [8, 16, 128], strides = [1, 1, 1]} : vector<10x16x128xbf16> to vector<8x16x128xbf16>
    %36 = vector.shape_cast %35 : vector<8x16x128xbf16> to vector<128x128xbf16>
    %37 = vector.extract_strided_slice %10 {offsets = [1, 0, 0], sizes = [8, 16, 128], strides = [1, 1, 1]} : vector<10x16x128xbf16> to vector<8x16x128xbf16>
    %38 = vector.shape_cast %37 : vector<8x16x128xbf16> to vector<128x128xbf16>
    %39 = tpu.concatenate %32, %34, %36, %38 in 1 : vector<128x128xbf16>, vector<128x128xbf16>, vector<128x128xbf16>, vector<128x128xbf16> -> vector<128x512xbf16>
    %c1_16 = arith.constant 1 : index
    %c0_17 = arith.constant 0 : index
    %c0_18 = arith.constant 0 : index
    %40 = vector.load %arg3[%c1_16, %c0_17, %c0_18] : memref<4x512x128xbf16, #tpu.memory_space<vmem>>, vector<1x512x128xbf16>
    %41 = vector.shape_cast %40 : vector<1x512x128xbf16> to vector<512x128xbf16>
    %cst_19 = arith.constant dense<0.000000e+00> : vector<128x128xf32>
    %42 = tpu.matmul %39, %41, %cst_19 {dimension_numbers = #tpu.dot_dimension_numbers<[1], [0], [0], [1], [0, 0, 1, 1], [], []>} : vector<128x512xbf16>, vector<512x128xbf16>, vector<128x128xf32> -> vector<128x128xf32>
    %43 = vector.broadcast %11 : vector<1x128xf32> to vector<128x128xf32>
    %44 = arith.addf %42, %43 : vector<128x128xf32>
    %45 = vector.shape_cast %44 : vector<128x128xf32> to vector<8x16x128xf32>
    %46 = arith.truncf %45 : vector<8x16x128xf32> to vector<8x16x128xbf16>
    %c0_20 = arith.constant 0 : index
    %c1_21 = arith.constant 1 : index
    %c0_22 = arith.constant 0 : index
    %c0_23 = arith.constant 0 : index
    %c0_24 = arith.constant 0 : index
    %47 = vector.load %arg5[%c0_20, %c1_21, %c0_22, %c0_23, %c0_24] : memref<1x4x8x16x128xbf16, #tpu.memory_space<vmem>>, vector<1x1x8x16x128xbf16>
    %48 = vector.shape_cast %47 : vector<1x1x8x16x128xbf16> to vector<8x16x128xbf16>
    %49 = vector.shape_cast %46 : vector<8x16x128xbf16> to vector<1x1x8x16x128xbf16>
    tpu.vector_store %arg5[%c0_20, %c1_21, %c0_22, %c0_23, %c0_24], %49 {strides = array<i32>} : memref<1x4x8x16x128xbf16, #tpu.memory_space<vmem>>, vector<1x1x8x16x128xbf16>,
    %50 = vector.extract_strided_slice %4 {offsets = [1, 0, 0], sizes = [8, 16, 128], strides = [1, 1, 1]} : vector<10x16x128xbf16> to vector<8x16x128xbf16>
    %51 = vector.shape_cast %50 : vector<8x16x128xbf16> to vector<128x128xbf16>
    %52 = vector.extract_strided_slice %7 {offsets = [1, 0, 0], sizes = [8, 16, 128], strides = [1, 1, 1]} : vector<10x16x128xbf16> to vector<8x16x128xbf16>
    %53 = vector.shape_cast %52 : vector<8x16x128xbf16> to vector<128x128xbf16>
    %54 = vector.extract_strided_slice %4 {offsets = [2, 0, 0], sizes = [8, 16, 128], strides = [1, 1, 1]} : vector<10x16x128xbf16> to vector<8x16x128xbf16>
    %55 = vector.shape_cast %54 : vector<8x16x128xbf16> to vector<128x128xbf16>
    %56 = vector.extract_strided_slice %7 {offsets = [2, 0, 0], sizes = [8, 16, 128], strides = [1, 1, 1]} : vector<10x16x128xbf16> to vector<8x16x128xbf16>
    %57 = vector.shape_cast %56 : vector<8x16x128xbf16> to vector<128x128xbf16>
    %58 = tpu.concatenate %51, %53, %55, %57 in 1 : vector<128x128xbf16>, vector<128x128xbf16>, vector<128x128xbf16>, vector<128x128xbf16> -> vector<128x512xbf16>
    %c2_25 = arith.constant 2 : index
    %c0_26 = arith.constant 0 : index
    %c0_27 = arith.constant 0 : index
    %59 = vector.load %arg3[%c2_25, %c0_26, %c0_27] : memref<4x512x128xbf16, #tpu.memory_space<vmem>>, vector<1x512x128xbf16>
    %60 = vector.shape_cast %59 : vector<1x512x128xbf16> to vector<512x128xbf16>
    %cst_28 = arith.constant dense<0.000000e+00> : vector<128x128xf32>
    %61 = tpu.matmul %58, %60, %cst_28 {dimension_numbers = #tpu.dot_dimension_numbers<[1], [0], [0], [1], [0, 0, 1, 1], [], []>} : vector<128x512xbf16>, vector<512x128xbf16>, vector<128x128xf32> -> vector<128x128xf32>
    %62 = vector.broadcast %11 : vector<1x128xf32> to vector<128x128xf32>
    %63 = arith.addf %61, %62 : vector<128x128xf32>
    %64 = vector.shape_cast %63 : vector<128x128xf32> to vector<8x16x128xf32>
    %65 = arith.truncf %64 : vector<8x16x128xf32> to vector<8x16x128xbf16>
    %c0_29 = arith.constant 0 : index
    %c2_30 = arith.constant 2 : index
    %c0_31 = arith.constant 0 : index
    %c0_32 = arith.constant 0 : index
    %c0_33 = arith.constant 0 : index
    %66 = vector.load %arg5[%c0_29, %c2_30, %c0_31, %c0_32, %c0_33] : memref<1x4x8x16x128xbf16, #tpu.memory_space<vmem>>, vector<1x1x8x16x128xbf16>
    %67 = vector.shape_cast %66 : vector<1x1x8x16x128xbf16> to vector<8x16x128xbf16>
    %68 = vector.shape_cast %65 : vector<8x16x128xbf16> to vector<1x1x8x16x128xbf16>
    tpu.vector_store %arg5[%c0_29, %c2_30, %c0_31, %c0_32, %c0_33], %68 {strides = array<i32>} : memref<1x4x8x16x128xbf16, #tpu.memory_space<vmem>>, vector<1x1x8x16x128xbf16>,
    %69 = vector.extract_strided_slice %7 {offsets = [1, 0, 0], sizes = [8, 16, 128], strides = [1, 1, 1]} : vector<10x16x128xbf16> to vector<8x16x128xbf16>
    %70 = vector.shape_cast %69 : vector<8x16x128xbf16> to vector<128x128xbf16>
    %71 = vector.extract_strided_slice %10 {offsets = [1, 0, 0], sizes = [8, 16, 128], strides = [1, 1, 1]} : vector<10x16x128xbf16> to vector<8x16x128xbf16>
    %72 = vector.shape_cast %71 : vector<8x16x128xbf16> to vector<128x128xbf16>
    %73 = vector.extract_strided_slice %7 {offsets = [2, 0, 0], sizes = [8, 16, 128], strides = [1, 1, 1]} : vector<10x16x128xbf16> to vector<8x16x128xbf16>
    %74 = vector.shape_cast %73 : vector<8x16x128xbf16> to vector<128x128xbf16>
    %75 = vector.extract_strided_slice %10 {offsets = [2, 0, 0], sizes = [8, 16, 128], strides = [1, 1, 1]} : vector<10x16x128xbf16> to vector<8x16x128xbf16>
    %76 = vector.shape_cast %75 : vector<8x16x128xbf16> to vector<128x128xbf16>
    %77 = tpu.concatenate %70, %72, %74, %76 in 1 : vector<128x128xbf16>, vector<128x128xbf16>, vector<128x128xbf16>, vector<128x128xbf16> -> vector<128x512xbf16>
    %c3 = arith.constant 3 : index
    %c0_34 = arith.constant 0 : index
    %c0_35 = arith.constant 0 : index
    %78 = vector.load %arg3[%c3, %c0_34, %c0_35] : memref<4x512x128xbf16, #tpu.memory_space<vmem>>, vector<1x512x128xbf16>
    %79 = vector.shape_cast %78 : vector<1x512x128xbf16> to vector<512x128xbf16>
    %cst_36 = arith.constant dense<0.000000e+00> : vector<128x128xf32>
    %80 = tpu.matmul %77, %79, %cst_36 {dimension_numbers = #tpu.dot_dimension_numbers<[1], [0], [0], [1], [0, 0, 1, 1], [], []>} : vector<128x512xbf16>, vector<512x128xbf16>, vector<128x128xf32> -> vector<128x128xf32>
    %81 = vector.broadcast %11 : vector<1x128xf32> to vector<128x128xf32>
    %82 = arith.addf %80, %81 : vector<128x128xf32>
    %83 = vector.shape_cast %82 : vector<128x128xf32> to vector<8x16x128xf32>
    %84 = arith.truncf %83 : vector<8x16x128xf32> to vector<8x16x128xbf16>
    %c0_37 = arith.constant 0 : index
    %c3_38 = arith.constant 3 : index
    %c0_39 = arith.constant 0 : index
    %c0_40 = arith.constant 0 : index
    %c0_41 = arith.constant 0 : index
    %85 = vector.load %arg5[%c0_37, %c3_38, %c0_39, %c0_40, %c0_41] : memref<1x4x8x16x128xbf16, #tpu.memory_space<vmem>>, vector<1x1x8x16x128xbf16>
    %86 = vector.shape_cast %85 : vector<1x1x8x16x128xbf16> to vector<8x16x128xbf16>
    %87 = vector.shape_cast %84 : vector<8x16x128xbf16> to vector<1x1x8x16x128xbf16>
    tpu.vector_store %arg5[%c0_37, %c3_38, %c0_39, %c0_40, %c0_41], %87 {strides = array<i32>} : memref<1x4x8x16x128xbf16, #tpu.memory_space<vmem>>, vector<1x1x8x16x128xbf16>,
    return
  }
  func.func @transform_0(%arg0: i32, %arg1: i32) -> (i32, i32, i32, i32) {
    %c0_i32 = arith.constant 0 : i32
    %c0_i32_0 = arith.constant 0 : i32
    %c0_i32_1 = arith.constant 0 : i32
    %c0_i32_2 = arith.constant 0 : i32
    return %arg0, %c0_i32, %c0_i32_0, %c0_i32_1 : i32, i32, i32, i32
  }
  func.func @transform_1(%arg0: i32, %arg1: i32) -> (i32, i32, i32) {
    %c0_i32 = arith.constant 0 : i32
    %c0_i32_0 = arith.constant 0 : i32
    %c0_i32_1 = arith.constant 0 : i32
    %c0_i32_2 = arith.constant 0 : i32
    return %c0_i32, %c0_i32_0, %c0_i32_1 : i32, i32, i32
  }
  func.func @transform_2(%arg0: i32, %arg1: i32) -> (i32, i32) {
    %c0_i32 = arith.constant 0 : i32
    %c0_i32_0 = arith.constant 0 : i32
    %c0_i32_1 = arith.constant 0 : i32
    return %c0_i32, %c0_i32_0 : i32, i32
  }
  func.func @transform_3(%arg0: i32, %arg1: i32) -> (i32, i32, i32, i32, i32) {
    %c0_i32 = arith.constant 0 : i32
    %c0_i32_0 = arith.constant 0 : i32
    %c0_i32_1 = arith.constant 0 : i32
    %c0_i32_2 = arith.constant 0 : i32
    return %arg0, %c0_i32, %arg1, %c0_i32_0, %c0_i32_1 : i32, i32, i32, i32, i32
  }
}

</mosaic_0001>

<llo_original>
// kernel: _upsample_conv.1
$region0: #{_upsample_conv.1}
  #allocation0 [shape = 'u32[]', space=smem, size = 0x4, offset = 0x4, fixed_abs, tag = 'smem constant byte address 0x4 - core index']
  #allocation1 [shape = 'u32[144,128]{1,0:T(1,128)}', space=vmem, size = 0x12000, scoped, tag = 'internal scratch']
  %s0 = inlined_call_operand.vmem [shape: bf16[2,18,18,128], index: 0, kind: input, shape index: {}]
  %s1 = inlined_call_operand.vmem [shape: bf16[4,512,128], index: 1, kind: input, shape index: {}]
  %s2 = inlined_call_operand.vmem [shape: f32[1,128], index: 2, kind: input, shape index: {}]
  %s3 = inlined_call_operand.vmem [shape: bf16[2,4,16,16,128], index: 3, kind: output, shape index: {}]
  %s4 = sld [smem:[#allocation0]]
  $region82: #{_upsample_conv.1} parent=0
    _
  %s6 = ssub.s32 1, %s4
  %s7 = scalar_select 0, %s6, %s4
  $region1: #{_upsample_conv.1} parent=0
    #allocation2 [shape = 'u8[262144]{0}', space=vmem, size = 0x40000, scoped, tag = 'output window, operand 0']
    loop: start=0, step=1, limit=6
    $region2: #{_upsample_conv.1} parent=1 // loop_pre_header
      _
    $region3: #{_upsample_conv.1} parent=1 // loop_header
      %s9 = sphi 0, %s13
      %p10 = scmp.ge.s32.totalorder %s9, 6
      %s16 = sphi 0, %s28
      %s17 = sphi 0, %s24
      %s18 = sphi 0, %s16
      %s19 = sphi 0, %s17
      %s20 = sphi 0, %s18
      %s21 = sphi 0, %s19
      %s31 = sphi 0, %s33
      %s34 = sphi 0, %s31
      %s35 = sphi 0, %s34
      %s51 = sphi 0, %s35
      %s55 = sphi 0, %s55
      %s57 = sphi 0, %s55
      %s58 = sphi 0, %s57
      %s72 = sphi 0, %s58
      %s76 = sphi 0, %s76
      %s78 = sphi 0, %s76
      %s79 = sphi 0, %s78
      %s93 = sphi 0, %s79
      %s101 = sphi 0, %s103
      %s104 = sphi 0, %s101
      %s105 = sphi 0, %s104
      %s121 = sphi 0, %s105
    $region4: #{_upsample_conv.1} parent=1 // loop_header_branch
      %12 = sbr.rel (%p10) target = $region8
    $region5: #{_upsample_conv.1} parent=1 // loop_body
      %s14 = ssub.s32 %s9, 1
      %s15 = ssub.s32 %s9, 2
      %s22 = sadd.s32 1, %s17
      %p23 = scmp.ge.s32.totalorder %s22, 2
      %s24 = scalar_select %p23, 0, %s22
      %s25 = sadd.s32 1, %s16
      %s26 = scalar_select %p23, %s25, %s16
      %p27 = scmp.ge.s32.totalorder %s26, 2
      %s28 = scalar_select %p27, 0, %s26
      %s29 = ssub.s32 %s16, %s28
      %p30 = scmp.eq.s32.totalorder %s29, 0
      %s32 = sadd.s32 %s31, 1
      %s33 = scalar_select %p30, %s31, %s32
      %p36 = pneg %p30
      %p37 = scmp.eq.s32.totalorder %s9, 3
      %p38 = por %p36, %p37
      %p39 = scmp.ne.s32.totalorder %s31, %s34
      %p40 = scmp.eq.s32.totalorder %s9, 0
      %p41 = por %p39, %p40
      %p42 = scmp.ne.s32.totalorder %s31, %s34
      %p43 = scmp.eq.s32.totalorder %s14, 3
      %p44 = por %p42, %p43
      %p45 = scmp.ne.s32.totalorder %s34, %s35
      %p46 = scmp.eq.s32.totalorder %s14, 0
      %p47 = por %p45, %p46
      %p48 = scmp.ne.s32.totalorder %s34, %s35
      %p49 = scmp.eq.s32.totalorder %s15, 3
      %p50 = por %p48, %p49
      %p52 = scmp.ne.s32.totalorder %s35, %s51
      %p53 = scmp.eq.s32.totalorder %s15, 0
      %p54 = por %p52, %p53
      %s56 = sadd.s32 %s55, 1
      %p59 = scmp.eq.s32.totalorder %s9, 3
      %p60 = scmp.ne.s32.totalorder %s55, %s57
      %p61 = scmp.eq.s32.totalorder %s9, 0
      %p62 = por %p60, %p61
      %p63 = scmp.ne.s32.totalorder %s55, %s57
      %p64 = scmp.eq.s32.totalorder %s14, 3
      %p65 = por %p63, %p64
      %p66 = scmp.ne.s32.totalorder %s57, %s58
      %p67 = scmp.eq.s32.totalorder %s14, 0
      %p68 = por %p66, %p67
      %p69 = scmp.ne.s32.totalorder %s57, %s58
      %p70 = scmp.eq.s32.totalorder %s15, 3
      %p71 = por %p69, %p70
      %p73 = scmp.ne.s32.totalorder %s58, %s72
      %p74 = scmp.eq.s32.totalorder %s15, 0
      %p75 = por %p73, %p74
      %s77 = sadd.s32 %s76, 1
      %p80 = scmp.eq.s32.totalorder %s9, 3
      %p81 = scmp.ne.s32.totalorder %s76, %s78
      %p82 = scmp.eq.s32.totalorder %s9, 0
      %p83 = por %p81, %p82
      %p84 = scmp.ne.s32.totalorder %s76, %s78
      %p85 = scmp.eq.s32.totalorder %s14, 3
      %p86 = por %p84, %p85
      %p87 = scmp.ne.s32.totalorder %s78, %s79
      %p88 = scmp.eq.s32.totalorder %s14, 0
      %p89 = por %p87, %p88
      %p90 = scmp.ne.s32.totalorder %s78, %s79
      %p91 = scmp.eq.s32.totalorder %s15, 3
      %p92 = por %p90, %p91
      %p94 = scmp.ne.s32.totalorder %s79, %s93
      %p95 = scmp.eq.s32.totalorder %s15, 0
      %p96 = por %p94, %p95
      %s97 = ssub.s32 %s16, %s28
      %s98 = ssub.s32 %s17, %s24
      %s99 = sor.u32 %s97, %s98
      %p100 = scmp.eq.s32.totalorder %s99, 0
      %s102 = sadd.s32 %s101, 1
      %s103 = scalar_select %p100, %s101, %s102
      %p106 = pneg %p100
      %p107 = scmp.eq.s32.totalorder %s9, 3
      %p108 = por %p106, %p107
      %p109 = scmp.ne.s32.totalorder %s101, %s104
      %p110 = scmp.eq.s32.totalorder %s9, 0
      %p111 = por %p109, %p110
      %p112 = scmp.ne.s32.totalorder %s101, %s104
      %p113 = scmp.eq.s32.totalorder %s14, 3
      %p114 = por %p112, %p113
      %p115 = scmp.ne.s32.totalorder %s104, %s105
      %p116 = scmp.eq.s32.totalorder %s14, 0
      %p117 = por %p115, %p116
      %p118 = scmp.ne.s32.totalorder %s104, %s105
      %p119 = scmp.eq.s32.totalorder %s15, 3
      %p120 = por %p118, %p119
      %p122 = scmp.ne.s32.totalorder %s105, %s121
      %p123 = scmp.eq.s32.totalorder %s15, 0
      %p124 = por %p122, %p123
      %p125 = scmp.le.s32.totalorder 1, %s9
      %p126 = scmp.lt.s32.totalorder %s9, 5
      %p127 = pnand %p125, %p126
      %p128 = pneg %p127
      // Predicated region
      $region9: #{_upsample_conv.1} parent=5 // pred_check
        _
      $region10: #{_upsample_conv.1} parent=5 // pred_check_branch
        %130 = sbr.rel (%p127) target = $region12
      $region11: #{_upsample_conv.1} parent=5 // pred_region
        %s131 = ssub.s32 %s9, 1
        // Predicated region
        $region13: #{_upsample_conv.1} parent=11 // pred_check
          %p132 = pneg %p47
        $region14: #{_upsample_conv.1} parent=11 // pred_check_branch
          %134 = sbr.rel (%p132) target = $region16
        $region15: #{_upsample_conv.1} parent=11 // pred_region
          %p135 = scmp.lt.s32.totalorder %s18, 1
          %s136 = scalar_select %p135, %s18, 1
          %s137 = smul.addr %s136, 54
          %s138 = smul.addr %s137, 4
          %s139 = scalar_lea.vmem %s0, %s138
        $region16: #{_upsample_conv.1} parent=11 // pred_fallthru
          _
        // Predicated region
        $region17: #{_upsample_conv.1} parent=11 // pred_check
          %p140 = pneg %p68
        $region18: #{_upsample_conv.1} parent=11 // pred_check_branch
          %142 = sbr.rel (%p140) target = $region20
        $region19: #{_upsample_conv.1} parent=11 // pred_region
          _
        $region20: #{_upsample_conv.1} parent=11 // pred_fallthru
          _
        // Predicated region
        $region21: #{_upsample_conv.1} parent=11 // pred_check
          %p143 = pneg %p89
        $region22: #{_upsample_conv.1} parent=11 // pred_check_branch
          %145 = sbr.rel (%p143) target = $region24
        $region23: #{_upsample_conv.1} parent=11 // pred_region
          _
        $region24: #{_upsample_conv.1} parent=11 // pred_fallthru
          _
      $region12: #{_upsample_conv.1} parent=5 // pred_fallthru
        _
      %p146 = scmp.lt.s32.totalorder %s9, 4
      // Predicated region
      $region25: #{_upsample_conv.1} parent=5 // pred_check
        %p147 = pneg %p146
      $region26: #{_upsample_conv.1} parent=5 // pred_check_branch
        %149 = sbr.rel (%p147) target = $region28
      $region27: #{_upsample_conv.1} parent=5 // pred_region
        _
      $region28: #{_upsample_conv.1} parent=5 // pred_fallthru
        _
      %p150 = scmp.le.s32.totalorder 1, %s9
      %p151 = scmp.lt.s32.totalorder %s9, 5
      %p152 = pnand %p150, %p151
      %p153 = pneg %p152
      // Predicated region
      $region29: #{_upsample_conv.1} parent=5 // pred_check
        _
      $region30: #{_upsample_conv.1} parent=5 // pred_check_branch
        %155 = sbr.rel (%p152) target = $region32
      $region31: #{_upsample_conv.1} parent=5 // pred_region
        %s156 = ssub.s32 %s9, 1
        %p157 = scmp.lt.s32.totalorder %s18, 1
        %s158 = scalar_select %p157, %s18, 1
        %s159 = smul.addr %s158, 54
        %s160 = smul.addr %s159, 4
        %s161 = scalar_lea.vmem %s0, %s160
        %p162 = pneg %p47
        %p163 = pneg %p44
        %p164 = pneg %p68
        %p165 = pneg %p65
        %p166 = pneg %p89
        %p167 = pneg %p86
        %p168 = pneg %p117
        %p169 = pneg %p114
        %s170 = sand.u32 %s104, 1
        %s171 = sand.u32 %s104, 1
        %s172 = smul.addr %s171, 256
        %s173 = scalar_lea.vmem [#allocation2], %s172
        %p174 = scmp.lt.s32.totalorder %s18, 1
        %s175 = scalar_select %p174, %s18, 1
        %s176 = smul.addr %s175, 54
        %s177 = smul.addr %s176, 4
        %s178 = scalar_lea.vmem %s0, %s177
        %s179 = smul.u32 8, %s19
        %s181 = smul.u32 %s19, 8
        %s182 = smul.u32 %s181, 3
        %s183 = smul.addr %s182, 4
        %s184 = scalar_lea.vmem %s178, %s183
        %v185 = vld [vmem:[%s184] sm:$0xf]
        %v186 = vld [vmem:[%s184 + $0x4] sm:$0xf]
        %v187 = vld [vmem:[%s184 + $0xc] sm:$0xf]
        %v188 = vld [vmem:[%s184 + $0x10] sm:$0xf]
        %v189 = vld [vmem:[%s184 + $0x18] sm:$0xf]
        %v190 = vld [vmem:[%s184 + $0x1c] sm:$0xf]
        %v191 = vld [vmem:[%s184 + $0x24] sm:$0xf]
        %v192 = vld [vmem:[%s184 + $0x28] sm:$0xf]
        %v193 = vld [vmem:[%s184 + $0x30] sm:$0xf]
        %v194 = vld [vmem:[%s184 + $0x34] sm:$0xf]
        %v195 = vld [vmem:[%s184 + $0x3c] sm:$0xf]
        %v196 = vld [vmem:[%s184 + $0x40] sm:$0xf]
        %v197 = vld [vmem:[%s184 + $0x48] sm:$0xf]
        %v198 = vld [vmem:[%s184 + $0x4c] sm:$0xf]
        %v199 = vld [vmem:[%s184 + $0x54] sm:$0xf]
        %v200 = vld [vmem:[%s184 + $0x58] sm:$0xf]
        %v201 = vld [vmem:[%s184 + $0x60] sm:$0xf]
        %v202 = vld [vmem:[%s184 + $0x64] sm:$0xf]
        %v203 = vld [vmem:[%s184 + $0x6c] sm:$0xf]
        %v204 = vld [vmem:[%s184 + $0x70] sm:$0xf]
        %v205 = vld [vmem:[%s184 + $0x8] sm:$0x1]
        %v206 = vld [vmem:[%s184 + $0x14] sm:$0x1]
        %v207 = vld [vmem:[%s184 + $0x20] sm:$0x1]
        %v208 = vld [vmem:[%s184 + $0x2c] sm:$0x1]
        %v209 = vld [vmem:[%s184 + $0x38] sm:$0x1]
        %v210 = vld [vmem:[%s184 + $0x44] sm:$0x1]
        %v211 = vld [vmem:[%s184 + $0x50] sm:$0x1]
        %v212 = vld [vmem:[%s184 + $0x5c] sm:$0x1]
        %v213 = vld [vmem:[%s184 + $0x68] sm:$0x1]
        %v214 = vld [vmem:[%s184 + $0x74] sm:$0x1]
        %v215 = vld [vmem:[%s184] sm:$0xe]
        %v216 = vld [vmem:[%s184 + $0xc] sm:$0xe]
        %v217 = vld [vmem:[%s184 + $0x18] sm:$0xe]
        %v218 = vld [vmem:[%s184 + $0x24] sm:$0xe]
        %v219 = vld [vmem:[%s184 + $0x30] sm:$0xe]
        %v220 = vld [vmem:[%s184 + $0x3c] sm:$0xe]
        %v221 = vld [vmem:[%s184 + $0x48] sm:$0xe]
        %v222 = vld [vmem:[%s184 + $0x54] sm:$0xe]
        %v223 = vld [vmem:[%s184 + $0x60] sm:$0xe]
        %v224 = vld [vmem:[%s184 + $0x6c] sm:$0xe]
        %v225 = vld [vmem:[%s2] sm:$0x1]
        %vm226 = vsmask.f32 3328
        %vm227 = vsmask.f32 7440
        %vm228 = vmor %vm226, %vm227
        %v230 = vshrl.u32 %v185, 16
        %v232 = vrot.slane %v230, 4
        %v233 = vshll.u32 %v185, 16
        %v235 = vrot.slane %v233, 5
        %v236 = vor.u32 %v232, %v235
        %v237 = vrot.slane %v236, 4
        %v239 = vshll.u32 %v186, 16
        %v241 = vrot.slane %v239, 5
        %v242 = vsel %vm228, %v237, %v241
        %v243 = vshrl.u32 %v186, 16
        %v245 = vrot.slane %v243, 4
        %v246 = vor.u32 %v245, %v241
        %v247 = vrot.slane %v246, 4
        %v249 = vshll.u32 %v205, 16
        %v251 = vrot.slane %v249, 5
        %v252 = vsel %vm228, %v247, %v251
        %v254 = vshrl.u32 %v187, 16
        %v256 = vrot.slane %v254, 4
        %v257 = vshll.u32 %v187, 16
        %v259 = vrot.slane %v257, 5
        %v260 = vor.u32 %v256, %v259
        %v261 = vrot.slane %v260, 4
        %v263 = vshll.u32 %v188, 16
        %v265 = vrot.slane %v263, 5
        %v266 = vsel %vm228, %v261, %v265
        %v267 = vshrl.u32 %v188, 16
        %v269 = vrot.slane %v267, 4
        %v270 = vor.u32 %v269, %v265
        %v271 = vrot.slane %v270, 4
        %v273 = vshll.u32 %v206, 16
        %v275 = vrot.slane %v273, 5
        %v276 = vsel %vm228, %v271, %v275
        %v278 = vshrl.u32 %v189, 16
        %v280 = vrot.slane %v278, 4
        %v281 = vshll.u32 %v189, 16
        %v283 = vrot.slane %v281, 5
        %v284 = vor.u32 %v280, %v283
        %v285 = vrot.slane %v284, 4
        %v287 = vshll.u32 %v190, 16
        %v289 = vrot.slane %v287, 5
        %v290 = vsel %vm228, %v285, %v289
        %v291 = vshrl.u32 %v190, 16
        %v293 = vrot.slane %v291, 4
        %v294 = vor.u32 %v293, %v289
        %v295 = vrot.slane %v294, 4
        %v297 = vshll.u32 %v207, 16
        %v299 = vrot.slane %v297, 5
        %v300 = vsel %vm228, %v295, %v299
        %v302 = vshrl.u32 %v191, 16
        %v304 = vrot.slane %v302, 4
        %v305 = vshll.u32 %v191, 16
        %v307 = vrot.slane %v305, 5
        %v308 = vor.u32 %v304, %v307
        %v309 = vrot.slane %v308, 4
        %v311 = vshll.u32 %v192, 16
        %v313 = vrot.slane %v311, 5
        %v314 = vsel %vm228, %v309, %v313
        %v315 = vshrl.u32 %v192, 16
        %v317 = vrot.slane %v315, 4
        %v318 = vor.u32 %v317, %v313
        %v319 = vrot.slane %v318, 4
        %v321 = vshll.u32 %v208, 16
        %v323 = vrot.slane %v321, 5
        %v324 = vsel %vm228, %v319, %v323
        %v326 = vshrl.u32 %v193, 16
        %v328 = vrot.slane %v326, 4
        %v329 = vshll.u32 %v193, 16
        %v331 = vrot.slane %v329, 5
        %v332 = vor.u32 %v328, %v331
        %v333 = vrot.slane %v332, 4
        %v335 = vshll.u32 %v194, 16
        %v337 = vrot.slane %v335, 5
        %v338 = vsel %vm228, %v333, %v337
        %v339 = vshrl.u32 %v194, 16
        %v341 = vrot.slane %v339, 4
        %v342 = vor.u32 %v341, %v337
        %v343 = vrot.slane %v342, 4
        %v345 = vshll.u32 %v209, 16
        %v347 = vrot.slane %v345, 5
        %v348 = vsel %vm228, %v343, %v347
        %v350 = vshrl.u32 %v195, 16
        %v352 = vrot.slane %v350, 4
        %v353 = vshll.u32 %v195, 16
        %v355 = vrot.slane %v353, 5
        %v356 = vor.u32 %v352, %v355
        %v357 = vrot.slane %v356, 4
        %v359 = vshll.u32 %v196, 16
        %v361 = vrot.slane %v359, 5
        %v362 = vsel %vm228, %v357, %v361
        %v363 = vshrl.u32 %v196, 16
        %v365 = vrot.slane %v363, 4
        %v366 = vor.u32 %v365, %v361
        %v367 = vrot.slane %v366, 4
        %v369 = vshll.u32 %v210, 16
        %v371 = vrot.slane %v369, 5
        %v372 = vsel %vm228, %v367, %v371
        %v374 = vshrl.u32 %v197, 16
        %v376 = vrot.slane %v374, 4
        %v377 = vshll.u32 %v197, 16
        %v379 = vrot.slane %v377, 5
        %v380 = vor.u32 %v376, %v379
        %v381 = vrot.slane %v380, 4
        %v383 = vshll.u32 %v198, 16
        %v385 = vrot.slane %v383, 5
        %v386 = vsel %vm228, %v381, %v385
        %v387 = vshrl.u32 %v198, 16
        %v389 = vrot.slane %v387, 4
        %v390 = vor.u32 %v389, %v385
        %v391 = vrot.slane %v390, 4
        %v393 = vshll.u32 %v211, 16
        %v395 = vrot.slane %v393, 5
        %v396 = vsel %vm228, %v391, %v395
        %v398 = vshrl.u32 %v199, 16
        %v400 = vrot.slane %v398, 4
        %v401 = vshll.u32 %v199, 16
        %v403 = vrot.slane %v401, 5
        %v404 = vor.u32 %v400, %v403
        %v405 = vrot.slane %v404, 4
        %v407 = vshll.u32 %v200, 16
        %v409 = vrot.slane %v407, 5
        %v410 = vsel %vm228, %v405, %v409
        %v411 = vshrl.u32 %v200, 16
        %v413 = vrot.slane %v411, 4
        %v414 = vor.u32 %v413, %v409
        %v415 = vrot.slane %v414, 4
        %v417 = vshll.u32 %v212, 16
        %v419 = vrot.slane %v417, 5
        %v420 = vsel %vm228, %v415, %v419
        %v422 = vshrl.u32 %v201, 16
        %v424 = vrot.slane %v422, 4
        %v425 = vshll.u32 %v201, 16
        %v427 = vrot.slane %v425, 5
        %v428 = vor.u32 %v424, %v427
        %v429 = vrot.slane %v428, 4
        %v431 = vshll.u32 %v202, 16
        %v433 = vrot.slane %v431, 5
        %v434 = vsel %vm228, %v429, %v433
        %v435 = vshrl.u32 %v202, 16
        %v437 = vrot.slane %v435, 4
        %v438 = vor.u32 %v437, %v433
        %v439 = vrot.slane %v438, 4
        %v441 = vshll.u32 %v213, 16
        %v443 = vrot.slane %v441, 5
        %v444 = vsel %vm228, %v439, %v443
        %v461 = vunpack.c.l.b16 %v185
        %v462 = vunpack.c.l.b16 %v186
        %v463 = vunpack.c.l.b16 %v187
        %v464 = vunpack.c.l.b16 %v188
        %v465 = vunpack.c.l.b16 %v189
        %v466 = vunpack.c.l.b16 %v190
        %v467 = vunpack.c.l.b16 %v191
        %v468 = vunpack.c.l.b16 %v192
        %v469 = vunpack.c.l.b16 %v193
        %v470 = vunpack.c.l.b16 %v194
        %v471 = vunpack.c.l.b16 %v195
        %v472 = vunpack.c.l.b16 %v196
        %v473 = vunpack.c.l.b16 %v197
        %v474 = vunpack.c.l.b16 %v198
        %v475 = vunpack.c.l.b16 %v199
        %v476 = vunpack.c.l.b16 %v200
        %v477 = vpack.c.b16 %v462, %v461
        %v478 = vpack.c.b16 %v464, %v463
        %v479 = vpack.c.b16 %v466, %v465
        %v480 = vpack.c.b16 %v468, %v467
        %v481 = vpack.c.b16 %v470, %v469
        %v482 = vpack.c.b16 %v472, %v471
        %v483 = vpack.c.b16 %v474, %v473
        %v484 = vpack.c.b16 %v476, %v475
        %v493 = vunpack.c.l.b16 %v242
        %v494 = vunpack.c.l.b16 %v252
        %v495 = vunpack.c.l.b16 %v266
        %v496 = vunpack.c.l.b16 %v276
        %v497 = vunpack.c.l.b16 %v290
        %v498 = vunpack.c.l.b16 %v300
        %v499 = vunpack.c.l.b16 %v314
        %v500 = vunpack.c.l.b16 %v324
        %v501 = vunpack.c.l.b16 %v338
        %v502 = vunpack.c.l.b16 %v348
        %v503 = vunpack.c.l.b16 %v362
        %v504 = vunpack.c.l.b16 %v372
        %v505 = vunpack.c.l.b16 %v386
        %v506 = vunpack.c.l.b16 %v396
        %v507 = vunpack.c.l.b16 %v410
        %v508 = vunpack.c.l.b16 %v420
        %v509 = vpack.c.b16 %v494, %v493
        %v510 = vpack.c.b16 %v496, %v495
        %v511 = vpack.c.b16 %v498, %v497
        %v512 = vpack.c.b16 %v500, %v499
        %v513 = vpack.c.b16 %v502, %v501
        %v514 = vpack.c.b16 %v504, %v503
        %v515 = vpack.c.b16 %v506, %v505
        %v516 = vpack.c.b16 %v508, %v507
        %v527 = vunpack.c.l.b16 %v201
        %v528 = vunpack.c.l.b16 %v202
        %v529 = vpack.c.b16 %v528, %v527
        %v531 = vunpack.c.l.b16 %v434
        %v532 = vunpack.c.l.b16 %v444
        %v533 = vpack.c.b16 %v532, %v531
        %v535 = vld [vmem:[%s1] sm:$0xf]
        %v536 = vld [vmem:[%s1 + $0x4] sm:$0xf]
        %v537 = vld [vmem:[%s1 + $0x8] sm:$0xf]
        %v538 = vld [vmem:[%s1 + $0xc] sm:$0xf]
        %v539 = vld [vmem:[%s1 + $0x10] sm:$0xf]
        %v540 = vld [vmem:[%s1 + $0x14] sm:$0xf]
        %v541 = vld [vmem:[%s1 + $0x18] sm:$0xf]
        %v542 = vld [vmem:[%s1 + $0x1c] sm:$0xf]
        %v543 = vld [vmem:[%s1 + $0x20] sm:$0xf]
        %v544 = vld [vmem:[%s1 + $0x24] sm:$0xf]
        %v545 = vld [vmem:[%s1 + $0x28] sm:$0xf]
        %v546 = vld [vmem:[%s1 + $0x2c] sm:$0xf]
        %v547 = vld [vmem:[%s1 + $0x30] sm:$0xf]
        %v548 = vld [vmem:[%s1 + $0x34] sm:$0xf]
        %v549 = vld [vmem:[%s1 + $0x38] sm:$0xf]
        %v550 = vld [vmem:[%s1 + $0x3c] sm:$0xf]
        %v551 = vld [vmem:[%s1 + $0x40] sm:$0xf]
        %v552 = vld [vmem:[%s1 + $0x44] sm:$0xf]
        %v553 = vld [vmem:[%s1 + $0x48] sm:$0xf]
        %v554 = vld [vmem:[%s1 + $0x4c] sm:$0xf]
        %v555 = vld [vmem:[%s1 + $0x50] sm:$0xf]
        %v556 = vld [vmem:[%s1 + $0x54] sm:$0xf]
        %v557 = vld [vmem:[%s1 + $0x58] sm:$0xf]
        %v558 = vld [vmem:[%s1 + $0x5c] sm:$0xf]
        %v559 = vld [vmem:[%s1 + $0x60] sm:$0xf]
        %v560 = vld [vmem:[%s1 + $0x64] sm:$0xf]
        %v561 = vld [vmem:[%s1 + $0x68] sm:$0xf]
        %v562 = vld [vmem:[%s1 + $0x6c] sm:$0xf]
        %v563 = vld [vmem:[%s1 + $0x70] sm:$0xf]
        %v564 = vld [vmem:[%s1 + $0x74] sm:$0xf]
        %v565 = vld [vmem:[%s1 + $0x78] sm:$0xf]
        %v566 = vld [vmem:[%s1 + $0x7c] sm:$0xf]
        %v567 = vld [vmem:[%s1 + $0x80] sm:$0xf]
        %v568 = vld [vmem:[%s1 + $0x84] sm:$0xf]
        %v569 = vld [vmem:[%s1 + $0x88] sm:$0xf]
        %v570 = vld [vmem:[%s1 + $0x8c] sm:$0xf]
        %v571 = vld [vmem:[%s1 + $0x90] sm:$0xf]
        %v572 = vld [vmem:[%s1 + $0x94] sm:$0xf]
        %v573 = vld [vmem:[%s1 + $0x98] sm:$0xf]
        %v574 = vld [vmem:[%s1 + $0x9c] sm:$0xf]
        %v575 = vld [vmem:[%s1 + $0xa0] sm:$0xf]
        %v576 = vld [vmem:[%s1 + $0xa4] sm:$0xf]
        %v577 = vld [vmem:[%s1 + $0xa8] sm:$0xf]
        %v578 = vld [vmem:[%s1 + $0xac] sm:$0xf]
        %v579 = vld [vmem:[%s1 + $0xb0] sm:$0xf]
        %v580 = vld [vmem:[%s1 + $0xb4] sm:$0xf]
        %v581 = vld [vmem:[%s1 + $0xb8] sm:$0xf]
        %v582 = vld [vmem:[%s1 + $0xbc] sm:$0xf]
        %v583 = vld [vmem:[%s1 + $0xc0] sm:$0xf]
        %v584 = vld [vmem:[%s1 + $0xc4] sm:$0xf]
        %v585 = vld [vmem:[%s1 + $0xc8] sm:$0xf]
        %v586 = vld [vmem:[%s1 + $0xcc] sm:$0xf]
        %v587 = vld [vmem:[%s1 + $0xd0] sm:$0xf]
        %v588 = vld [vmem:[%s1 + $0xd4] sm:$0xf]
        %v589 = vld [vmem:[%s1 + $0xd8] sm:$0xf]
        %v590 = vld [vmem:[%s1 + $0xdc] sm:$0xf]
        %v591 = vld [vmem:[%s1 + $0xe0] sm:$0xf]
        %v592 = vld [vmem:[%s1 + $0xe4] sm:$0xf]
        %v593 = vld [vmem:[%s1 + $0xe8] sm:$0xf]
        %v594 = vld [vmem:[%s1 + $0xec] sm:$0xf]
        %v595 = vld [vmem:[%s1 + $0xf0] sm:$0xf]
        %v596 = vld [vmem:[%s1 + $0xf4] sm:$0xf]
        %v597 = vld [vmem:[%s1 + $0xf8] sm:$0xf]
        %v598 = vld [vmem:[%s1 + $0xfc] sm:$0xf]
        %v600 = vlaneseq
        %v601 = vshrl.u32 %v600, 7
        %v602 = vsub.s32 0, %v601
        %v603 = vrot.slane %v225, %v602
        %v669 = vunpack.c.l.b16 %v535
        %v670 = vunpack.c.l.b16 %v536
        %v671 = vunpack.c.l.b16 %v537
        %v672 = vunpack.c.l.b16 %v538
        %v673 = vunpack.c.l.b16 %v539
        %v674 = vunpack.c.l.b16 %v540
        %v675 = vunpack.c.l.b16 %v541
        %v676 = vunpack.c.l.b16 %v542
        %v677 = vunpack.c.l.b16 %v543
        %v678 = vunpack.c.l.b16 %v544
        %v679 = vunpack.c.l.b16 %v545
        %v680 = vunpack.c.l.b16 %v546
        %v681 = vunpack.c.l.b16 %v547
        %v682 = vunpack.c.l.b16 %v548
        %v683 = vunpack.c.l.b16 %v549
        %v684 = vunpack.c.l.b16 %v550
        %v685 = vunpack.c.l.b16 %v551
        %v686 = vunpack.c.l.b16 %v552
        %v687 = vunpack.c.l.b16 %v553
        %v688 = vunpack.c.l.b16 %v554
        %v689 = vunpack.c.l.b16 %v555
        %v690 = vunpack.c.l.b16 %v556
        %v691 = vunpack.c.l.b16 %v557
        %v692 = vunpack.c.l.b16 %v558
        %v693 = vunpack.c.l.b16 %v559
        %v694 = vunpack.c.l.b16 %v560
        %v695 = vunpack.c.l.b16 %v561
        %v696 = vunpack.c.l.b16 %v562
        %v697 = vunpack.c.l.b16 %v563
        %v698 = vunpack.c.l.b16 %v564
        %v699 = vunpack.c.l.b16 %v565
        %v700 = vunpack.c.l.b16 %v566
        %v701 = vunpack.c.l.b16 %v567
        %v702 = vunpack.c.l.b16 %v568
        %v703 = vunpack.c.l.b16 %v569
        %v704 = vunpack.c.l.b16 %v570
        %v705 = vunpack.c.l.b16 %v571
        %v706 = vunpack.c.l.b16 %v572
        %v707 = vunpack.c.l.b16 %v573
        %v708 = vunpack.c.l.b16 %v574
        %v709 = vunpack.c.l.b16 %v575
        %v710 = vunpack.c.l.b16 %v576
        %v711 = vunpack.c.l.b16 %v577
        %v712 = vunpack.c.l.b16 %v578
        %v713 = vunpack.c.l.b16 %v579
        %v714 = vunpack.c.l.b16 %v580
        %v715 = vunpack.c.l.b16 %v581
        %v716 = vunpack.c.l.b16 %v582
        %v717 = vunpack.c.l.b16 %v583
        %v718 = vunpack.c.l.b16 %v584
        %v719 = vunpack.c.l.b16 %v585
        %v720 = vunpack.c.l.b16 %v586
        %v721 = vunpack.c.l.b16 %v587
        %v722 = vunpack.c.l.b16 %v588
        %v723 = vunpack.c.l.b16 %v589
        %v724 = vunpack.c.l.b16 %v590
        %v725 = vunpack.c.l.b16 %v591
        %v726 = vunpack.c.l.b16 %v592
        %v727 = vunpack.c.l.b16 %v593
        %v728 = vunpack.c.l.b16 %v594
        %v729 = vunpack.c.l.b16 %v595
        %v730 = vunpack.c.l.b16 %v596
        %v731 = vunpack.c.l.b16 %v597
        %v732 = vunpack.c.l.b16 %v598
        %v733 = vpack.c.b16 %v670, %v669
        %v734 = vpack.c.b16 %v672, %v671
        %v735 = vpack.c.b16 %v674, %v673
        %v736 = vpack.c.b16 %v676, %v675
        %v737 = vpack.c.b16 %v678, %v677
        %v738 = vpack.c.b16 %v680, %v679
        %v739 = vpack.c.b16 %v682, %v681
        %v740 = vpack.c.b16 %v684, %v683
        %v741 = vpack.c.b16 %v686, %v685
        %v742 = vpack.c.b16 %v688, %v687
        %v743 = vpack.c.b16 %v690, %v689
        %v744 = vpack.c.b16 %v692, %v691
        %v745 = vpack.c.b16 %v694, %v693
        %v746 = vpack.c.b16 %v696, %v695
        %v747 = vpack.c.b16 %v698, %v697
        %v748 = vpack.c.b16 %v700, %v699
        %v749 = vpack.c.b16 %v702, %v701
        %v750 = vpack.c.b16 %v704, %v703
        %v751 = vpack.c.b16 %v706, %v705
        %v752 = vpack.c.b16 %v708, %v707
        %v753 = vpack.c.b16 %v710, %v709
        %v754 = vpack.c.b16 %v712, %v711
        %v755 = vpack.c.b16 %v714, %v713
        %v756 = vpack.c.b16 %v716, %v715
        %v757 = vpack.c.b16 %v718, %v717
        %v758 = vpack.c.b16 %v720, %v719
        %v759 = vpack.c.b16 %v722, %v721
        %v760 = vpack.c.b16 %v724, %v723
        %v761 = vpack.c.b16 %v726, %v725
        %v762 = vpack.c.b16 %v728, %v727
        %v763 = vpack.c.b16 %v730, %v729
        %v764 = vpack.c.b16 %v732, %v731
        %797 = vmatprep.subr.bf16.mxu0 0
        %798 = vmatpush1.bf16.msra.mxu0 %v733
        %799 = vmatprep.subr.bf16.mxu0 0
        %800 = vmatpush1.bf16.msra.mxu0 %v734
        %801 = vmatprep.subr.bf16.mxu0 0
        %802 = vmatpush1.bf16.msra.mxu0 %v735
        %803 = vmatprep.subr.bf16.mxu0 0
        %804 = vmatpush1.bf16.msra.mxu0 %v736
        %805 = vmatprep.subr.bf16.mxu0 0
        %806 = vmatpush1.bf16.msra.mxu0 %v737
        %807 = vmatprep.subr.bf16.mxu0 0
        %808 = vmatpush1.bf16.msra.mxu0 %v738
        %809 = vmatprep.subr.bf16.mxu0 0
        %810 = vmatpush1.bf16.msra.mxu0 %v739
        %811 = vmatprep.subr.bf16.mxu0 0
        %812 = vmatpush1.bf16.msra.mxu0 %v740
        %813 = vmatprep.subr.bf16.mxu0 0
        %814 = vmatpush1.bf16.msra.mxu0 %v741
        %815 = vmatprep.subr.bf16.mxu0 0
        %816 = vmatpush1.bf16.msra.mxu0 %v742
        %817 = vmatprep.subr.bf16.mxu0 0
        %818 = vmatpush1.bf16.msra.mxu0 %v743
        %819 = vmatprep.subr.bf16.mxu0 0
        %820 = vmatpush1.bf16.msra.mxu0 %v744
        %821 = vmatprep.subr.bf16.mxu0 0
        %822 = vmatpush1.bf16.msra.mxu0 %v745
        %823 = vmatprep.subr.bf16.mxu0 0
        %824 = vmatpush1.bf16.msra.mxu0 %v746
        %825 = vmatprep.subr.bf16.mxu0 0
        %826 = vmatpush1.bf16.msra.mxu0 %v747
        %827 = vmatprep.subr.bf16.mxu0 0
        %828 = vmatpush1.bf16.msra.mxu0 %v748
        %829 = vmatprep.mubr.bf16.mxu0 %v509
        %830 = vmatmul.mubr.bf16.gmra.mrb[0].mxu0 %v477
        %v831 = vpop.f32.mrb[0].mxu0
        %v832 = vadd.f32 %v603, %v831
        %v833 = vpop.f32.mrb[0].mxu0
        %v834 = vpop.f32.mrb[0].mxu0
        %v835 = vadd.f32 %v603, %v834
        %v836 = vpop.f32.mrb[0].mxu0
        %837 = vmatprep.mubr.bf16.mxu0 %v510
        %838 = vmatmul.mubr.bf16.gmra.mrb[0].mxu0 %v478
        %v839 = vpop.f32.mrb[0].mxu0
        %v840 = vadd.f32 %v603, %v839
        %v841 = vpop.f32.mrb[0].mxu0
        %v842 = vpop.f32.mrb[0].mxu0
        %v843 = vadd.f32 %v603, %v842
        %v844 = vpop.f32.mrb[0].mxu0
        %845 = vmatprep.mubr.bf16.mxu0 %v511
        %846 = vmatmul.mubr.bf16.gmra.mrb[0].mxu0 %v479
        %v847 = vpop.f32.mrb[0].mxu0
        %v848 = vadd.f32 %v603, %v847
        %v849 = vpop.f32.mrb[0].mxu0
        %v850 = vpop.f32.mrb[0].mxu0
        %v851 = vadd.f32 %v603, %v850
        %v852 = vpop.f32.mrb[0].mxu0
        %853 = vmatprep.mubr.bf16.mxu0 %v512
        %854 = vmatmul.mubr.bf16.gmra.mrb[0].mxu0 %v480
        %v855 = vpop.f32.mrb[0].mxu0
        %v856 = vadd.f32 %v603, %v855
        %v857 = vpop.f32.mrb[0].mxu0
        %v858 = vpop.f32.mrb[0].mxu0
        %v859 = vadd.f32 %v603, %v858
        %v860 = vpop.f32.mrb[0].mxu0
        %861 = vmatprep.mubr.bf16.mxu0 %v513
        %862 = vmatmul.mubr.bf16.gmra.mrb[0].mxu0 %v481
        %v863 = vpop.f32.mrb[0].mxu0
        %v864 = vadd.f32 %v603, %v863
        %v865 = vpop.f32.mrb[0].mxu0
        %v866 = vpop.f32.mrb[0].mxu0
        %v867 = vadd.f32 %v603, %v866
        %v868 = vpop.f32.mrb[0].mxu0
        %869 = vmatprep.mubr.bf16.mxu0 %v514
        %870 = vmatmul.mubr.bf16.gmra.mrb[0].mxu0 %v482
        %v871 = vpop.f32.mrb[0].mxu0
        %v872 = vadd.f32 %v603, %v871
        %v873 = vpop.f32.mrb[0].mxu0
        %v874 = vpop.f32.mrb[0].mxu0
        %v875 = vadd.f32 %v603, %v874
        %v876 = vpop.f32.mrb[0].mxu0
        %877 = vmatprep.mubr.bf16.mxu0 %v515
        %878 = vmatmul.mubr.bf16.gmra.mrb[0].mxu0 %v483
        %v879 = vpop.f32.mrb[0].mxu0
        %v880 = vadd.f32 %v603, %v879
        %v881 = vpop.f32.mrb[0].mxu0
        %v882 = vpop.f32.mrb[0].mxu0
        %v883 = vadd.f32 %v603, %v882
        %v884 = vpop.f32.mrb[0].mxu0
        %885 = vmatprep.mubr.bf16.mxu0 %v516
        %886 = vmatmul.mubr.bf16.gmra.mrb[0].mxu0 %v484
        %v887 = vpop.f32.mrb[0].mxu0
        %v888 = vadd.f32 %v603, %v887
        %v889 = vpop.f32.mrb[0].mxu0
        %v890 = vpop.f32.mrb[0].mxu0
        %v891 = vadd.f32 %v603, %v890
        %v892 = vpop.f32.mrb[0].mxu0
        %893 = vdwg.mxu0
        %894 = vmatprep.subr.bf16.mxu0 0
        %895 = vmatpush1.bf16.msra.mxu0 %v749
        %896 = vmatprep.subr.bf16.mxu0 0
        %897 = vmatpush1.bf16.msra.mxu0 %v750
        %898 = vmatprep.subr.bf16.mxu0 0
        %899 = vmatpush1.bf16.msra.mxu0 %v751
        %900 = vmatprep.subr.bf16.mxu0 0
        %901 = vmatpush1.bf16.msra.mxu0 %v752
        %902 = vmatprep.subr.bf16.mxu0 0
        %903 = vmatpush1.bf16.msra.mxu0 %v753
        %904 = vmatprep.subr.bf16.mxu0 0
        %905 = vmatpush1.bf16.msra.mxu0 %v754
        %906 = vmatprep.subr.bf16.mxu0 0
        %907 = vmatpush1.bf16.msra.mxu0 %v755
        %908 = vmatprep.subr.bf16.mxu0 0
        %909 = vmatpush1.bf16.msra.mxu0 %v756
        %910 = vmatprep.subr.bf16.mxu0 0
        %911 = vmatpush1.bf16.msra.mxu0 %v757
        %912 = vmatprep.subr.bf16.mxu0 0
        %913 = vmatpush1.bf16.msra.mxu0 %v758
        %914 = vmatprep.subr.bf16.mxu0 0
        %915 = vmatpush1.bf16.msra.mxu0 %v759
        %916 = vmatprep.subr.bf16.mxu0 0
        %917 = vmatpush1.bf16.msra.mxu0 %v760
        %918 = vmatprep.subr.bf16.mxu0 0
        %919 = vmatpush1.bf16.msra.mxu0 %v761
        %920 = vmatprep.subr.bf16.mxu0 0
        %921 = vmatpush1.bf16.msra.mxu0 %v762
        %922 = vmatprep.subr.bf16.mxu0 0
        %923 = vmatpush1.bf16.msra.mxu0 %v763
        %924 = vmatprep.subr.bf16.mxu0 0
        %925 = vmatpush1.bf16.msra.mxu0 %v764
        %926 = vmatprep.mubr.bf16.mxu0 %v510
        %927 = vmatmul.mubr.bf16.gmra.mrb[0].mxu0 %v478
        %v928 = vpop.f32.mrb[0].mxu0
        %v929 = vadd.f32 %v832, %v928
        %v930 = vpop.f32.mrb[0].mxu0
        %v931 = vpop.f32.mrb[0].mxu0
        %v932 = vadd.f32 %v835, %v931
        %v933 = vpop.f32.mrb[0].mxu0
        %934 = vmatprep.mubr.bf16.mxu0 %v511
        %935 = vmatmul.mubr.bf16.gmra.mrb[0].mxu0 %v479
        %v936 = vpop.f32.mrb[0].mxu0
        %v937 = vadd.f32 %v840, %v936
        %v938 = vpop.f32.mrb[0].mxu0
        %v939 = vpop.f32.mrb[0].mxu0
        %v940 = vadd.f32 %v843, %v939
        %v941 = vpop.f32.mrb[0].mxu0
        %942 = vmatprep.mubr.bf16.mxu0 %v512
        %943 = vmatmul.mubr.bf16.gmra.mrb[0].mxu0 %v480
        %v944 = vpop.f32.mrb[0].mxu0
        %v945 = vadd.f32 %v848, %v944
        %v946 = vpop.f32.mrb[0].mxu0
        %v947 = vpop.f32.mrb[0].mxu0
        %v948 = vadd.f32 %v851, %v947
        %v949 = vpop.f32.mrb[0].mxu0
        %950 = vmatprep.mubr.bf16.mxu0 %v513
        %951 = vmatmul.mubr.bf16.gmra.mrb[0].mxu0 %v481
        %v952 = vpop.f32.mrb[0].mxu0
        %v953 = vadd.f32 %v856, %v952
        %v954 = vpop.f32.mrb[0].mxu0
        %v955 = vpop.f32.mrb[0].mxu0
        %v956 = vadd.f32 %v859, %v955
        %v957 = vpop.f32.mrb[0].mxu0
        %958 = vmatprep.mubr.bf16.mxu0 %v514
        %959 = vmatmul.mubr.bf16.gmra.mrb[0].mxu0 %v482
        %v960 = vpop.f32.mrb[0].mxu0
        %v961 = vadd.f32 %v864, %v960
        %v962 = vpop.f32.mrb[0].mxu0
        %v963 = vpop.f32.mrb[0].mxu0
        %v964 = vadd.f32 %v867, %v963
        %v965 = vpop.f32.mrb[0].mxu0
        %966 = vmatprep.mubr.bf16.mxu0 %v515
        %967 = vmatmul.mubr.bf16.gmra.mrb[0].mxu0 %v483
        %v968 = vpop.f32.mrb[0].mxu0
        %v969 = vadd.f32 %v872, %v968
        %v970 = vpop.f32.mrb[0].mxu0
        %v971 = vpop.f32.mrb[0].mxu0
        %v972 = vadd.f32 %v875, %v971
        %v973 = vpop.f32.mrb[0].mxu0
        %974 = vmatprep.mubr.bf16.mxu0 %v516
        %975 = vmatmul.mubr.bf16.gmra.mrb[0].mxu0 %v484
        %v976 = vpop.f32.mrb[0].mxu0
        %v977 = vadd.f32 %v880, %v976
        %v978 = vpop.f32.mrb[0].mxu0
        %v979 = vpop.f32.mrb[0].mxu0
        %v980 = vadd.f32 %v883, %v979
        %v981 = vpop.f32.mrb[0].mxu0
        %982 = vmatprep.mubr.bf16.mxu0 %v533
        %983 = vmatmul.mubr.bf16.gmra.mrb[0].mxu0 %v529
        %v984 = vpop.f32.mrb[0].mxu0
        %v985 = vadd.f32 %v888, %v984
        %v986 = vpop.f32.mrb[0].mxu0
        %v987 = vpop.f32.mrb[0].mxu0
        %v988 = vadd.f32 %v891, %v987
        %v989 = vpop.f32.mrb[0].mxu0
        %990 = vdwg.mxu0
        %v991 = vpack.c.bf16 %v932, %v929
        %v992 = vpack.c.bf16 %v940, %v937
        %v993 = vpack.c.bf16 %v948, %v945
        %v994 = vpack.c.bf16 %v956, %v953
        %v995 = vpack.c.bf16 %v964, %v961
        %v996 = vpack.c.bf16 %v972, %v969
        %v997 = vpack.c.bf16 %v980, %v977
        %v998 = vpack.c.bf16 %v988, %v985
        %v1007 = vunpack.c.l.b16 %v991
        %v1008 = vunpack.c.h.b16 %v991
        %v1009 = vunpack.c.l.b16 %v992
        %v1010 = vunpack.c.h.b16 %v992
        %v1011 = vunpack.c.l.b16 %v993
        %v1012 = vunpack.c.h.b16 %v993
        %v1013 = vunpack.c.l.b16 %v994
        %v1014 = vunpack.c.h.b16 %v994
        %v1015 = vunpack.c.l.b16 %v995
        %v1016 = vunpack.c.h.b16 %v995
        %v1017 = vunpack.c.l.b16 %v996
        %v1018 = vunpack.c.h.b16 %v996
        %v1019 = vunpack.c.l.b16 %v997
        %v1020 = vunpack.c.h.b16 %v997
        %v1021 = vunpack.c.l.b16 %v998
        %v1022 = vunpack.c.h.b16 %v998
        %v1023 = vpack.c.b16 %v1007, %v1007
        %v1024 = vpack.c.b16 %v1008, %v1008
        %v1025 = vpack.c.b16 %v1009, %v1009
        %v1026 = vpack.c.b16 %v1010, %v1010
        %v1027 = vpack.c.b16 %v1011, %v1011
        %v1028 = vpack.c.b16 %v1012, %v1012
        %v1029 = vpack.c.b16 %v1013, %v1013
        %v1030 = vpack.c.b16 %v1014, %v1014
        %v1031 = vpack.c.b16 %v1015, %v1015
        %v1032 = vpack.c.b16 %v1016, %v1016
        %v1033 = vpack.c.b16 %v1017, %v1017
        %v1034 = vpack.c.b16 %v1018, %v1018
        %v1035 = vpack.c.b16 %v1019, %v1019
        %v1036 = vpack.c.b16 %v1020, %v1020
        %v1037 = vpack.c.b16 %v1021, %v1021
        %v1038 = vpack.c.b16 %v1022, %v1022
        %1055 = vst [vmem:[%s173] sm:$0xf] %v1023
        %1056 = vst [vmem:[%s173 + $0x4] sm:$0xf] %v1024
        %1057 = vst [vmem:[%s173 + $0x8] sm:$0xf] %v1025
        %1058 = vst [vmem:[%s173 + $0xc] sm:$0xf] %v1026
        %1059 = vst [vmem:[%s173 + $0x10] sm:$0xf] %v1027
        %1060 = vst [vmem:[%s173 + $0x14] sm:$0xf] %v1028
        %1061 = vst [vmem:[%s173 + $0x18] sm:$0xf] %v1029
        %1062 = vst [vmem:[%s173 + $0x1c] sm:$0xf] %v1030
        %1063 = vst [vmem:[%s173 + $0x20] sm:$0xf] %v1031
        %1064 = vst [vmem:[%s173 + $0x24] sm:$0xf] %v1032
        %1065 = vst [vmem:[%s173 + $0x28] sm:$0xf] %v1033
        %1066 = vst [vmem:[%s173 + $0x2c] sm:$0xf] %v1034
        %1067 = vst [vmem:[%s173 + $0x30] sm:$0xf] %v1035
        %1068 = vst [vmem:[%s173 + $0x34] sm:$0xf] %v1036
        %1069 = vst [vmem:[%s173 + $0x38] sm:$0xf] %v1037
        %1070 = vst [vmem:[%s173 + $0x3c] sm:$0xf] %v1038
        %vm1087 = vcmask 1042432
        %vm1088 = vcmask 1046532
        %vm1089 = vmor %vm1087, %vm1088
        %v1090 = vrot.slane %v215, 5
        %v1091 = vrot.slane %v1090, 4
        %v1092 = vrot.slane %v186, 5
        %v1093 = vsel %vm1089, %v1091, %v1092
        %v1094 = vrot.slane %v1092, 4
        %v1095 = vrot.slane %v205, 5
        %v1096 = vsel %vm1089, %v1094, %v1095
        %v1097 = vrot.slane %v216, 5
        %v1098 = vrot.slane %v1097, 4
        %v1099 = vrot.slane %v188, 5
        %v1100 = vsel %vm1089, %v1098, %v1099
        %v1101 = vrot.slane %v1099, 4
        %v1102 = vrot.slane %v206, 5
        %v1103 = vsel %vm1089, %v1101, %v1102
        %v1104 = vrot.slane %v217, 5
        %v1105 = vrot.slane %v1104, 4
        %v1106 = vrot.slane %v190, 5
        %v1107 = vsel %vm1089, %v1105, %v1106
        %v1108 = vrot.slane %v1106, 4
        %v1109 = vrot.slane %v207, 5
        %v1110 = vsel %vm1089, %v1108, %v1109
        %v1111 = vrot.slane %v218, 5
        %v1112 = vrot.slane %v1111, 4
        %v1113 = vrot.slane %v192, 5
        %v1114 = vsel %vm1089, %v1112, %v1113
        %v1115 = vrot.slane %v1113, 4
        %v1116 = vrot.slane %v208, 5
        %v1117 = vsel %vm1089, %v1115, %v1116
        %v1118 = vrot.slane %v219, 5
        %v1119 = vrot.slane %v1118, 4
        %v1120 = vrot.slane %v194, 5
        %v1121 = vsel %vm1089, %v1119, %v1120
        %v1122 = vrot.slane %v1120, 4
        %v1123 = vrot.slane %v209, 5
        %v1124 = vsel %vm1089, %v1122, %v1123
        %v1125 = vrot.slane %v220, 5
        %v1126 = vrot.slane %v1125, 4
        %v1127 = vrot.slane %v196, 5
        %v1128 = vsel %vm1089, %v1126, %v1127
        %v1129 = vrot.slane %v1127, 4
        %v1130 = vrot.slane %v210, 5
        %v1131 = vsel %vm1089, %v1129, %v1130
        %v1132 = vrot.slane %v221, 5
        %v1133 = vrot.slane %v1132, 4
        %v1134 = vrot.slane %v198, 5
        %v1135 = vsel %vm1089, %v1133, %v1134
        %v1136 = vrot.slane %v1134, 4
        %v1137 = vrot.slane %v211, 5
        %v1138 = vsel %vm1089, %v1136, %v1137
        %v1139 = vrot.slane %v222, 5
        %v1140 = vrot.slane %v1139, 4
        %v1141 = vrot.slane %v200, 5
        %v1142 = vsel %vm1089, %v1140, %v1141
        %v1143 = vrot.slane %v1141, 4
        %v1144 = vrot.slane %v212, 5
        %v1145 = vsel %vm1089, %v1143, %v1144
        %v1148 = vrot.slane %v223, 5
        %v1149 = vrot.slane %v1148, 4
        %v1150 = vrot.slane %v202, 5
        %v1151 = vsel %vm1089, %v1149, %v1150
        %v1152 = vrot.slane %v1150, 4
        %v1153 = vrot.slane %v213, 5
        %v1154 = vsel %vm1089, %v1152, %v1153
        %v1155 = vunpack.c.l.b16 %v1093
        %v1156 = vunpack.c.l.b16 %v1096
        %v1157 = vunpack.c.l.b16 %v1100
        %v1158 = vunpack.c.l.b16 %v1103
        %v1159 = vunpack.c.l.b16 %v1107
        %v1160 = vunpack.c.l.b16 %v1110
        %v1161 = vunpack.c.l.b16 %v1114
        %v1162 = vunpack.c.l.b16 %v1117
        %v1163 = vunpack.c.l.b16 %v1121
        %v1164 = vunpack.c.l.b16 %v1124
        %v1165 = vunpack.c.l.b16 %v1128
        %v1166 = vunpack.c.l.b16 %v1131
        %v1167 = vunpack.c.l.b16 %v1135
        %v1168 = vunpack.c.l.b16 %v1138
        %v1169 = vunpack.c.l.b16 %v1142
        %v1170 = vunpack.c.l.b16 %v1145
        %v1171 = vpack.c.b16 %v1156, %v1155
        %v1172 = vpack.c.b16 %v1158, %v1157
        %v1173 = vpack.c.b16 %v1160, %v1159
        %v1174 = vpack.c.b16 %v1162, %v1161
        %v1175 = vpack.c.b16 %v1164, %v1163
        %v1176 = vpack.c.b16 %v1166, %v1165
        %v1177 = vpack.c.b16 %v1168, %v1167
        %v1178 = vpack.c.b16 %v1170, %v1169
        %v1187 = vunpack.c.l.b16 %v1151
        %v1188 = vunpack.c.l.b16 %v1154
        %v1189 = vpack.c.b16 %v1188, %v1187
        %s1191 = scalar_lea.vmem %s1, 256
        %v1192 = vld [vmem:[%s1191] sm:$0xf]
        %v1193 = vld [vmem:[%s1191 + $0x4] sm:$0xf]
        %v1194 = vld [vmem:[%s1191 + $0x8] sm:$0xf]
        %v1195 = vld [vmem:[%s1191 + $0xc] sm:$0xf]
        %v1196 = vld [vmem:[%s1191 + $0x10] sm:$0xf]
        %v1197 = vld [vmem:[%s1191 + $0x14] sm:$0xf]
        %v1198 = vld [vmem:[%s1191 + $0x18] sm:$0xf]
        %v1199 = vld [vmem:[%s1191 + $0x1c] sm:$0xf]
        %v1200 = vld [vmem:[%s1191 + $0x20] sm:$0xf]
        %v1201 = vld [vmem:[%s1191 + $0x24] sm:$0xf]
        %v1202 = vld [vmem:[%s1191 + $0x28] sm:$0xf]
        %v1203 = vld [vmem:[%s1191 + $0x2c] sm:$0xf]
        %v1204 = vld [vmem:[%s1191 + $0x30] sm:$0xf]
        %v1205 = vld [vmem:[%s1191 + $0x34] sm:$0xf]
        %v1206 = vld [vmem:[%s1191 + $0x38] sm:$0xf]
        %v1207 = vld [vmem:[%s1191 + $0x3c] sm:$0xf]
        %v1208 = vld [vmem:[%s1191 + $0x40] sm:$0xf]
        %v1209 = vld [vmem:[%s1191 + $0x44] sm:$0xf]
        %v1210 = vld [vmem:[%s1191 + $0x48] sm:$0xf]
        %v1211 = vld [vmem:[%s1191 + $0x4c] sm:$0xf]
        %v1212 = vld [vmem:[%s1191 + $0x50] sm:$0xf]
        %v1213 = vld [vmem:[%s1191 + $0x54] sm:$0xf]
        %v1214 = vld [vmem:[%s1191 + $0x58] sm:$0xf]
        %v1215 = vld [vmem:[%s1191 + $0x5c] sm:$0xf]
        %v1216 = vld [vmem:[%s1191 + $0x60] sm:$0xf]
        %v1217 = vld [vmem:[%s1191 + $0x64] sm:$0xf]
        %v1218 = vld [vmem:[%s1191 + $0x68] sm:$0xf]
        %v1219 = vld [vmem:[%s1191 + $0x6c] sm:$0xf]
        %v1220 = vld [vmem:[%s1191 + $0x70] sm:$0xf]
        %v1221 = vld [vmem:[%s1191 + $0x74] sm:$0xf]
        %v1222 = vld [vmem:[%s1191 + $0x78] sm:$0xf]
        %v1223 = vld [vmem:[%s1191 + $0x7c] sm:$0xf]
        %v1224 = vld [vmem:[%s1191 + $0x80] sm:$0xf]
        %v1225 = vld [vmem:[%s1191 + $0x84] sm:$0xf]
        %v1226 = vld [vmem:[%s1191 + $0x88] sm:$0xf]
        %v1227 = vld [vmem:[%s1191 + $0x8c] sm:$0xf]
        %v1228 = vld [vmem:[%s1191 + $0x90] sm:$0xf]
        %v1229 = vld [vmem:[%s1191 + $0x94] sm:$0xf]
        %v1230 = vld [vmem:[%s1191 + $0x98] sm:$0xf]
        %v1231 = vld [vmem:[%s1191 + $0x9c] sm:$0xf]
        %v1232 = vld [vmem:[%s1191 + $0xa0] sm:$0xf]
        %v1233 = vld [vmem:[%s1191 + $0xa4] sm:$0xf]
        %v1234 = vld [vmem:[%s1191 + $0xa8] sm:$0xf]
        %v1235 = vld [vmem:[%s1191 + $0xac] sm:$0xf]
        %v1236 = vld [vmem:[%s1191 + $0xb0] sm:$0xf]
        %v1237 = vld [vmem:[%s1191 + $0xb4] sm:$0xf]
        %v1238 = vld [vmem:[%s1191 + $0xb8] sm:$0xf]
        %v1239 = vld [vmem:[%s1191 + $0xbc] sm:$0xf]
        %v1240 = vld [vmem:[%s1191 + $0xc0] sm:$0xf]
        %v1241 = vld [vmem:[%s1191 + $0xc4] sm:$0xf]
        %v1242 = vld [vmem:[%s1191 + $0xc8] sm:$0xf]
        %v1243 = vld [vmem:[%s1191 + $0xcc] sm:$0xf]
        %v1244 = vld [vmem:[%s1191 + $0xd0] sm:$0xf]
        %v1245 = vld [vmem:[%s1191 + $0xd4] sm:$0xf]
        %v1246 = vld [vmem:[%s1191 + $0xd8] sm:$0xf]
        %v1247 = vld [vmem:[%s1191 + $0xdc] sm:$0xf]
        %v1248 = vld [vmem:[%s1191 + $0xe0] sm:$0xf]
        %v1249 = vld [vmem:[%s1191 + $0xe4] sm:$0xf]
        %v1250 = vld [vmem:[%s1191 + $0xe8] sm:$0xf]
        %v1251 = vld [vmem:[%s1191 + $0xec] sm:$0xf]
        %v1252 = vld [vmem:[%s1191 + $0xf0] sm:$0xf]
        %v1253 = vld [vmem:[%s1191 + $0xf4] sm:$0xf]
        %v1254 = vld [vmem:[%s1191 + $0xf8] sm:$0xf]
        %v1255 = vld [vmem:[%s1191 + $0xfc] sm:$0xf]
        %v1320 = vunpack.c.l.b16 %v1192
        %v1321 = vunpack.c.l.b16 %v1193
        %v1322 = vunpack.c.l.b16 %v1194
        %v1323 = vunpack.c.l.b16 %v1195
        %v1324 = vunpack.c.l.b16 %v1196
        %v1325 = vunpack.c.l.b16 %v1197
        %v1326 = vunpack.c.l.b16 %v1198
        %v1327 = vunpack.c.l.b16 %v1199
        %v1328 = vunpack.c.l.b16 %v1200
        %v1329 = vunpack.c.l.b16 %v1201
        %v1330 = vunpack.c.l.b16 %v1202
        %v1331 = vunpack.c.l.b16 %v1203
        %v1332 = vunpack.c.l.b16 %v1204
        %v1333 = vunpack.c.l.b16 %v1205
        %v1334 = vunpack.c.l.b16 %v1206
        %v1335 = vunpack.c.l.b16 %v1207
        %v1336 = vunpack.c.l.b16 %v1208
        %v1337 = vunpack.c.l.b16 %v1209
        %v1338 = vunpack.c.l.b16 %v1210
        %v1339 = vunpack.c.l.b16 %v1211
        %v1340 = vunpack.c.l.b16 %v1212
        %v1341 = vunpack.c.l.b16 %v1213
        %v1342 = vunpack.c.l.b16 %v1214
        %v1343 = vunpack.c.l.b16 %v1215
        %v1344 = vunpack.c.l.b16 %v1216
        %v1345 = vunpack.c.l.b16 %v1217
        %v1346 = vunpack.c.l.b16 %v1218
        %v1347 = vunpack.c.l.b16 %v1219
        %v1348 = vunpack.c.l.b16 %v1220
        %v1349 = vunpack.c.l.b16 %v1221
        %v1350 = vunpack.c.l.b16 %v1222
        %v1351 = vunpack.c.l.b16 %v1223
        %v1352 = vunpack.c.l.b16 %v1224
        %v1353 = vunpack.c.l.b16 %v1225
        %v1354 = vunpack.c.l.b16 %v1226
        %v1355 = vunpack.c.l.b16 %v1227
        %v1356 = vunpack.c.l.b16 %v1228
        %v1357 = vunpack.c.l.b16 %v1229
        %v1358 = vunpack.c.l.b16 %v1230
        %v1359 = vunpack.c.l.b16 %v1231
        %v1360 = vunpack.c.l.b16 %v1232
        %v1361 = vunpack.c.l.b16 %v1233
        %v1362 = vunpack.c.l.b16 %v1234
        %v1363 = vunpack.c.l.b16 %v1235
        %v1364 = vunpack.c.l.b16 %v1236
        %v1365 = vunpack.c.l.b16 %v1237
        %v1366 = vunpack.c.l.b16 %v1238
        %v1367 = vunpack.c.l.b16 %v1239
        %v1368 = vunpack.c.l.b16 %v1240
        %v1369 = vunpack.c.l.b16 %v1241
        %v1370 = vunpack.c.l.b16 %v1242
        %v1371 = vunpack.c.l.b16 %v1243
        %v1372 = vunpack.c.l.b16 %v1244
        %v1373 = vunpack.c.l.b16 %v1245
        %v1374 = vunpack.c.l.b16 %v1246
        %v1375 = vunpack.c.l.b16 %v1247
        %v1376 = vunpack.c.l.b16 %v1248
        %v1377 = vunpack.c.l.b16 %v1249
        %v1378 = vunpack.c.l.b16 %v1250
        %v1379 = vunpack.c.l.b16 %v1251
        %v1380 = vunpack.c.l.b16 %v1252
        %v1381 = vunpack.c.l.b16 %v1253
        %v1382 = vunpack.c.l.b16 %v1254
        %v1383 = vunpack.c.l.b16 %v1255
        %v1384 = vpack.c.b16 %v1321, %v1320
        %v1385 = vpack.c.b16 %v1323, %v1322
        %v1386 = vpack.c.b16 %v1325, %v1324
        %v1387 = vpack.c.b16 %v1327, %v1326
        %v1388 = vpack.c.b16 %v1329, %v1328
        %v1389 = vpack.c.b16 %v1331, %v1330
        %v1390 = vpack.c.b16 %v1333, %v1332
        %v1391 = vpack.c.b16 %v1335, %v1334
        %v1392 = vpack.c.b16 %v1337, %v1336
        %v1393 = vpack.c.b16 %v1339, %v1338
        %v1394 = vpack.c.b16 %v1341, %v1340
        %v1395 = vpack.c.b16 %v1343, %v1342
        %v1396 = vpack.c.b16 %v1345, %v1344
        %v1397 = vpack.c.b16 %v1347, %v1346
        %v1398 = vpack.c.b16 %v1349, %v1348
        %v1399 = vpack.c.b16 %v1351, %v1350
        %v1400 = vpack.c.b16 %v1353, %v1352
        %v1401 = vpack.c.b16 %v1355, %v1354
        %v1402 = vpack.c.b16 %v1357, %v1356
        %v1403 = vpack.c.b16 %v1359, %v1358
        %v1404 = vpack.c.b16 %v1361, %v1360
        %v1405 = vpack.c.b16 %v1363, %v1362
        %v1406 = vpack.c.b16 %v1365, %v1364
        %v1407 = vpack.c.b16 %v1367, %v1366
        %v1408 = vpack.c.b16 %v1369, %v1368
        %v1409 = vpack.c.b16 %v1371, %v1370
        %v1410 = vpack.c.b16 %v1373, %v1372
        %v1411 = vpack.c.b16 %v1375, %v1374
        %v1412 = vpack.c.b16 %v1377, %v1376
        %v1413 = vpack.c.b16 %v1379, %v1378
        %v1414 = vpack.c.b16 %v1381, %v1380
        %v1415 = vpack.c.b16 %v1383, %v1382
        %1448 = vmatprep.subr.bf16.mxu0 0
        %1449 = vmatpush1.bf16.msra.mxu0 %v1384
        %1450 = vmatprep.subr.bf16.mxu0 0
        %1451 = vmatpush1.bf16.msra.mxu0 %v1385
        %1452 = vmatprep.subr.bf16.mxu0 0
        %1453 = vmatpush1.bf16.msra.mxu0 %v1386
        %1454 = vmatprep.subr.bf16.mxu0 0
        %1455 = vmatpush1.bf16.msra.mxu0 %v1387
        %1456 = vmatprep.subr.bf16.mxu0 0
        %1457 = vmatpush1.bf16.msra.mxu0 %v1388
        %1458 = vmatprep.subr.bf16.mxu0 0
        %1459 = vmatpush1.bf16.msra.mxu0 %v1389
        %1460 = vmatprep.subr.bf16.mxu0 0
        %1461 = vmatpush1.bf16.msra.mxu0 %v1390
        %1462 = vmatprep.subr.bf16.mxu0 0
        %1463 = vmatpush1.bf16.msra.mxu0 %v1391
        %1464 = vmatprep.subr.bf16.mxu0 0
        %1465 = vmatpush1.bf16.msra.mxu0 %v1392
        %1466 = vmatprep.subr.bf16.mxu0 0
        %1467 = vmatpush1.bf16.msra.mxu0 %v1393
        %1468 = vmatprep.subr.bf16.mxu0 0
        %1469 = vmatpush1.bf16.msra.mxu0 %v1394
        %1470 = vmatprep.subr.bf16.mxu0 0
        %1471 = vmatpush1.bf16.msra.mxu0 %v1395
        %1472 = vmatprep.subr.bf16.mxu0 0
        %1473 = vmatpush1.bf16.msra.mxu0 %v1396
        %1474 = vmatprep.subr.bf16.mxu0 0
        %1475 = vmatpush1.bf16.msra.mxu0 %v1397
        %1476 = vmatprep.subr.bf16.mxu0 0
        %1477 = vmatpush1.bf16.msra.mxu0 %v1398
        %1478 = vmatprep.subr.bf16.mxu0 0
        %1479 = vmatpush1.bf16.msra.mxu0 %v1399
        %1480 = vmatprep.mubr.bf16.mxu0 %v1171
        %1481 = vmatmul.mubr.bf16.gmra.mrb[0].mxu0 %v509
        %v1482 = vpop.f32.mrb[0].mxu0
        %v1483 = vadd.f32 %v603, %v1482
        %v1484 = vpop.f32.mrb[0].mxu0
        %v1485 = vpop.f32.mrb[0].mxu0
        %v1486 = vadd.f32 %v603, %v1485
        %v1487 = vpop.f32.mrb[0].mxu0
        %1488 = vmatprep.mubr.bf16.mxu0 %v1172
        %1489 = vmatmul.mubr.bf16.gmra.mrb[0].mxu0 %v510
        %v1490 = vpop.f32.mrb[0].mxu0
        %v1491 = vadd.f32 %v603, %v1490
        %v1492 = vpop.f32.mrb[0].mxu0
        %v1493 = vpop.f32.mrb[0].mxu0
        %v1494 = vadd.f32 %v603, %v1493
        %v1495 = vpop.f32.mrb[0].mxu0
        %1496 = vmatprep.mubr.bf16.mxu0 %v1173
        %1497 = vmatmul.mubr.bf16.gmra.mrb[0].mxu0 %v511
        %v1498 = vpop.f32.mrb[0].mxu0
        %v1499 = vadd.f32 %v603, %v1498
        %v1500 = vpop.f32.mrb[0].mxu0
        %v1501 = vpop.f32.mrb[0].mxu0
        %v1502 = vadd.f32 %v603, %v1501
        %v1503 = vpop.f32.mrb[0].mxu0
        %1504 = vmatprep.mubr.bf16.mxu0 %v1174
        %1505 = vmatmul.mubr.bf16.gmra.mrb[0].mxu0 %v512
        %v1506 = vpop.f32.mrb[0].mxu0
        %v1507 = vadd.f32 %v603, %v1506
        %v1508 = vpop.f32.mrb[0].mxu0
        %v1509 = vpop.f32.mrb[0].mxu0
        %v1510 = vadd.f32 %v603, %v1509
        %v1511 = vpop.f32.mrb[0].mxu0
        %1512 = vmatprep.mubr.bf16.mxu0 %v1175
        %1513 = vmatmul.mubr.bf16.gmra.mrb[0].mxu0 %v513
        %v1514 = vpop.f32.mrb[0].mxu0
        %v1515 = vadd.f32 %v603, %v1514
        %v1516 = vpop.f32.mrb[0].mxu0
        %v1517 = vpop.f32.mrb[0].mxu0
        %v1518 = vadd.f32 %v603, %v1517
        %v1519 = vpop.f32.mrb[0].mxu0
        %1520 = vmatprep.mubr.bf16.mxu0 %v1176
        %1521 = vmatmul.mubr.bf16.gmra.mrb[0].mxu0 %v514
        %v1522 = vpop.f32.mrb[0].mxu0
        %v1523 = vadd.f32 %v603, %v1522
        %v1524 = vpop.f32.mrb[0].mxu0
        %v1525 = vpop.f32.mrb[0].mxu0
        %v1526 = vadd.f32 %v603, %v1525
        %v1527 = vpop.f32.mrb[0].mxu0
        %1528 = vmatprep.mubr.bf16.mxu0 %v1177
        %1529 = vmatmul.mubr.bf16.gmra.mrb[0].mxu0 %v515
        %v1530 = vpop.f32.mrb[0].mxu0
        %v1531 = vadd.f32 %v603, %v1530
        %v1532 = vpop.f32.mrb[0].mxu0
        %v1533 = vpop.f32.mrb[0].mxu0
        %v1534 = vadd.f32 %v603, %v1533
        %v1535 = vpop.f32.mrb[0].mxu0
        %1536 = vmatprep.mubr.bf16.mxu0 %v1178
        %1537 = vmatmul.mubr.bf16.gmra.mrb[0].mxu0 %v516
        %v1538 = vpop.f32.mrb[0].mxu0
        %v1539 = vadd.f32 %v603, %v1538
        %v1540 = vpop.f32.mrb[0].mxu0
        %v1541 = vpop.f32.mrb[0].mxu0
        %v1542 = vadd.f32 %v603, %v1541
        %v1543 = vpop.f32.mrb[0].mxu0
        %1544 = vdwg.mxu0
        %1545 = vmatprep.subr.bf16.mxu0 0
        %1546 = vmatpush1.bf16.msra.mxu0 %v1400
        %1547 = vmatprep.subr.bf16.mxu0 0
        %1548 = vmatpush1.bf16.msra.mxu0 %v1401
        %1549 = vmatprep.subr.bf16.mxu0 0
        %1550 = vmatpush1.bf16.msra.mxu0 %v1402
        %1551 = vmatprep.subr.bf16.mxu0 0
        %1552 = vmatpush1.bf16.msra.mxu0 %v1403
        %1553 = vmatprep.subr.bf16.mxu0 0
        %1554 = vmatpush1.bf16.msra.mxu0 %v1404
        %1555 = vmatprep.subr.bf16.mxu0 0
        %1556 = vmatpush1.bf16.msra.mxu0 %v1405
        %1557 = vmatprep.subr.bf16.mxu0 0
        %1558 = vmatpush1.bf16.msra.mxu0 %v1406
        %1559 = vmatprep.subr.bf16.mxu0 0
        %1560 = vmatpush1.bf16.msra.mxu0 %v1407
        %1561 = vmatprep.subr.bf16.mxu0 0
        %1562 = vmatpush1.bf16.msra.mxu0 %v1408
        %1563 = vmatprep.subr.bf16.mxu0 0
        %1564 = vmatpush1.bf16.msra.mxu0 %v1409
        %1565 = vmatprep.subr.bf16.mxu0 0
        %1566 = vmatpush1.bf16.msra.mxu0 %v1410
        %1567 = vmatprep.subr.bf16.mxu0 0
        %1568 = vmatpush1.bf16.msra.mxu0 %v1411
        %1569 = vmatprep.subr.bf16.mxu0 0
        %1570 = vmatpush1.bf16.msra.mxu0 %v1412
        %1571 = vmatprep.subr.bf16.mxu0 0
        %1572 = vmatpush1.bf16.msra.mxu0 %v1413
        %1573 = vmatprep.subr.bf16.mxu0 0
        %1574 = vmatpush1.bf16.msra.mxu0 %v1414
        %1575 = vmatprep.subr.bf16.mxu0 0
        %1576 = vmatpush1.bf16.msra.mxu0 %v1415
        %1577 = vmatprep.mubr.bf16.mxu0 %v1172
        %1578 = vmatmul.mubr.bf16.gmra.mrb[0].mxu0 %v510
        %v1579 = vpop.f32.mrb[0].mxu0
        %v1580 = vadd.f32 %v1483, %v1579
        %v1581 = vpop.f32.mrb[0].mxu0
        %v1582 = vpop.f32.mrb[0].mxu0
        %v1583 = vadd.f32 %v1486, %v1582
        %v1584 = vpop.f32.mrb[0].mxu0
        %1585 = vmatprep.mubr.bf16.mxu0 %v1173
        %1586 = vmatmul.mubr.bf16.gmra.mrb[0].mxu0 %v511
        %v1587 = vpop.f32.mrb[0].mxu0
        %v1588 = vadd.f32 %v1491, %v1587
        %v1589 = vpop.f32.mrb[0].mxu0
        %v1590 = vpop.f32.mrb[0].mxu0
        %v1591 = vadd.f32 %v1494, %v1590
        %v1592 = vpop.f32.mrb[0].mxu0
        %1593 = vmatprep.mubr.bf16.mxu0 %v1174
        %1594 = vmatmul.mubr.bf16.gmra.mrb[0].mxu0 %v512
        %v1595 = vpop.f32.mrb[0].mxu0
        %v1596 = vadd.f32 %v1499, %v1595
        %v1597 = vpop.f32.mrb[0].mxu0
        %v1598 = vpop.f32.mrb[0].mxu0
        %v1599 = vadd.f32 %v1502, %v1598
        %v1600 = vpop.f32.mrb[0].mxu0
        %1601 = vmatprep.mubr.bf16.mxu0 %v1175
        %1602 = vmatmul.mubr.bf16.gmra.mrb[0].mxu0 %v513
        %v1603 = vpop.f32.mrb[0].mxu0
        %v1604 = vadd.f32 %v1507, %v1603
        %v1605 = vpop.f32.mrb[0].mxu0
        %v1606 = vpop.f32.mrb[0].mxu0
        %v1607 = vadd.f32 %v1510, %v1606
        %v1608 = vpop.f32.mrb[0].mxu0
        %1609 = vmatprep.mubr.bf16.mxu0 %v1176
        %1610 = vmatmul.mubr.bf16.gmra.mrb[0].mxu0 %v514
        %v1611 = vpop.f32.mrb[0].mxu0
        %v1612 = vadd.f32 %v1515, %v1611
        %v1613 = vpop.f32.mrb[0].mxu0
        %v1614 = vpop.f32.mrb[0].mxu0
        %v1615 = vadd.f32 %v1518, %v1614
        %v1616 = vpop.f32.mrb[0].mxu0
        %1617 = vmatprep.mubr.bf16.mxu0 %v1177
        %1618 = vmatmul.mubr.bf16.gmra.mrb[0].mxu0 %v515
        %v1619 = vpop.f32.mrb[0].mxu0
        %v1620 = vadd.f32 %v1523, %v1619
        %v1621 = vpop.f32.mrb[0].mxu0
        %v1622 = vpop.f32.mrb[0].mxu0
        %v1623 = vadd.f32 %v1526, %v1622
        %v1624 = vpop.f32.mrb[0].mxu0
        %1625 = vmatprep.mubr.bf16.mxu0 %v1178
        %1626 = vmatmul.mubr.bf16.gmra.mrb[0].mxu0 %v516
        %v1627 = vpop.f32.mrb[0].mxu0
        %v1628 = vadd.f32 %v1531, %v1627
        %v1629 = vpop.f32.mrb[0].mxu0
        %v1630 = vpop.f32.mrb[0].mxu0
        %v1631 = vadd.f32 %v1534, %v1630
        %v1632 = vpop.f32.mrb[0].mxu0
        %1633 = vmatprep.mubr.bf16.mxu0 %v1189
        %1634 = vmatmul.mubr.bf16.gmra.mrb[0].mxu0 %v533
        %v1635 = vpop.f32.mrb[0].mxu0
        %v1636 = vadd.f32 %v1539, %v1635
        %v1637 = vpop.f32.mrb[0].mxu0
        %v1638 = vpop.f32.mrb[0].mxu0
        %v1639 = vadd.f32 %v1542, %v1638
        %v1640 = vpop.f32.mrb[0].mxu0
        %1641 = vdwg.mxu0
        %v1642 = vpack.c.bf16 %v1583, %v1580
        %v1643 = vpack.c.bf16 %v1591, %v1588
        %v1644 = vpack.c.bf16 %v1599, %v1596
        %v1645 = vpack.c.bf16 %v1607, %v1604
        %v1646 = vpack.c.bf16 %v1615, %v1612
        %v1647 = vpack.c.bf16 %v1623, %v1620
        %v1648 = vpack.c.bf16 %v1631, %v1628
        %v1649 = vpack.c.bf16 %v1639, %v1636
        %v1658 = vunpack.c.l.b16 %v1642
        %v1659 = vunpack.c.h.b16 %v1642
        %v1660 = vunpack.c.l.b16 %v1643
        %v1661 = vunpack.c.h.b16 %v1643
        %v1662 = vunpack.c.l.b16 %v1644
        %v1663 = vunpack.c.h.b16 %v1644
        %v1664 = vunpack.c.l.b16 %v1645
        %v1665 = vunpack.c.h.b16 %v1645
        %v1666 = vunpack.c.l.b16 %v1646
        %v1667 = vunpack.c.h.b16 %v1646
        %v1668 = vunpack.c.l.b16 %v1647
        %v1669 = vunpack.c.h.b16 %v1647
        %v1670 = vunpack.c.l.b16 %v1648
        %v1671 = vunpack.c.h.b16 %v1648
        %v1672 = vunpack.c.l.b16 %v1649
        %v1673 = vunpack.c.h.b16 %v1649
        %v1674 = vpack.c.b16 %v1658, %v1658
        %v1675 = vpack.c.b16 %v1659, %v1659
        %v1676 = vpack.c.b16 %v1660, %v1660
        %v1677 = vpack.c.b16 %v1661, %v1661
        %v1678 = vpack.c.b16 %v1662, %v1662
        %v1679 = vpack.c.b16 %v1663, %v1663
        %v1680 = vpack.c.b16 %v1664, %v1664
        %v1681 = vpack.c.b16 %v1665, %v1665
        %v1682 = vpack.c.b16 %v1666, %v1666
        %v1683 = vpack.c.b16 %v1667, %v1667
        %v1684 = vpack.c.b16 %v1668, %v1668
        %v1685 = vpack.c.b16 %v1669, %v1669
        %v1686 = vpack.c.b16 %v1670, %v1670
        %v1687 = vpack.c.b16 %v1671, %v1671
        %v1688 = vpack.c.b16 %v1672, %v1672
        %v1689 = vpack.c.b16 %v1673, %v1673
        %s1706 = scalar_lea.vmem %s173, 64 [#allocation2]
        %1707 = vst [vmem:[%s1706] sm:$0xf] %v1674
        %1708 = vst [vmem:[%s1706 + $0x4] sm:$0xf] %v1675
        %1709 = vst [vmem:[%s1706 + $0x8] sm:$0xf] %v1676
        %1710 = vst [vmem:[%s1706 + $0xc] sm:$0xf] %v1677
        %1711 = vst [vmem:[%s1706 + $0x10] sm:$0xf] %v1678
        %1712 = vst [vmem:[%s1706 + $0x14] sm:$0xf] %v1679
        %1713 = vst [vmem:[%s1706 + $0x18] sm:$0xf] %v1680
        %1714 = vst [vmem:[%s1706 + $0x1c] sm:$0xf] %v1681
        %1715 = vst [vmem:[%s1706 + $0x20] sm:$0xf] %v1682
        %1716 = vst [vmem:[%s1706 + $0x24] sm:$0xf] %v1683
        %1717 = vst [vmem:[%s1706 + $0x28] sm:$0xf] %v1684
        %1718 = vst [vmem:[%s1706 + $0x2c] sm:$0xf] %v1685
        %1719 = vst [vmem:[%s1706 + $0x30] sm:$0xf] %v1686
        %1720 = vst [vmem:[%s1706 + $0x34] sm:$0xf] %v1687
        %1721 = vst [vmem:[%s1706 + $0x38] sm:$0xf] %v1688
        %1722 = vst [vmem:[%s1706 + $0x3c] sm:$0xf] %v1689
        %v1724 = vshrl.u32 %v203, 16
        %v1726 = vrot.slane %v1724, 4
        %v1727 = vshll.u32 %v203, 16
        %v1729 = vrot.slane %v1727, 5
        %v1730 = vor.u32 %v1726, %v1729
        %v1731 = vrot.slane %v1730, 4
        %v1733 = vshll.u32 %v204, 16
        %v1735 = vrot.slane %v1733, 5
        %v1736 = vsel %vm228, %v1731, %v1735
        %v1737 = vshrl.u32 %v204, 16
        %v1739 = vrot.slane %v1737, 4
        %v1740 = vor.u32 %v1739, %v1735
        %v1741 = vrot.slane %v1740, 4
        %v1743 = vshll.u32 %v214, 16
        %v1745 = vrot.slane %v1743, 5
        %v1746 = vsel %vm228, %v1741, %v1745
        %v1749 = vunpack.c.l.b16 %v203
        %v1750 = vunpack.c.l.b16 %v204
        %v1751 = vpack.c.b16 %v1750, %v1749
        %v1753 = vunpack.c.l.b16 %v1736
        %v1754 = vunpack.c.l.b16 %v1746
        %v1755 = vpack.c.b16 %v1754, %v1753
        %s1757 = scalar_lea.vmem %s1, 512
        %v1758 = vld [vmem:[%s1757] sm:$0xf]
        %v1759 = vld [vmem:[%s1757 + $0x4] sm:$0xf]
        %v1760 = vld [vmem:[%s1757 + $0x8] sm:$0xf]
        %v1761 = vld [vmem:[%s1757 + $0xc] sm:$0xf]
        %v1762 = vld [vmem:[%s1757 + $0x10] sm:$0xf]
        %v1763 = vld [vmem:[%s1757 + $0x14] sm:$0xf]
        %v1764 = vld [vmem:[%s1757 + $0x18] sm:$0xf]
        %v1765 = vld [vmem:[%s1757 + $0x1c] sm:$0xf]
        %v1766 = vld [vmem:[%s1757 + $0x20] sm:$0xf]
        %v1767 = vld [vmem:[%s1757 + $0x24] sm:$0xf]
        %v1768 = vld [vmem:[%s1757 + $0x28] sm:$0xf]
        %v1769 = vld [vmem:[%s1757 + $0x2c] sm:$0xf]
        %v1770 = vld [vmem:[%s1757 + $0x30] sm:$0xf]
        %v1771 = vld [vmem:[%s1757 + $0x34] sm:$0xf]
        %v1772 = vld [vmem:[%s1757 + $0x38] sm:$0xf]
        %v1773 = vld [vmem:[%s1757 + $0x3c] sm:$0xf]
        %v1774 = vld [vmem:[%s1757 + $0x40] sm:$0xf]
        %v1775 = vld [vmem:[%s1757 + $0x44] sm:$0xf]
        %v1776 = vld [vmem:[%s1757 + $0x48] sm:$0xf]
        %v1777 = vld [vmem:[%s1757 + $0x4c] sm:$0xf]
        %v1778 = vld [vmem:[%s1757 + $0x50] sm:$0xf]
        %v1779 = vld [vmem:[%s1757 + $0x54] sm:$0xf]
        %v1780 = vld [vmem:[%s1757 + $0x58] sm:$0xf]
        %v1781 = vld [vmem:[%s1757 + $0x5c] sm:$0xf]
        %v1782 = vld [vmem:[%s1757 + $0x60] sm:$0xf]
        %v1783 = vld [vmem:[%s1757 + $0x64] sm:$0xf]
        %v1784 = vld [vmem:[%s1757 + $0x68] sm:$0xf]
        %v1785 = vld [vmem:[%s1757 + $0x6c] sm:$0xf]
        %v1786 = vld [vmem:[%s1757 + $0x70] sm:$0xf]
        %v1787 = vld [vmem:[%s1757 + $0x74] sm:$0xf]
        %v1788 = vld [vmem:[%s1757 + $0x78] sm:$0xf]
        %v1789 = vld [vmem:[%s1757 + $0x7c] sm:$0xf]
        %v1790 = vld [vmem:[%s1757 + $0x80] sm:$0xf]
        %v1791 = vld [vmem:[%s1757 + $0x84] sm:$0xf]
        %v1792 = vld [vmem:[%s1757 + $0x88] sm:$0xf]
        %v1793 = vld [vmem:[%s1757 + $0x8c] sm:$0xf]
        %v1794 = vld [vmem:[%s1757 + $0x90] sm:$0xf]
        %v1795 = vld [vmem:[%s1757 + $0x94] sm:$0xf]
        %v1796 = vld [vmem:[%s1757 + $0x98] sm:$0xf]
        %v1797 = vld [vmem:[%s1757 + $0x9c] sm:$0xf]
        %v1798 = vld [vmem:[%s1757 + $0xa0] sm:$0xf]
        %v1799 = vld [vmem:[%s1757 + $0xa4] sm:$0xf]
        %v1800 = vld [vmem:[%s1757 + $0xa8] sm:$0xf]
        %v1801 = vld [vmem:[%s1757 + $0xac] sm:$0xf]
        %v1802 = vld [vmem:[%s1757 + $0xb0] sm:$0xf]
        %v1803 = vld [vmem:[%s1757 + $0xb4] sm:$0xf]
        %v1804 = vld [vmem:[%s1757 + $0xb8] sm:$0xf]
        %v1805 = vld [vmem:[%s1757 + $0xbc] sm:$0xf]
        %v1806 = vld [vmem:[%s1757 + $0xc0] sm:$0xf]
        %v1807 = vld [vmem:[%s1757 + $0xc4] sm:$0xf]
        %v1808 = vld [vmem:[%s1757 + $0xc8] sm:$0xf]
        %v1809 = vld [vmem:[%s1757 + $0xcc] sm:$0xf]
        %v1810 = vld [vmem:[%s1757 + $0xd0] sm:$0xf]
        %v1811 = vld [vmem:[%s1757 + $0xd4] sm:$0xf]
        %v1812 = vld [vmem:[%s1757 + $0xd8] sm:$0xf]
        %v1813 = vld [vmem:[%s1757 + $0xdc] sm:$0xf]
        %v1814 = vld [vmem:[%s1757 + $0xe0] sm:$0xf]
        %v1815 = vld [vmem:[%s1757 + $0xe4] sm:$0xf]
        %v1816 = vld [vmem:[%s1757 + $0xe8] sm:$0xf]
        %v1817 = vld [vmem:[%s1757 + $0xec] sm:$0xf]
        %v1818 = vld [vmem:[%s1757 + $0xf0] sm:$0xf]
        %v1819 = vld [vmem:[%s1757 + $0xf4] sm:$0xf]
        %v1820 = vld [vmem:[%s1757 + $0xf8] sm:$0xf]
        %v1821 = vld [vmem:[%s1757 + $0xfc] sm:$0xf]
        %v1886 = vunpack.c.l.b16 %v1758
        %v1887 = vunpack.c.l.b16 %v1759
        %v1888 = vunpack.c.l.b16 %v1760
        %v1889 = vunpack.c.l.b16 %v1761
        %v1890 = vunpack.c.l.b16 %v1762
        %v1891 = vunpack.c.l.b16 %v1763
        %v1892 = vunpack.c.l.b16 %v1764
        %v1893 = vunpack.c.l.b16 %v1765
        %v1894 = vunpack.c.l.b16 %v1766
        %v1895 = vunpack.c.l.b16 %v1767
        %v1896 = vunpack.c.l.b16 %v1768
        %v1897 = vunpack.c.l.b16 %v1769
        %v1898 = vunpack.c.l.b16 %v1770
        %v1899 = vunpack.c.l.b16 %v1771
        %v1900 = vunpack.c.l.b16 %v1772
        %v1901 = vunpack.c.l.b16 %v1773
        %v1902 = vunpack.c.l.b16 %v1774
        %v1903 = vunpack.c.l.b16 %v1775
        %v1904 = vunpack.c.l.b16 %v1776
        %v1905 = vunpack.c.l.b16 %v1777
        %v1906 = vunpack.c.l.b16 %v1778
        %v1907 = vunpack.c.l.b16 %v1779
        %v1908 = vunpack.c.l.b16 %v1780
        %v1909 = vunpack.c.l.b16 %v1781
        %v1910 = vunpack.c.l.b16 %v1782
        %v1911 = vunpack.c.l.b16 %v1783
        %v1912 = vunpack.c.l.b16 %v1784
        %v1913 = vunpack.c.l.b16 %v1785
        %v1914 = vunpack.c.l.b16 %v1786
        %v1915 = vunpack.c.l.b16 %v1787
        %v1916 = vunpack.c.l.b16 %v1788
        %v1917 = vunpack.c.l.b16 %v1789
        %v1918 = vunpack.c.l.b16 %v1790
        %v1919 = vunpack.c.l.b16 %v1791
        %v1920 = vunpack.c.l.b16 %v1792
        %v1921 = vunpack.c.l.b16 %v1793
        %v1922 = vunpack.c.l.b16 %v1794
        %v1923 = vunpack.c.l.b16 %v1795
        %v1924 = vunpack.c.l.b16 %v1796
        %v1925 = vunpack.c.l.b16 %v1797
        %v1926 = vunpack.c.l.b16 %v1798
        %v1927 = vunpack.c.l.b16 %v1799
        %v1928 = vunpack.c.l.b16 %v1800
        %v1929 = vunpack.c.l.b16 %v1801
        %v1930 = vunpack.c.l.b16 %v1802
        %v1931 = vunpack.c.l.b16 %v1803
        %v1932 = vunpack.c.l.b16 %v1804
        %v1933 = vunpack.c.l.b16 %v1805
        %v1934 = vunpack.c.l.b16 %v1806
        %v1935 = vunpack.c.l.b16 %v1807
        %v1936 = vunpack.c.l.b16 %v1808
        %v1937 = vunpack.c.l.b16 %v1809
        %v1938 = vunpack.c.l.b16 %v1810
        %v1939 = vunpack.c.l.b16 %v1811
        %v1940 = vunpack.c.l.b16 %v1812
        %v1941 = vunpack.c.l.b16 %v1813
        %v1942 = vunpack.c.l.b16 %v1814
        %v1943 = vunpack.c.l.b16 %v1815
        %v1944 = vunpack.c.l.b16 %v1816
        %v1945 = vunpack.c.l.b16 %v1817
        %v1946 = vunpack.c.l.b16 %v1818
        %v1947 = vunpack.c.l.b16 %v1819
        %v1948 = vunpack.c.l.b16 %v1820
        %v1949 = vunpack.c.l.b16 %v1821
        %v1950 = vpack.c.b16 %v1887, %v1886
        %v1951 = vpack.c.b16 %v1889, %v1888
        %v1952 = vpack.c.b16 %v1891, %v1890
        %v1953 = vpack.c.b16 %v1893, %v1892
        %v1954 = vpack.c.b16 %v1895, %v1894
        %v1955 = vpack.c.b16 %v1897, %v1896
        %v1956 = vpack.c.b16 %v1899, %v1898
        %v1957 = vpack.c.b16 %v1901, %v1900
        %v1958 = vpack.c.b16 %v1903, %v1902
        %v1959 = vpack.c.b16 %v1905, %v1904
        %v1960 = vpack.c.b16 %v1907, %v1906
        %v1961 = vpack.c.b16 %v1909, %v1908
        %v1962 = vpack.c.b16 %v1911, %v1910
        %v1963 = vpack.c.b16 %v1913, %v1912
        %v1964 = vpack.c.b16 %v1915, %v1914
        %v1965 = vpack.c.b16 %v1917, %v1916
        %v1966 = vpack.c.b16 %v1919, %v1918
        %v1967 = vpack.c.b16 %v1921, %v1920
        %v1968 = vpack.c.b16 %v1923, %v1922
        %v1969 = vpack.c.b16 %v1925, %v1924
        %v1970 = vpack.c.b16 %v1927, %v1926
        %v1971 = vpack.c.b16 %v1929, %v1928
        %v1972 = vpack.c.b16 %v1931, %v1930
        %v1973 = vpack.c.b16 %v1933, %v1932
        %v1974 = vpack.c.b16 %v1935, %v1934
        %v1975 = vpack.c.b16 %v1937, %v1936
        %v1976 = vpack.c.b16 %v1939, %v1938
        %v1977 = vpack.c.b16 %v1941, %v1940
        %v1978 = vpack.c.b16 %v1943, %v1942
        %v1979 = vpack.c.b16 %v1945, %v1944
        %v1980 = vpack.c.b16 %v1947, %v1946
        %v1981 = vpack.c.b16 %v1949, %v1948
        %2014 = vmatprep.subr.bf16.mxu0 0
        %2015 = vmatpush1.bf16.msra.mxu0 %v1950
        %2016 = vmatprep.subr.bf16.mxu0 0
        %2017 = vmatpush1.bf16.msra.mxu0 %v1951
        %2018 = vmatprep.subr.bf16.mxu0 0
        %2019 = vmatpush1.bf16.msra.mxu0 %v1952
        %2020 = vmatprep.subr.bf16.mxu0 0
        %2021 = vmatpush1.bf16.msra.mxu0 %v1953
        %2022 = vmatprep.subr.bf16.mxu0 0
        %2023 = vmatpush1.bf16.msra.mxu0 %v1954
        %2024 = vmatprep.subr.bf16.mxu0 0
        %2025 = vmatpush1.bf16.msra.mxu0 %v1955
        %2026 = vmatprep.subr.bf16.mxu0 0
        %2027 = vmatpush1.bf16.msra.mxu0 %v1956
        %2028 = vmatprep.subr.bf16.mxu0 0
        %2029 = vmatpush1.bf16.msra.mxu0 %v1957
        %2030 = vmatprep.subr.bf16.mxu0 0
        %2031 = vmatpush1.bf16.msra.mxu0 %v1958
        %2032 = vmatprep.subr.bf16.mxu0 0
        %2033 = vmatpush1.bf16.msra.mxu0 %v1959
        %2034 = vmatprep.subr.bf16.mxu0 0
        %2035 = vmatpush1.bf16.msra.mxu0 %v1960
        %2036 = vmatprep.subr.bf16.mxu0 0
        %2037 = vmatpush1.bf16.msra.mxu0 %v1961
        %2038 = vmatprep.subr.bf16.mxu0 0
        %2039 = vmatpush1.bf16.msra.mxu0 %v1962
        %2040 = vmatprep.subr.bf16.mxu0 0
        %2041 = vmatpush1.bf16.msra.mxu0 %v1963
        %2042 = vmatprep.subr.bf16.mxu0 0
        %2043 = vmatpush1.bf16.msra.mxu0 %v1964
        %2044 = vmatprep.subr.bf16.mxu0 0
        %2045 = vmatpush1.bf16.msra.mxu0 %v1965
        %2046 = vmatprep.mubr.bf16.mxu0 %v510
        %2047 = vmatmul.mubr.bf16.gmra.mrb[0].mxu0 %v478
        %v2048 = vpop.f32.mrb[0].mxu0
        %v2049 = vadd.f32 %v603, %v2048
        %v2050 = vpop.f32.mrb[0].mxu0
        %v2051 = vpop.f32.mrb[0].mxu0
        %v2052 = vadd.f32 %v603, %v2051
        %v2053 = vpop.f32.mrb[0].mxu0
        %2054 = vmatprep.mubr.bf16.mxu0 %v511
        %2055 = vmatmul.mubr.bf16.gmra.mrb[0].mxu0 %v479
        %v2056 = vpop.f32.mrb[0].mxu0
        %v2057 = vadd.f32 %v603, %v2056
        %v2058 = vpop.f32.mrb[0].mxu0
        %v2059 = vpop.f32.mrb[0].mxu0
        %v2060 = vadd.f32 %v603, %v2059
        %v2061 = vpop.f32.mrb[0].mxu0
        %2062 = vmatprep.mubr.bf16.mxu0 %v512
        %2063 = vmatmul.mubr.bf16.gmra.mrb[0].mxu0 %v480
        %v2064 = vpop.f32.mrb[0].mxu0
        %v2065 = vadd.f32 %v603, %v2064
        %v2066 = vpop.f32.mrb[0].mxu0
        %v2067 = vpop.f32.mrb[0].mxu0
        %v2068 = vadd.f32 %v603, %v2067
        %v2069 = vpop.f32.mrb[0].mxu0
        %2070 = vmatprep.mubr.bf16.mxu0 %v513
        %2071 = vmatmul.mubr.bf16.gmra.mrb[0].mxu0 %v481
        %v2072 = vpop.f32.mrb[0].mxu0
        %v2073 = vadd.f32 %v603, %v2072
        %v2074 = vpop.f32.mrb[0].mxu0
        %v2075 = vpop.f32.mrb[0].mxu0
        %v2076 = vadd.f32 %v603, %v2075
        %v2077 = vpop.f32.mrb[0].mxu0
        %2078 = vmatprep.mubr.bf16.mxu0 %v514
        %2079 = vmatmul.mubr.bf16.gmra.mrb[0].mxu0 %v482
        %v2080 = vpop.f32.mrb[0].mxu0
        %v2081 = vadd.f32 %v603, %v2080
        %v2082 = vpop.f32.mrb[0].mxu0
        %v2083 = vpop.f32.mrb[0].mxu0
        %v2084 = vadd.f32 %v603, %v2083
        %v2085 = vpop.f32.mrb[0].mxu0
        %2086 = vmatprep.mubr.bf16.mxu0 %v515
        %2087 = vmatmul.mubr.bf16.gmra.mrb[0].mxu0 %v483
        %v2088 = vpop.f32.mrb[0].mxu0
        %v2089 = vadd.f32 %v603, %v2088
        %v2090 = vpop.f32.mrb[0].mxu0
        %v2091 = vpop.f32.mrb[0].mxu0
        %v2092 = vadd.f32 %v603, %v2091
        %v2093 = vpop.f32.mrb[0].mxu0
        %2094 = vmatprep.mubr.bf16.mxu0 %v516
        %2095 = vmatmul.mubr.bf16.gmra.mrb[0].mxu0 %v484
        %v2096 = vpop.f32.mrb[0].mxu0
        %v2097 = vadd.f32 %v603, %v2096
        %v2098 = vpop.f32.mrb[0].mxu0
        %v2099 = vpop.f32.mrb[0].mxu0
        %v2100 = vadd.f32 %v603, %v2099
        %v2101 = vpop.f32.mrb[0].mxu0
        %2102 = vmatprep.mubr.bf16.mxu0 %v533
        %2103 = vmatmul.mubr.bf16.gmra.mrb[0].mxu0 %v529
        %v2104 = vpop.f32.mrb[0].mxu0
        %v2105 = vadd.f32 %v603, %v2104
        %v2106 = vpop.f32.mrb[0].mxu0
        %v2107 = vpop.f32.mrb[0].mxu0
        %v2108 = vadd.f32 %v603, %v2107
        %v2109 = vpop.f32.mrb[0].mxu0
        %2110 = vdwg.mxu0
        %2111 = vmatprep.subr.bf16.mxu0 0
        %2112 = vmatpush1.bf16.msra.mxu0 %v1966
        %2113 = vmatprep.subr.bf16.mxu0 0
        %2114 = vmatpush1.bf16.msra.mxu0 %v1967
        %2115 = vmatprep.subr.bf16.mxu0 0
        %2116 = vmatpush1.bf16.msra.mxu0 %v1968
        %2117 = vmatprep.subr.bf16.mxu0 0
        %2118 = vmatpush1.bf16.msra.mxu0 %v1969
        %2119 = vmatprep.subr.bf16.mxu0 0
        %2120 = vmatpush1.bf16.msra.mxu0 %v1970
        %2121 = vmatprep.subr.bf16.mxu0 0
        %2122 = vmatpush1.bf16.msra.mxu0 %v1971
        %2123 = vmatprep.subr.bf16.mxu0 0
        %2124 = vmatpush1.bf16.msra.mxu0 %v1972
        %2125 = vmatprep.subr.bf16.mxu0 0
        %2126 = vmatpush1.bf16.msra.mxu0 %v1973
        %2127 = vmatprep.subr.bf16.mxu0 0
        %2128 = vmatpush1.bf16.msra.mxu0 %v1974
        %2129 = vmatprep.subr.bf16.mxu0 0
        %2130 = vmatpush1.bf16.msra.mxu0 %v1975
        %2131 = vmatprep.subr.bf16.mxu0 0
        %2132 = vmatpush1.bf16.msra.mxu0 %v1976
        %2133 = vmatprep.subr.bf16.mxu0 0
        %2134 = vmatpush1.bf16.msra.mxu0 %v1977
        %2135 = vmatprep.subr.bf16.mxu0 0
        %2136 = vmatpush1.bf16.msra.mxu0 %v1978
        %2137 = vmatprep.subr.bf16.mxu0 0
        %2138 = vmatpush1.bf16.msra.mxu0 %v1979
        %2139 = vmatprep.subr.bf16.mxu0 0
        %2140 = vmatpush1.bf16.msra.mxu0 %v1980
        %2141 = vmatprep.subr.bf16.mxu0 0
        %2142 = vmatpush1.bf16.msra.mxu0 %v1981
        %2143 = vmatprep.mubr.bf16.mxu0 %v511
        %2144 = vmatmul.mubr.bf16.gmra.mrb[0].mxu0 %v479
        %v2145 = vpop.f32.mrb[0].mxu0
        %v2146 = vadd.f32 %v2049, %v2145
        %v2147 = vpop.f32.mrb[0].mxu0
        %v2148 = vpop.f32.mrb[0].mxu0
        %v2149 = vadd.f32 %v2052, %v2148
        %v2150 = vpop.f32.mrb[0].mxu0
        %2151 = vmatprep.mubr.bf16.mxu0 %v512
        %2152 = vmatmul.mubr.bf16.gmra.mrb[0].mxu0 %v480
        %v2153 = vpop.f32.mrb[0].mxu0
        %v2154 = vadd.f32 %v2057, %v2153
        %v2155 = vpop.f32.mrb[0].mxu0
        %v2156 = vpop.f32.mrb[0].mxu0
        %v2157 = vadd.f32 %v2060, %v2156
        %v2158 = vpop.f32.mrb[0].mxu0
        %2159 = vmatprep.mubr.bf16.mxu0 %v513
        %2160 = vmatmul.mubr.bf16.gmra.mrb[0].mxu0 %v481
        %v2161 = vpop.f32.mrb[0].mxu0
        %v2162 = vadd.f32 %v2065, %v2161
        %v2163 = vpop.f32.mrb[0].mxu0
        %v2164 = vpop.f32.mrb[0].mxu0
        %v2165 = vadd.f32 %v2068, %v2164
        %v2166 = vpop.f32.mrb[0].mxu0
        %2167 = vmatprep.mubr.bf16.mxu0 %v514
        %2168 = vmatmul.mubr.bf16.gmra.mrb[0].mxu0 %v482
        %v2169 = vpop.f32.mrb[0].mxu0
        %v2170 = vadd.f32 %v2073, %v2169
        %v2171 = vpop.f32.mrb[0].mxu0
        %v2172 = vpop.f32.mrb[0].mxu0
        %v2173 = vadd.f32 %v2076, %v2172
        %v2174 = vpop.f32.mrb[0].mxu0
        %2175 = vmatprep.mubr.bf16.mxu0 %v515
        %2176 = vmatmul.mubr.bf16.gmra.mrb[0].mxu0 %v483
        %v2177 = vpop.f32.mrb[0].mxu0
        %v2178 = vadd.f32 %v2081, %v2177
        %v2179 = vpop.f32.mrb[0].mxu0
        %v2180 = vpop.f32.mrb[0].mxu0
        %v2181 = vadd.f32 %v2084, %v2180
        %v2182 = vpop.f32.mrb[0].mxu0
        %2183 = vmatprep.mubr.bf16.mxu0 %v516
        %2184 = vmatmul.mubr.bf16.gmra.mrb[0].mxu0 %v484
        %v2185 = vpop.f32.mrb[0].mxu0
        %v2186 = vadd.f32 %v2089, %v2185
        %v2187 = vpop.f32.mrb[0].mxu0
        %v2188 = vpop.f32.mrb[0].mxu0
        %v2189 = vadd.f32 %v2092, %v2188
        %v2190 = vpop.f32.mrb[0].mxu0
        %2191 = vmatprep.mubr.bf16.mxu0 %v533
        %2192 = vmatmul.mubr.bf16.gmra.mrb[0].mxu0 %v529
        %v2193 = vpop.f32.mrb[0].mxu0
        %v2194 = vadd.f32 %v2097, %v2193
        %v2195 = vpop.f32.mrb[0].mxu0
        %v2196 = vpop.f32.mrb[0].mxu0
        %v2197 = vadd.f32 %v2100, %v2196
        %v2198 = vpop.f32.mrb[0].mxu0
        %2199 = vmatprep.mubr.bf16.mxu0 %v1755
        %2200 = vmatmul.mubr.bf16.gmra.mrb[0].mxu0 %v1751
        %v2201 = vpop.f32.mrb[0].mxu0
        %v2202 = vadd.f32 %v2105, %v2201
        %v2203 = vpop.f32.mrb[0].mxu0
        %v2204 = vpop.f32.mrb[0].mxu0
        %v2205 = vadd.f32 %v2108, %v2204
        %v2206 = vpop.f32.mrb[0].mxu0
        %2207 = vdwg.mxu0
        %v2208 = vpack.c.bf16 %v2149, %v2146
        %v2209 = vpack.c.bf16 %v2157, %v2154
        %v2210 = vpack.c.bf16 %v2165, %v2162
        %v2211 = vpack.c.bf16 %v2173, %v2170
        %v2212 = vpack.c.bf16 %v2181, %v2178
        %v2213 = vpack.c.bf16 %v2189, %v2186
        %v2214 = vpack.c.bf16 %v2197, %v2194
        %v2215 = vpack.c.bf16 %v2205, %v2202
        %v2224 = vunpack.c.l.b16 %v2208
        %v2225 = vunpack.c.h.b16 %v2208
        %v2226 = vunpack.c.l.b16 %v2209
        %v2227 = vunpack.c.h.b16 %v2209
        %v2228 = vunpack.c.l.b16 %v2210
        %v2229 = vunpack.c.h.b16 %v2210
        %v2230 = vunpack.c.l.b16 %v2211
        %v2231 = vunpack.c.h.b16 %v2211
        %v2232 = vunpack.c.l.b16 %v2212
        %v2233 = vunpack.c.h.b16 %v2212
        %v2234 = vunpack.c.l.b16 %v2213
        %v2235 = vunpack.c.h.b16 %v2213
        %v2236 = vunpack.c.l.b16 %v2214
        %v2237 = vunpack.c.h.b16 %v2214
        %v2238 = vunpack.c.l.b16 %v2215
        %v2239 = vunpack.c.h.b16 %v2215
        %v2240 = vpack.c.b16 %v2224, %v2224
        %v2241 = vpack.c.b16 %v2225, %v2225
        %v2242 = vpack.c.b16 %v2226, %v2226
        %v2243 = vpack.c.b16 %v2227, %v2227
        %v2244 = vpack.c.b16 %v2228, %v2228
        %v2245 = vpack.c.b16 %v2229, %v2229
        %v2246 = vpack.c.b16 %v2230, %v2230
        %v2247 = vpack.c.b16 %v2231, %v2231
        %v2248 = vpack.c.b16 %v2232, %v2232
        %v2249 = vpack.c.b16 %v2233, %v2233
        %v2250 = vpack.c.b16 %v2234, %v2234
        %v2251 = vpack.c.b16 %v2235, %v2235
        %v2252 = vpack.c.b16 %v2236, %v2236
        %v2253 = vpack.c.b16 %v2237, %v2237
        %v2254 = vpack.c.b16 %v2238, %v2238
        %v2255 = vpack.c.b16 %v2239, %v2239
        %s2272 = scalar_lea.vmem %s173, 128 [#allocation2]
        %2273 = vst [vmem:[%s2272] sm:$0xf] %v2240
        %2274 = vst [vmem:[%s2272 + $0x4] sm:$0xf] %v2241
        %2275 = vst [vmem:[%s2272 + $0x8] sm:$0xf] %v2242
        %2276 = vst [vmem:[%s2272 + $0xc] sm:$0xf] %v2243
        %2277 = vst [vmem:[%s2272 + $0x10] sm:$0xf] %v2244
        %2278 = vst [vmem:[%s2272 + $0x14] sm:$0xf] %v2245
        %2279 = vst [vmem:[%s2272 + $0x18] sm:$0xf] %v2246
        %2280 = vst [vmem:[%s2272 + $0x1c] sm:$0xf] %v2247
        %2281 = vst [vmem:[%s2272 + $0x20] sm:$0xf] %v2248
        %2282 = vst [vmem:[%s2272 + $0x24] sm:$0xf] %v2249
        %2283 = vst [vmem:[%s2272 + $0x28] sm:$0xf] %v2250
        %2284 = vst [vmem:[%s2272 + $0x2c] sm:$0xf] %v2251
        %2285 = vst [vmem:[%s2272 + $0x30] sm:$0xf] %v2252
        %2286 = vst [vmem:[%s2272 + $0x34] sm:$0xf] %v2253
        %2287 = vst [vmem:[%s2272 + $0x38] sm:$0xf] %v2254
        %2288 = vst [vmem:[%s2272 + $0x3c] sm:$0xf] %v2255
        %v2291 = vrot.slane %v224, 5
        %v2292 = vrot.slane %v2291, 4
        %v2293 = vrot.slane %v204, 5
        %v2294 = vsel %vm1089, %v2292, %v2293
        %v2295 = vrot.slane %v2293, 4
        %v2296 = vrot.slane %v214, 5
        %v2297 = vsel %vm1089, %v2295, %v2296
        %v2298 = vunpack.c.l.b16 %v2294
        %v2299 = vunpack.c.l.b16 %v2297
        %v2300 = vpack.c.b16 %v2299, %v2298
        %s2302 = scalar_lea.vmem %s1, 768
        %v2303 = vld [vmem:[%s2302] sm:$0xf]
        %v2304 = vld [vmem:[%s2302 + $0x4] sm:$0xf]
        %v2305 = vld [vmem:[%s2302 + $0x8] sm:$0xf]
        %v2306 = vld [vmem:[%s2302 + $0xc] sm:$0xf]
        %v2307 = vld [vmem:[%s2302 + $0x10] sm:$0xf]
        %v2308 = vld [vmem:[%s2302 + $0x14] sm:$0xf]
        %v2309 = vld [vmem:[%s2302 + $0x18] sm:$0xf]
        %v2310 = vld [vmem:[%s2302 + $0x1c] sm:$0xf]
        %v2311 = vld [vmem:[%s2302 + $0x20] sm:$0xf]
        %v2312 = vld [vmem:[%s2302 + $0x24] sm:$0xf]
        %v2313 = vld [vmem:[%s2302 + $0x28] sm:$0xf]
        %v2314 = vld [vmem:[%s2302 + $0x2c] sm:$0xf]
        %v2315 = vld [vmem:[%s2302 + $0x30] sm:$0xf]
        %v2316 = vld [vmem:[%s2302 + $0x34] sm:$0xf]
        %v2317 = vld [vmem:[%s2302 + $0x38] sm:$0xf]
        %v2318 = vld [vmem:[%s2302 + $0x3c] sm:$0xf]
        %v2319 = vld [vmem:[%s2302 + $0x40] sm:$0xf]
        %v2320 = vld [vmem:[%s2302 + $0x44] sm:$0xf]
        %v2321 = vld [vmem:[%s2302 + $0x48] sm:$0xf]
        %v2322 = vld [vmem:[%s2302 + $0x4c] sm:$0xf]
        %v2323 = vld [vmem:[%s2302 + $0x50] sm:$0xf]
        %v2324 = vld [vmem:[%s2302 + $0x54] sm:$0xf]
        %v2325 = vld [vmem:[%s2302 + $0x58] sm:$0xf]
        %v2326 = vld [vmem:[%s2302 + $0x5c] sm:$0xf]
        %v2327 = vld [vmem:[%s2302 + $0x60] sm:$0xf]
        %v2328 = vld [vmem:[%s2302 + $0x64] sm:$0xf]
        %v2329 = vld [vmem:[%s2302 + $0x68] sm:$0xf]
        %v2330 = vld [vmem:[%s2302 + $0x6c] sm:$0xf]
        %v2331 = vld [vmem:[%s2302 + $0x70] sm:$0xf]
        %v2332 = vld [vmem:[%s2302 + $0x74] sm:$0xf]
        %v2333 = vld [vmem:[%s2302 + $0x78] sm:$0xf]
        %v2334 = vld [vmem:[%s2302 + $0x7c] sm:$0xf]
        %v2335 = vld [vmem:[%s2302 + $0x80] sm:$0xf]
        %v2336 = vld [vmem:[%s2302 + $0x84] sm:$0xf]
        %v2337 = vld [vmem:[%s2302 + $0x88] sm:$0xf]
        %v2338 = vld [vmem:[%s2302 + $0x8c] sm:$0xf]
        %v2339 = vld [vmem:[%s2302 + $0x90] sm:$0xf]
        %v2340 = vld [vmem:[%s2302 + $0x94] sm:$0xf]
        %v2341 = vld [vmem:[%s2302 + $0x98] sm:$0xf]
        %v2342 = vld [vmem:[%s2302 + $0x9c] sm:$0xf]
        %v2343 = vld [vmem:[%s2302 + $0xa0] sm:$0xf]
        %v2344 = vld [vmem:[%s2302 + $0xa4] sm:$0xf]
        %v2345 = vld [vmem:[%s2302 + $0xa8] sm:$0xf]
        %v2346 = vld [vmem:[%s2302 + $0xac] sm:$0xf]
        %v2347 = vld [vmem:[%s2302 + $0xb0] sm:$0xf]
        %v2348 = vld [vmem:[%s2302 + $0xb4] sm:$0xf]
        %v2349 = vld [vmem:[%s2302 + $0xb8] sm:$0xf]
        %v2350 = vld [vmem:[%s2302 + $0xbc] sm:$0xf]
        %v2351 = vld [vmem:[%s2302 + $0xc0] sm:$0xf]
        %v2352 = vld [vmem:[%s2302 + $0xc4] sm:$0xf]
        %v2353 = vld [vmem:[%s2302 + $0xc8] sm:$0xf]
        %v2354 = vld [vmem:[%s2302 + $0xcc] sm:$0xf]
        %v2355 = vld [vmem:[%s2302 + $0xd0] sm:$0xf]
        %v2356 = vld [vmem:[%s2302 + $0xd4] sm:$0xf]
        %v2357 = vld [vmem:[%s2302 + $0xd8] sm:$0xf]
        %v2358 = vld [vmem:[%s2302 + $0xdc] sm:$0xf]
        %v2359 = vld [vmem:[%s2302 + $0xe0] sm:$0xf]
        %v2360 = vld [vmem:[%s2302 + $0xe4] sm:$0xf]
        %v2361 = vld [vmem:[%s2302 + $0xe8] sm:$0xf]
        %v2362 = vld [vmem:[%s2302 + $0xec] sm:$0xf]
        %v2363 = vld [vmem:[%s2302 + $0xf0] sm:$0xf]
        %v2364 = vld [vmem:[%s2302 + $0xf4] sm:$0xf]
        %v2365 = vld [vmem:[%s2302 + $0xf8] sm:$0xf]
        %v2366 = vld [vmem:[%s2302 + $0xfc] sm:$0xf]
        %v2431 = vunpack.c.l.b16 %v2303
        %v2432 = vunpack.c.l.b16 %v2304
        %v2433 = vunpack.c.l.b16 %v2305
        %v2434 = vunpack.c.l.b16 %v2306
        %v2435 = vunpack.c.l.b16 %v2307
        %v2436 = vunpack.c.l.b16 %v2308
        %v2437 = vunpack.c.l.b16 %v2309
        %v2438 = vunpack.c.l.b16 %v2310
        %v2439 = vunpack.c.l.b16 %v2311
        %v2440 = vunpack.c.l.b16 %v2312
        %v2441 = vunpack.c.l.b16 %v2313
        %v2442 = vunpack.c.l.b16 %v2314
        %v2443 = vunpack.c.l.b16 %v2315
        %v2444 = vunpack.c.l.b16 %v2316
        %v2445 = vunpack.c.l.b16 %v2317
        %v2446 = vunpack.c.l.b16 %v2318
        %v2447 = vunpack.c.l.b16 %v2319
        %v2448 = vunpack.c.l.b16 %v2320
        %v2449 = vunpack.c.l.b16 %v2321
        %v2450 = vunpack.c.l.b16 %v2322
        %v2451 = vunpack.c.l.b16 %v2323
        %v2452 = vunpack.c.l.b16 %v2324
        %v2453 = vunpack.c.l.b16 %v2325
        %v2454 = vunpack.c.l.b16 %v2326
        %v2455 = vunpack.c.l.b16 %v2327
        %v2456 = vunpack.c.l.b16 %v2328
        %v2457 = vunpack.c.l.b16 %v2329
        %v2458 = vunpack.c.l.b16 %v2330
        %v2459 = vunpack.c.l.b16 %v2331
        %v2460 = vunpack.c.l.b16 %v2332
        %v2461 = vunpack.c.l.b16 %v2333
        %v2462 = vunpack.c.l.b16 %v2334
        %v2463 = vunpack.c.l.b16 %v2335
        %v2464 = vunpack.c.l.b16 %v2336
        %v2465 = vunpack.c.l.b16 %v2337
        %v2466 = vunpack.c.l.b16 %v2338
        %v2467 = vunpack.c.l.b16 %v2339
        %v2468 = vunpack.c.l.b16 %v2340
        %v2469 = vunpack.c.l.b16 %v2341
        %v2470 = vunpack.c.l.b16 %v2342
        %v2471 = vunpack.c.l.b16 %v2343
        %v2472 = vunpack.c.l.b16 %v2344
        %v2473 = vunpack.c.l.b16 %v2345
        %v2474 = vunpack.c.l.b16 %v2346
        %v2475 = vunpack.c.l.b16 %v2347
        %v2476 = vunpack.c.l.b16 %v2348
        %v2477 = vunpack.c.l.b16 %v2349
        %v2478 = vunpack.c.l.b16 %v2350
        %v2479 = vunpack.c.l.b16 %v2351
        %v2480 = vunpack.c.l.b16 %v2352
        %v2481 = vunpack.c.l.b16 %v2353
        %v2482 = vunpack.c.l.b16 %v2354
        %v2483 = vunpack.c.l.b16 %v2355
        %v2484 = vunpack.c.l.b16 %v2356
        %v2485 = vunpack.c.l.b16 %v2357
        %v2486 = vunpack.c.l.b16 %v2358
        %v2487 = vunpack.c.l.b16 %v2359
        %v2488 = vunpack.c.l.b16 %v2360
        %v2489 = vunpack.c.l.b16 %v2361
        %v2490 = vunpack.c.l.b16 %v2362
        %v2491 = vunpack.c.l.b16 %v2363
        %v2492 = vunpack.c.l.b16 %v2364
        %v2493 = vunpack.c.l.b16 %v2365
        %v2494 = vunpack.c.l.b16 %v2366
        %v2495 = vpack.c.b16 %v2432, %v2431
        %v2496 = vpack.c.b16 %v2434, %v2433
        %v2497 = vpack.c.b16 %v2436, %v2435
        %v2498 = vpack.c.b16 %v2438, %v2437
        %v2499 = vpack.c.b16 %v2440, %v2439
        %v2500 = vpack.c.b16 %v2442, %v2441
        %v2501 = vpack.c.b16 %v2444, %v2443
        %v2502 = vpack.c.b16 %v2446, %v2445
        %v2503 = vpack.c.b16 %v2448, %v2447
        %v2504 = vpack.c.b16 %v2450, %v2449
        %v2505 = vpack.c.b16 %v2452, %v2451
        %v2506 = vpack.c.b16 %v2454, %v2453
        %v2507 = vpack.c.b16 %v2456, %v2455
        %v2508 = vpack.c.b16 %v2458, %v2457
        %v2509 = vpack.c.b16 %v2460, %v2459
        %v2510 = vpack.c.b16 %v2462, %v2461
        %v2511 = vpack.c.b16 %v2464, %v2463
        %v2512 = vpack.c.b16 %v2466, %v2465
        %v2513 = vpack.c.b16 %v2468, %v2467
        %v2514 = vpack.c.b16 %v2470, %v2469
        %v2515 = vpack.c.b16 %v2472, %v2471
        %v2516 = vpack.c.b16 %v2474, %v2473
        %v2517 = vpack.c.b16 %v2476, %v2475
        %v2518 = vpack.c.b16 %v2478, %v2477
        %v2519 = vpack.c.b16 %v2480, %v2479
        %v2520 = vpack.c.b16 %v2482, %v2481
        %v2521 = vpack.c.b16 %v2484, %v2483
        %v2522 = vpack.c.b16 %v2486, %v2485
        %v2523 = vpack.c.b16 %v2488, %v2487
        %v2524 = vpack.c.b16 %v2490, %v2489
        %v2525 = vpack.c.b16 %v2492, %v2491
        %v2526 = vpack.c.b16 %v2494, %v2493
        %2559 = vmatprep.subr.bf16.mxu0 0
        %2560 = vmatpush1.bf16.msra.mxu0 %v2495
        %2561 = vmatprep.subr.bf16.mxu0 0
        %2562 = vmatpush1.bf16.msra.mxu0 %v2496
        %2563 = vmatprep.subr.bf16.mxu0 0
        %2564 = vmatpush1.bf16.msra.mxu0 %v2497
        %2565 = vmatprep.subr.bf16.mxu0 0
        %2566 = vmatpush1.bf16.msra.mxu0 %v2498
        %2567 = vmatprep.subr.bf16.mxu0 0
        %2568 = vmatpush1.bf16.msra.mxu0 %v2499
        %2569 = vmatprep.subr.bf16.mxu0 0
        %2570 = vmatpush1.bf16.msra.mxu0 %v2500
        %2571 = vmatprep.subr.bf16.mxu0 0
        %2572 = vmatpush1.bf16.msra.mxu0 %v2501
        %2573 = vmatprep.subr.bf16.mxu0 0
        %2574 = vmatpush1.bf16.msra.mxu0 %v2502
        %2575 = vmatprep.subr.bf16.mxu0 0
        %2576 = vmatpush1.bf16.msra.mxu0 %v2503
        %2577 = vmatprep.subr.bf16.mxu0 0
        %2578 = vmatpush1.bf16.msra.mxu0 %v2504
        %2579 = vmatprep.subr.bf16.mxu0 0
        %2580 = vmatpush1.bf16.msra.mxu0 %v2505
        %2581 = vmatprep.subr.bf16.mxu0 0
        %2582 = vmatpush1.bf16.msra.mxu0 %v2506
        %2583 = vmatprep.subr.bf16.mxu0 0
        %2584 = vmatpush1.bf16.msra.mxu0 %v2507
        %2585 = vmatprep.subr.bf16.mxu0 0
        %2586 = vmatpush1.bf16.msra.mxu0 %v2508
        %2587 = vmatprep.subr.bf16.mxu0 0
        %2588 = vmatpush1.bf16.msra.mxu0 %v2509
        %2589 = vmatprep.subr.bf16.mxu0 0
        %2590 = vmatpush1.bf16.msra.mxu0 %v2510
        %2591 = vmatprep.mubr.bf16.mxu0 %v1172
        %2592 = vmatmul.mubr.bf16.gmra.mrb[0].mxu0 %v510
        %v2593 = vpop.f32.mrb[0].mxu0
        %v2594 = vadd.f32 %v603, %v2593
        %v2595 = vpop.f32.mrb[0].mxu0
        %v2596 = vpop.f32.mrb[0].mxu0
        %v2597 = vadd.f32 %v603, %v2596
        %v2598 = vpop.f32.mrb[0].mxu0
        %2599 = vmatprep.mubr.bf16.mxu0 %v1173
        %2600 = vmatmul.mubr.bf16.gmra.mrb[0].mxu0 %v511
        %v2601 = vpop.f32.mrb[0].mxu0
        %v2602 = vadd.f32 %v603, %v2601
        %v2603 = vpop.f32.mrb[0].mxu0
        %v2604 = vpop.f32.mrb[0].mxu0
        %v2605 = vadd.f32 %v603, %v2604
        %v2606 = vpop.f32.mrb[0].mxu0
        %2607 = vmatprep.mubr.bf16.mxu0 %v1174
        %2608 = vmatmul.mubr.bf16.gmra.mrb[0].mxu0 %v512
        %v2609 = vpop.f32.mrb[0].mxu0
        %v2610 = vadd.f32 %v603, %v2609
        %v2611 = vpop.f32.mrb[0].mxu0
        %v2612 = vpop.f32.mrb[0].mxu0
        %v2613 = vadd.f32 %v603, %v2612
        %v2614 = vpop.f32.mrb[0].mxu0
        %2615 = vmatprep.mubr.bf16.mxu0 %v1175
        %2616 = vmatmul.mubr.bf16.gmra.mrb[0].mxu0 %v513
        %v2617 = vpop.f32.mrb[0].mxu0
        %v2618 = vadd.f32 %v603, %v2617
        %v2619 = vpop.f32.mrb[0].mxu0
        %v2620 = vpop.f32.mrb[0].mxu0
        %v2621 = vadd.f32 %v603, %v2620
        %v2622 = vpop.f32.mrb[0].mxu0
        %2623 = vmatprep.mubr.bf16.mxu0 %v1176
        %2624 = vmatmul.mubr.bf16.gmra.mrb[0].mxu0 %v514
        %v2625 = vpop.f32.mrb[0].mxu0
        %v2626 = vadd.f32 %v603, %v2625
        %v2627 = vpop.f32.mrb[0].mxu0
        %v2628 = vpop.f32.mrb[0].mxu0
        %v2629 = vadd.f32 %v603, %v2628
        %v2630 = vpop.f32.mrb[0].mxu0
        %2631 = vmatprep.mubr.bf16.mxu0 %v1177
        %2632 = vmatmul.mubr.bf16.gmra.mrb[0].mxu0 %v515
        %v2633 = vpop.f32.mrb[0].mxu0
        %v2634 = vadd.f32 %v603, %v2633
        %v2635 = vpop.f32.mrb[0].mxu0
        %v2636 = vpop.f32.mrb[0].mxu0
        %v2637 = vadd.f32 %v603, %v2636
        %v2638 = vpop.f32.mrb[0].mxu0
        %2639 = vmatprep.mubr.bf16.mxu0 %v1178
        %2640 = vmatmul.mubr.bf16.gmra.mrb[0].mxu0 %v516
        %v2641 = vpop.f32.mrb[0].mxu0
        %v2642 = vadd.f32 %v603, %v2641
        %v2643 = vpop.f32.mrb[0].mxu0
        %v2644 = vpop.f32.mrb[0].mxu0
        %v2645 = vadd.f32 %v603, %v2644
        %v2646 = vpop.f32.mrb[0].mxu0
        %2647 = vmatprep.mubr.bf16.mxu0 %v1189
        %2648 = vmatmul.mubr.bf16.gmra.mrb[0].mxu0 %v533
        %v2649 = vpop.f32.mrb[0].mxu0
        %v2650 = vadd.f32 %v603, %v2649
        %v2651 = vpop.f32.mrb[0].mxu0
        %v2652 = vpop.f32.mrb[0].mxu0
        %v2653 = vadd.f32 %v603, %v2652
        %v2654 = vpop.f32.mrb[0].mxu0
        %2655 = vdwg.mxu0
        %2656 = vmatprep.subr.bf16.mxu0 0
        %2657 = vmatpush1.bf16.msra.mxu0 %v2511
        %2658 = vmatprep.subr.bf16.mxu0 0
        %2659 = vmatpush1.bf16.msra.mxu0 %v2512
        %2660 = vmatprep.subr.bf16.mxu0 0
        %2661 = vmatpush1.bf16.msra.mxu0 %v2513
        %2662 = vmatprep.subr.bf16.mxu0 0
        %2663 = vmatpush1.bf16.msra.mxu0 %v2514
        %2664 = vmatprep.subr.bf16.mxu0 0
        %2665 = vmatpush1.bf16.msra.mxu0 %v2515
        %2666 = vmatprep.subr.bf16.mxu0 0
        %2667 = vmatpush1.bf16.msra.mxu0 %v2516
        %2668 = vmatprep.subr.bf16.mxu0 0
        %2669 = vmatpush1.bf16.msra.mxu0 %v2517
        %2670 = vmatprep.subr.bf16.mxu0 0
        %2671 = vmatpush1.bf16.msra.mxu0 %v2518
        %2672 = vmatprep.subr.bf16.mxu0 0
        %2673 = vmatpush1.bf16.msra.mxu0 %v2519
        %2674 = vmatprep.subr.bf16.mxu0 0
        %2675 = vmatpush1.bf16.msra.mxu0 %v2520
        %2676 = vmatprep.subr.bf16.mxu0 0
        %2677 = vmatpush1.bf16.msra.mxu0 %v2521
        %2678 = vmatprep.subr.bf16.mxu0 0
        %2679 = vmatpush1.bf16.msra.mxu0 %v2522
        %2680 = vmatprep.subr.bf16.mxu0 0
        %2681 = vmatpush1.bf16.msra.mxu0 %v2523
        %2682 = vmatprep.subr.bf16.mxu0 0
        %2683 = vmatpush1.bf16.msra.mxu0 %v2524
        %2684 = vmatprep.subr.bf16.mxu0 0
        %2685 = vmatpush1.bf16.msra.mxu0 %v2525
        %2686 = vmatprep.subr.bf16.mxu0 0
        %2687 = vmatpush1.bf16.msra.mxu0 %v2526
        %2688 = vmatprep.mubr.bf16.mxu0 %v1173
        %2689 = vmatmul.mubr.bf16.gmra.mrb[0].mxu0 %v511
        %v2690 = vpop.f32.mrb[0].mxu0
        %v2691 = vadd.f32 %v2594, %v2690
        %v2692 = vpop.f32.mrb[0].mxu0
        %v2693 = vpop.f32.mrb[0].mxu0
        %v2694 = vadd.f32 %v2597, %v2693
        %v2695 = vpop.f32.mrb[0].mxu0
        %2696 = vmatprep.mubr.bf16.mxu0 %v1174
        %2697 = vmatmul.mubr.bf16.gmra.mrb[0].mxu0 %v512
        %v2698 = vpop.f32.mrb[0].mxu0
        %v2699 = vadd.f32 %v2602, %v2698
        %v2700 = vpop.f32.mrb[0].mxu0
        %v2701 = vpop.f32.mrb[0].mxu0
        %v2702 = vadd.f32 %v2605, %v2701
        %v2703 = vpop.f32.mrb[0].mxu0
        %2704 = vmatprep.mubr.bf16.mxu0 %v1175
        %2705 = vmatmul.mubr.bf16.gmra.mrb[0].mxu0 %v513
        %v2706 = vpop.f32.mrb[0].mxu0
        %v2707 = vadd.f32 %v2610, %v2706
        %v2708 = vpop.f32.mrb[0].mxu0
        %v2709 = vpop.f32.mrb[0].mxu0
        %v2710 = vadd.f32 %v2613, %v2709
        %v2711 = vpop.f32.mrb[0].mxu0
        %2712 = vmatprep.mubr.bf16.mxu0 %v1176
        %2713 = vmatmul.mubr.bf16.gmra.mrb[0].mxu0 %v514
        %v2714 = vpop.f32.mrb[0].mxu0
        %v2715 = vadd.f32 %v2618, %v2714
        %v2716 = vpop.f32.mrb[0].mxu0
        %v2717 = vpop.f32.mrb[0].mxu0
        %v2718 = vadd.f32 %v2621, %v2717
        %v2719 = vpop.f32.mrb[0].mxu0
        %2720 = vmatprep.mubr.bf16.mxu0 %v1177
        %2721 = vmatmul.mubr.bf16.gmra.mrb[0].mxu0 %v515
        %v2722 = vpop.f32.mrb[0].mxu0
        %v2723 = vadd.f32 %v2626, %v2722
        %v2724 = vpop.f32.mrb[0].mxu0
        %v2725 = vpop.f32.mrb[0].mxu0
        %v2726 = vadd.f32 %v2629, %v2725
        %v2727 = vpop.f32.mrb[0].mxu0
        %2728 = vmatprep.mubr.bf16.mxu0 %v1178
        %2729 = vmatmul.mubr.bf16.gmra.mrb[0].mxu0 %v516
        %v2730 = vpop.f32.mrb[0].mxu0
        %v2731 = vadd.f32 %v2634, %v2730
        %v2732 = vpop.f32.mrb[0].mxu0
        %v2733 = vpop.f32.mrb[0].mxu0
        %v2734 = vadd.f32 %v2637, %v2733
        %v2735 = vpop.f32.mrb[0].mxu0
        %2736 = vmatprep.mubr.bf16.mxu0 %v1189
        %2737 = vmatmul.mubr.bf16.gmra.mrb[0].mxu0 %v533
        %v2738 = vpop.f32.mrb[0].mxu0
        %v2739 = vadd.f32 %v2642, %v2738
        %v2740 = vpop.f32.mrb[0].mxu0
        %v2741 = vpop.f32.mrb[0].mxu0
        %v2742 = vadd.f32 %v2645, %v2741
        %v2743 = vpop.f32.mrb[0].mxu0
        %2744 = vmatprep.mubr.bf16.mxu0 %v2300
        %2745 = vmatmul.mubr.bf16.gmra.mrb[0].mxu0 %v1755
        %v2746 = vpop.f32.mrb[0].mxu0
        %v2747 = vadd.f32 %v2650, %v2746
        %v2748 = vpop.f32.mrb[0].mxu0
        %v2749 = vpop.f32.mrb[0].mxu0
        %v2750 = vadd.f32 %v2653, %v2749
        %v2751 = vpop.f32.mrb[0].mxu0
        %2752 = vdwg.mxu0
        %v2753 = vpack.c.bf16 %v2694, %v2691
        %v2754 = vpack.c.bf16 %v2702, %v2699
        %v2755 = vpack.c.bf16 %v2710, %v2707
        %v2756 = vpack.c.bf16 %v2718, %v2715
        %v2757 = vpack.c.bf16 %v2726, %v2723
        %v2758 = vpack.c.bf16 %v2734, %v2731
        %v2759 = vpack.c.bf16 %v2742, %v2739
        %v2760 = vpack.c.bf16 %v2750, %v2747
        %v2769 = vunpack.c.l.b16 %v2753
        %v2770 = vunpack.c.h.b16 %v2753
        %v2771 = vunpack.c.l.b16 %v2754
        %v2772 = vunpack.c.h.b16 %v2754
        %v2773 = vunpack.c.l.b16 %v2755
        %v2774 = vunpack.c.h.b16 %v2755
        %v2775 = vunpack.c.l.b16 %v2756
        %v2776 = vunpack.c.h.b16 %v2756
        %v2777 = vunpack.c.l.b16 %v2757
        %v2778 = vunpack.c.h.b16 %v2757
        %v2779 = vunpack.c.l.b16 %v2758
        %v2780 = vunpack.c.h.b16 %v2758
        %v2781 = vunpack.c.l.b16 %v2759
        %v2782 = vunpack.c.h.b16 %v2759
        %v2783 = vunpack.c.l.b16 %v2760
        %v2784 = vunpack.c.h.b16 %v2760
        %v2785 = vpack.c.b16 %v2769, %v2769
        %v2786 = vpack.c.b16 %v2770, %v2770
        %v2787 = vpack.c.b16 %v2771, %v2771
        %v2788 = vpack.c.b16 %v2772, %v2772
        %v2789 = vpack.c.b16 %v2773, %v2773
        %v2790 = vpack.c.b16 %v2774, %v2774
        %v2791 = vpack.c.b16 %v2775, %v2775
        %v2792 = vpack.c.b16 %v2776, %v2776
        %v2793 = vpack.c.b16 %v2777, %v2777
        %v2794 = vpack.c.b16 %v2778, %v2778
        %v2795 = vpack.c.b16 %v2779, %v2779
        %v2796 = vpack.c.b16 %v2780, %v2780
        %v2797 = vpack.c.b16 %v2781, %v2781
        %v2798 = vpack.c.b16 %v2782, %v2782
        %v2799 = vpack.c.b16 %v2783, %v2783
        %v2800 = vpack.c.b16 %v2784, %v2784
        %s2817 = scalar_lea.vmem %s173, 192 [#allocation2]
        %2818 = vst [vmem:[%s2817] sm:$0xf] %v2785
        %2819 = vst [vmem:[%s2817 + $0x4] sm:$0xf] %v2786
        %2820 = vst [vmem:[%s2817 + $0x8] sm:$0xf] %v2787
        %2821 = vst [vmem:[%s2817 + $0xc] sm:$0xf] %v2788
        %2822 = vst [vmem:[%s2817 + $0x10] sm:$0xf] %v2789
        %2823 = vst [vmem:[%s2817 + $0x14] sm:$0xf] %v2790
        %2824 = vst [vmem:[%s2817 + $0x18] sm:$0xf] %v2791
        %2825 = vst [vmem:[%s2817 + $0x1c] sm:$0xf] %v2792
        %2826 = vst [vmem:[%s2817 + $0x20] sm:$0xf] %v2793
        %2827 = vst [vmem:[%s2817 + $0x24] sm:$0xf] %v2794
        %2828 = vst [vmem:[%s2817 + $0x28] sm:$0xf] %v2795
        %2829 = vst [vmem:[%s2817 + $0x2c] sm:$0xf] %v2796
        %2830 = vst [vmem:[%s2817 + $0x30] sm:$0xf] %v2797
        %2831 = vst [vmem:[%s2817 + $0x34] sm:$0xf] %v2798
        %2832 = vst [vmem:[%s2817 + $0x38] sm:$0xf] %v2799
        %2833 = vst [vmem:[%s2817 + $0x3c] sm:$0xf] %v2800
        %s2834 = sand.u32 %s104, 1
        %s2835 = sand.u32 %s104, 1
        %s2836 = smul.addr %s2835, 256
        %s2837 = scalar_lea.vmem [#allocation2], %s2836
        // Predicated region
        $region33: #{_upsample_conv.1} parent=31 // pred_check
          %p2838 = pneg %p114
        $region34: #{_upsample_conv.1} parent=31 // pred_check_branch
          %2840 = sbr.rel (%p2838) target = $region36
        $region35: #{_upsample_conv.1} parent=31 // pred_region
          %s2841 = smul.u32 8, %s19
          %s2842 = smul.addr %s2841, 2
          %s2843 = smul.addr %s18, 128
          %s2844 = sadd.s32 %s2842, %s2843
          %s2845 = smul.addr %s2844, 4
          %s2846 = scalar_lea.vmem %s3, %s2845
          // Predicated region
          $region37: #{_upsample_conv.1} parent=35 // pred_check
            _
          $region38: #{_upsample_conv.1} parent=35 // pred_check_branch
            %2848 = sbr.rel (0) target = $region40
          $region39: #{_upsample_conv.1} parent=35 // pred_region
            // Predicated region
            $region41: #{_upsample_conv.1} parent=39 // pred_check
              _
            $region42: #{_upsample_conv.1} parent=39 // pred_check_branch
              %2850 = sbr.rel target = $region44
            $region43: #{_upsample_conv.1} parent=39 // pred_region
              // Predicated region
              $region56: #{_upsample_conv.1} parent=43 // pred_check
                _
              $region57: #{_upsample_conv.1} parent=43 // pred_check_branch
                %2991 = sbr.rel (0) target = $region59
              $region58: #{_upsample_conv.1} parent=43 // pred_region
                loop: start=0, step=1, limit=1
                $region60: #{_upsample_conv.1} parent=58 // loop_pre_header
                  _
                $region61: #{_upsample_conv.1} parent=58 // loop_header
                  %s2993 = sphi 0, %s2997
                  %p2994 = scmp.ge.s32.totalorder %s2993, 1
                  %s2998 = sphi %s2837, %s2837
                  %s2999 = sphi %s2846, %s2846
                $region62: #{_upsample_conv.1} parent=58 // loop_header_branch
                  %2996 = sbr.rel (%p2994) target = $region66
                $region63: #{_upsample_conv.1} parent=58 // loop_body
                  _
                $region64: #{_upsample_conv.1} parent=58 // loop_footer
                  %s2997 = sadd.s32 1, %s2993
                $region65: #{_upsample_conv.1} parent=58 // loop_footer_branch
                  %2992 = sbr.rel target = $region61
                $region66: #{_upsample_conv.1} parent=58 // loop_exit
                  _
                loop: start=0, step=1, limit=1
                $region67: #{_upsample_conv.1} parent=58 // loop_pre_header
                  _
                $region68: #{_upsample_conv.1} parent=58 // loop_header
                  %s3002 = sphi 0, %s3006
                  %p3003 = scmp.ge.s32.totalorder %s3002, 1
                  %s3007 = sphi %s2837, %s2837
                  %s3008 = sphi %s2846, %s2846
                $region69: #{_upsample_conv.1} parent=58 // loop_header_branch
                  %3005 = sbr.rel (%p3003) target = $region73
                $region70: #{_upsample_conv.1} parent=58 // loop_body
                  %v3009 = vld [vmem:[%s3007] sm:$0xf]
                  %3010 = vst [vmem:[%s3008] sm:$0xf] %v3009
                  %v3011 = vld [vmem:[%s3007 + $0x4] sm:$0xf]
                  %3012 = vst [vmem:[%s3008 + $0x4] sm:$0xf] %v3011
                  %v3013 = vld [vmem:[%s3007 + $0x8] sm:$0xf]
                  %3014 = vst [vmem:[%s3008 + $0x8] sm:$0xf] %v3013
                  %v3015 = vld [vmem:[%s3007 + $0xc] sm:$0xf]
                  %3016 = vst [vmem:[%s3008 + $0xc] sm:$0xf] %v3015
                  %v3017 = vld [vmem:[%s3007 + $0x10] sm:$0xf]
                  %3018 = vst [vmem:[%s3008 + $0x10] sm:$0xf] %v3017
                  %v3019 = vld [vmem:[%s3007 + $0x14] sm:$0xf]
                  %3020 = vst [vmem:[%s3008 + $0x14] sm:$0xf] %v3019
                  %v3021 = vld [vmem:[%s3007 + $0x18] sm:$0xf]
                  %3022 = vst [vmem:[%s3008 + $0x18] sm:$0xf] %v3021
                  %v3023 = vld [vmem:[%s3007 + $0x1c] sm:$0xf]
                  %3024 = vst [vmem:[%s3008 + $0x1c] sm:$0xf] %v3023
                  %v3025 = vld [vmem:[%s3007 + $0x20] sm:$0xf]
                  %3026 = vst [vmem:[%s3008 + $0x20] sm:$0xf] %v3025
                  %v3027 = vld [vmem:[%s3007 + $0x24] sm:$0xf]
                  %3028 = vst [vmem:[%s3008 + $0x24] sm:$0xf] %v3027
                  %v3029 = vld [vmem:[%s3007 + $0x28] sm:$0xf]
                  %3030 = vst [vmem:[%s3008 + $0x28] sm:$0xf] %v3029
                  %v3031 = vld [vmem:[%s3007 + $0x2c] sm:$0xf]
                  %3032 = vst [vmem:[%s3008 + $0x2c] sm:$0xf] %v3031
                  %v3033 = vld [vmem:[%s3007 + $0x30] sm:$0xf]
                  %3034 = vst [vmem:[%s3008 + $0x30] sm:$0xf] %v3033
                  %v3035 = vld [vmem:[%s3007 + $0x34] sm:$0xf]
                  %3036 = vst [vmem:[%s3008 + $0x34] sm:$0xf] %v3035
                  %v3037 = vld [vmem:[%s3007 + $0x38] sm:$0xf]
                  %3038 = vst [vmem:[%s3008 + $0x38] sm:$0xf] %v3037
                  %v3039 = vld [vmem:[%s3007 + $0x3c] sm:$0xf]
                  %3040 = vst [vmem:[%s3008 + $0x3c] sm:$0xf] %v3039
                  %v3041 = vld [vmem:[%s3007 + $0x40] sm:$0xf]
                  %3042 = vst [vmem:[%s3008 + $0x80] sm:$0xf] %v3041
                  %v3043 = vld [vmem:[%s3007 + $0x44] sm:$0xf]
                  %3044 = vst [vmem:[%s3008 + $0x84] sm:$0xf] %v3043
                  %v3045 = vld [vmem:[%s3007 + $0x48] sm:$0xf]
                  %3046 = vst [vmem:[%s3008 + $0x88] sm:$0xf] %v3045
                  %v3047 = vld [vmem:[%s3007 + $0x4c] sm:$0xf]
                  %3048 = vst [vmem:[%s3008 + $0x8c] sm:$0xf] %v3047
                  %v3049 = vld [vmem:[%s3007 + $0x50] sm:$0xf]
                  %3050 = vst [vmem:[%s3008 + $0x90] sm:$0xf] %v3049
                  %v3051 = vld [vmem:[%s3007 + $0x54] sm:$0xf]
                  %3052 = vst [vmem:[%s3008 + $0x94] sm:$0xf] %v3051
                  %v3053 = vld [vmem:[%s3007 + $0x58] sm:$0xf]
                  %3054 = vst [vmem:[%s3008 + $0x98] sm:$0xf] %v3053
                  %v3055 = vld [vmem:[%s3007 + $0x5c] sm:$0xf]
                  %3056 = vst [vmem:[%s3008 + $0x9c] sm:$0xf] %v3055
                  %v3057 = vld [vmem:[%s3007 + $0x60] sm:$0xf]
                  %3058 = vst [vmem:[%s3008 + $0xa0] sm:$0xf] %v3057
                  %v3059 = vld [vmem:[%s3007 + $0x64] sm:$0xf]
                  %3060 = vst [vmem:[%s3008 + $0xa4] sm:$0xf] %v3059
                  %v3061 = vld [vmem:[%s3007 + $0x68] sm:$0xf]
                  %3062 = vst [vmem:[%s3008 + $0xa8] sm:$0xf] %v3061
                  %v3063 = vld [vmem:[%s3007 + $0x6c] sm:$0xf]
                  %3064 = vst [vmem:[%s3008 + $0xac] sm:$0xf] %v3063
                  %v3065 = vld [vmem:[%s3007 + $0x70] sm:$0xf]
                  %3066 = vst [vmem:[%s3008 + $0xb0] sm:$0xf] %v3065
                  %v3067 = vld [vmem:[%s3007 + $0x74] sm:$0xf]
                  %3068 = vst [vmem:[%s3008 + $0xb4] sm:$0xf] %v3067
                  %v3069 = vld [vmem:[%s3007 + $0x78] sm:$0xf]
                  %3070 = vst [vmem:[%s3008 + $0xb8] sm:$0xf] %v3069
                  %v3071 = vld [vmem:[%s3007 + $0x7c] sm:$0xf]
                  %3072 = vst [vmem:[%s3008 + $0xbc] sm:$0xf] %v3071
                  %v3073 = vld [vmem:[%s3007 + $0x80] sm:$0xf]
                  %3074 = vst [vmem:[%s3008 + $0x100] sm:$0xf] %v3073
                  %v3075 = vld [vmem:[%s3007 + $0x84] sm:$0xf]
                  %3076 = vst [vmem:[%s3008 + $0x104] sm:$0xf] %v3075
                  %v3077 = vld [vmem:[%s3007 + $0x88] sm:$0xf]
                  %3078 = vst [vmem:[%s3008 + $0x108] sm:$0xf] %v3077
                  %v3079 = vld [vmem:[%s3007 + $0x8c] sm:$0xf]
                  %3080 = vst [vmem:[%s3008 + $0x10c] sm:$0xf] %v3079
                  %v3081 = vld [vmem:[%s3007 + $0x90] sm:$0xf]
                  %3082 = vst [vmem:[%s3008 + $0x110] sm:$0xf] %v3081
                  %v3083 = vld [vmem:[%s3007 + $0x94] sm:$0xf]
                  %3084 = vst [vmem:[%s3008 + $0x114] sm:$0xf] %v3083
                  %v3085 = vld [vmem:[%s3007 + $0x98] sm:$0xf]
                  %3086 = vst [vmem:[%s3008 + $0x118] sm:$0xf] %v3085
                  %v3087 = vld [vmem:[%s3007 + $0x9c] sm:$0xf]
                  %3088 = vst [vmem:[%s3008 + $0x11c] sm:$0xf] %v3087
                  %v3089 = vld [vmem:[%s3007 + $0xa0] sm:$0xf]
                  %3090 = vst [vmem:[%s3008 + $0x120] sm:$0xf] %v3089
                  %v3091 = vld [vmem:[%s3007 + $0xa4] sm:$0xf]
                  %3092 = vst [vmem:[%s3008 + $0x124] sm:$0xf] %v3091
                  %v3093 = vld [vmem:[%s3007 + $0xa8] sm:$0xf]
                  %3094 = vst [vmem:[%s3008 + $0x128] sm:$0xf] %v3093
                  %v3095 = vld [vmem:[%s3007 + $0xac] sm:$0xf]
                  %3096 = vst [vmem:[%s3008 + $0x12c] sm:$0xf] %v3095
                  %v3097 = vld [vmem:[%s3007 + $0xb0] sm:$0xf]
                  %3098 = vst [vmem:[%s3008 + $0x130] sm:$0xf] %v3097
                  %v3099 = vld [vmem:[%s3007 + $0xb4] sm:$0xf]
                  %3100 = vst [vmem:[%s3008 + $0x134] sm:$0xf] %v3099
                  %v3101 = vld [vmem:[%s3007 + $0xb8] sm:$0xf]
                  %3102 = vst [vmem:[%s3008 + $0x138] sm:$0xf] %v3101
                  %v3103 = vld [vmem:[%s3007 + $0xbc] sm:$0xf]
                  %3104 = vst [vmem:[%s3008 + $0x13c] sm:$0xf] %v3103
                  %v3105 = vld [vmem:[%s3007 + $0xc0] sm:$0xf]
                  %3106 = vst [vmem:[%s3008 + $0x180] sm:$0xf] %v3105
                  %v3107 = vld [vmem:[%s3007 + $0xc4] sm:$0xf]
                  %3108 = vst [vmem:[%s3008 + $0x184] sm:$0xf] %v3107
                  %v3109 = vld [vmem:[%s3007 + $0xc8] sm:$0xf]
                  %3110 = vst [vmem:[%s3008 + $0x188] sm:$0xf] %v3109
                  %v3111 = vld [vmem:[%s3007 + $0xcc] sm:$0xf]
                  %3112 = vst [vmem:[%s3008 + $0x18c] sm:$0xf] %v3111
                  %v3113 = vld [vmem:[%s3007 + $0xd0] sm:$0xf]
                  %3114 = vst [vmem:[%s3008 + $0x190] sm:$0xf] %v3113
                  %v3115 = vld [vmem:[%s3007 + $0xd4] sm:$0xf]
                  %3116 = vst [vmem:[%s3008 + $0x194] sm:$0xf] %v3115
                  %v3117 = vld [vmem:[%s3007 + $0xd8] sm:$0xf]
                  %3118 = vst [vmem:[%s3008 + $0x198] sm:$0xf] %v3117
                  %v3119 = vld [vmem:[%s3007 + $0xdc] sm:$0xf]
                  %3120 = vst [vmem:[%s3008 + $0x19c] sm:$0xf] %v3119
                  %v3121 = vld [vmem:[%s3007 + $0xe0] sm:$0xf]
                  %3122 = vst [vmem:[%s3008 + $0x1a0] sm:$0xf] %v3121
                  %v3123 = vld [vmem:[%s3007 + $0xe4] sm:$0xf]
                  %3124 = vst [vmem:[%s3008 + $0x1a4] sm:$0xf] %v3123
                  %v3125 = vld [vmem:[%s3007 + $0xe8] sm:$0xf]
                  %3126 = vst [vmem:[%s3008 + $0x1a8] sm:$0xf] %v3125
                  %v3127 = vld [vmem:[%s3007 + $0xec] sm:$0xf]
                  %3128 = vst [vmem:[%s3008 + $0x1ac] sm:$0xf] %v3127
                  %v3129 = vld [vmem:[%s3007 + $0xf0] sm:$0xf]
                  %3130 = vst [vmem:[%s3008 + $0x1b0] sm:$0xf] %v3129
                  %v3131 = vld [vmem:[%s3007 + $0xf4] sm:$0xf]
                  %3132 = vst [vmem:[%s3008 + $0x1b4] sm:$0xf] %v3131
                  %v3133 = vld [vmem:[%s3007 + $0xf8] sm:$0xf]
                  %3134 = vst [vmem:[%s3008 + $0x1b8] sm:$0xf] %v3133
                  %v3135 = vld [vmem:[%s3007 + $0xfc] sm:$0xf]
                  %3136 = vst [vmem:[%s3008 + $0x1bc] sm:$0xf] %v3135
                $region71: #{_upsample_conv.1} parent=58 // loop_footer
                  %s3006 = sadd.s32 1, %s3002
                $region72: #{_upsample_conv.1} parent=58 // loop_footer_branch
                  %3001 = sbr.rel target = $region68
                $region73: #{_upsample_conv.1} parent=58 // loop_exit
                  _
              $region59: #{_upsample_conv.1} parent=43 // pred_fallthru
                _
            $region44: #{_upsample_conv.1} parent=39 // pred_fallthru
              _
            // Predicated region
            $region45: #{_upsample_conv.1} parent=39 // pred_check
              _
            $region46: #{_upsample_conv.1} parent=39 // pred_check_branch
              %2852 = sbr.rel (0) target = $region48
            $region47: #{_upsample_conv.1} parent=39 // pred_region
              loop: start=0, step=1, limit=1
              $region49: #{_upsample_conv.1} parent=47 // loop_pre_header
                _
              $region50: #{_upsample_conv.1} parent=47 // loop_header
                %s2855 = sphi 0, %s2859
                %p2856 = scmp.ge.s32.totalorder %s2855, 1
                %s2860 = sphi %s2837, %s2837
                %s2861 = sphi %s2846, %s2846
              $region51: #{_upsample_conv.1} parent=47 // loop_header_branch
                %2858 = sbr.rel (%p2856) target = $region55
              $region52: #{_upsample_conv.1} parent=47 // loop_body
                %v2862 = vld [vmem:[%s2860] sm:$0xf]
                %2863 = vst [vmem:[%s2861] sm:$0xf] %v2862
                %v2864 = vld [vmem:[%s2860 + $0x4] sm:$0xf]
                %2865 = vst [vmem:[%s2861 + $0x4] sm:$0xf] %v2864
                %v2866 = vld [vmem:[%s2860 + $0x8] sm:$0xf]
                %2867 = vst [vmem:[%s2861 + $0x8] sm:$0xf] %v2866
                %v2868 = vld [vmem:[%s2860 + $0xc] sm:$0xf]
                %2869 = vst [vmem:[%s2861 + $0xc] sm:$0xf] %v2868
                %v2870 = vld [vmem:[%s2860 + $0x10] sm:$0xf]
                %2871 = vst [vmem:[%s2861 + $0x10] sm:$0xf] %v2870
                %v2872 = vld [vmem:[%s2860 + $0x14] sm:$0xf]
                %2873 = vst [vmem:[%s2861 + $0x14] sm:$0xf] %v2872
                %v2874 = vld [vmem:[%s2860 + $0x18] sm:$0xf]
                %2875 = vst [vmem:[%s2861 + $0x18] sm:$0xf] %v2874
                %v2876 = vld [vmem:[%s2860 + $0x1c] sm:$0xf]
                %2877 = vst [vmem:[%s2861 + $0x1c] sm:$0xf] %v2876
                %v2878 = vld [vmem:[%s2860 + $0x20] sm:$0xf]
                %2879 = vst [vmem:[%s2861 + $0x20] sm:$0xf] %v2878
                %v2880 = vld [vmem:[%s2860 + $0x24] sm:$0xf]
                %2881 = vst [vmem:[%s2861 + $0x24] sm:$0xf] %v2880
                %v2882 = vld [vmem:[%s2860 + $0x28] sm:$0xf]
                %2883 = vst [vmem:[%s2861 + $0x28] sm:$0xf] %v2882
                %v2884 = vld [vmem:[%s2860 + $0x2c] sm:$0xf]
                %2885 = vst [vmem:[%s2861 + $0x2c] sm:$0xf] %v2884
                %v2886 = vld [vmem:[%s2860 + $0x30] sm:$0xf]
                %2887 = vst [vmem:[%s2861 + $0x30] sm:$0xf] %v2886
                %v2888 = vld [vmem:[%s2860 + $0x34] sm:$0xf]
                %2889 = vst [vmem:[%s2861 + $0x34] sm:$0xf] %v2888
                %v2890 = vld [vmem:[%s2860 + $0x38] sm:$0xf]
                %2891 = vst [vmem:[%s2861 + $0x38] sm:$0xf] %v2890
                %v2892 = vld [vmem:[%s2860 + $0x3c] sm:$0xf]
                %2893 = vst [vmem:[%s2861 + $0x3c] sm:$0xf] %v2892
                %v2894 = vld [vmem:[%s2860 + $0x40] sm:$0xf]
                %2895 = vst [vmem:[%s2861 + $0x80] sm:$0xf] %v2894
                %v2896 = vld [vmem:[%s2860 + $0x44] sm:$0xf]
                %2897 = vst [vmem:[%s2861 + $0x84] sm:$0xf] %v2896
                %v2898 = vld [vmem:[%s2860 + $0x48] sm:$0xf]
                %2899 = vst [vmem:[%s2861 + $0x88] sm:$0xf] %v2898
                %v2900 = vld [vmem:[%s2860 + $0x4c] sm:$0xf]
                %2901 = vst [vmem:[%s2861 + $0x8c] sm:$0xf] %v2900
                %v2902 = vld [vmem:[%s2860 + $0x50] sm:$0xf]
                %2903 = vst [vmem:[%s2861 + $0x90] sm:$0xf] %v2902
                %v2904 = vld [vmem:[%s2860 + $0x54] sm:$0xf]
                %2905 = vst [vmem:[%s2861 + $0x94] sm:$0xf] %v2904
                %v2906 = vld [vmem:[%s2860 + $0x58] sm:$0xf]
                %2907 = vst [vmem:[%s2861 + $0x98] sm:$0xf] %v2906
                %v2908 = vld [vmem:[%s2860 + $0x5c] sm:$0xf]
                %2909 = vst [vmem:[%s2861 + $0x9c] sm:$0xf] %v2908
                %v2910 = vld [vmem:[%s2860 + $0x60] sm:$0xf]
                %2911 = vst [vmem:[%s2861 + $0xa0] sm:$0xf] %v2910
                %v2912 = vld [vmem:[%s2860 + $0x64] sm:$0xf]
                %2913 = vst [vmem:[%s2861 + $0xa4] sm:$0xf] %v2912
                %v2914 = vld [vmem:[%s2860 + $0x68] sm:$0xf]
                %2915 = vst [vmem:[%s2861 + $0xa8] sm:$0xf] %v2914
                %v2916 = vld [vmem:[%s2860 + $0x6c] sm:$0xf]
                %2917 = vst [vmem:[%s2861 + $0xac] sm:$0xf] %v2916
                %v2918 = vld [vmem:[%s2860 + $0x70] sm:$0xf]
                %2919 = vst [vmem:[%s2861 + $0xb0] sm:$0xf] %v2918
                %v2920 = vld [vmem:[%s2860 + $0x74] sm:$0xf]
                %2921 = vst [vmem:[%s2861 + $0xb4] sm:$0xf] %v2920
                %v2922 = vld [vmem:[%s2860 + $0x78] sm:$0xf]
                %2923 = vst [vmem:[%s2861 + $0xb8] sm:$0xf] %v2922
                %v2924 = vld [vmem:[%s2860 + $0x7c] sm:$0xf]
                %2925 = vst [vmem:[%s2861 + $0xbc] sm:$0xf] %v2924
                %v2926 = vld [vmem:[%s2860 + $0x80] sm:$0xf]
                %2927 = vst [vmem:[%s2861 + $0x100] sm:$0xf] %v2926
                %v2928 = vld [vmem:[%s2860 + $0x84] sm:$0xf]
                %2929 = vst [vmem:[%s2861 + $0x104] sm:$0xf] %v2928
                %v2930 = vld [vmem:[%s2860 + $0x88] sm:$0xf]
                %2931 = vst [vmem:[%s2861 + $0x108] sm:$0xf] %v2930
                %v2932 = vld [vmem:[%s2860 + $0x8c] sm:$0xf]
                %2933 = vst [vmem:[%s2861 + $0x10c] sm:$0xf] %v2932
                %v2934 = vld [vmem:[%s2860 + $0x90] sm:$0xf]
                %2935 = vst [vmem:[%s2861 + $0x110] sm:$0xf] %v2934
                %v2936 = vld [vmem:[%s2860 + $0x94] sm:$0xf]
                %2937 = vst [vmem:[%s2861 + $0x114] sm:$0xf] %v2936
                %v2938 = vld [vmem:[%s2860 + $0x98] sm:$0xf]
                %2939 = vst [vmem:[%s2861 + $0x118] sm:$0xf] %v2938
                %v2940 = vld [vmem:[%s2860 + $0x9c] sm:$0xf]
                %2941 = vst [vmem:[%s2861 + $0x11c] sm:$0xf] %v2940
                %v2942 = vld [vmem:[%s2860 + $0xa0] sm:$0xf]
                %2943 = vst [vmem:[%s2861 + $0x120] sm:$0xf] %v2942
                %v2944 = vld [vmem:[%s2860 + $0xa4] sm:$0xf]
                %2945 = vst [vmem:[%s2861 + $0x124] sm:$0xf] %v2944
                %v2946 = vld [vmem:[%s2860 + $0xa8] sm:$0xf]
                %2947 = vst [vmem:[%s2861 + $0x128] sm:$0xf] %v2946
                %v2948 = vld [vmem:[%s2860 + $0xac] sm:$0xf]
                %2949 = vst [vmem:[%s2861 + $0x12c] sm:$0xf] %v2948
                %v2950 = vld [vmem:[%s2860 + $0xb0] sm:$0xf]
                %2951 = vst [vmem:[%s2861 + $0x130] sm:$0xf] %v2950
                %v2952 = vld [vmem:[%s2860 + $0xb4] sm:$0xf]
                %2953 = vst [vmem:[%s2861 + $0x134] sm:$0xf] %v2952
                %v2954 = vld [vmem:[%s2860 + $0xb8] sm:$0xf]
                %2955 = vst [vmem:[%s2861 + $0x138] sm:$0xf] %v2954
                %v2956 = vld [vmem:[%s2860 + $0xbc] sm:$0xf]
                %2957 = vst [vmem:[%s2861 + $0x13c] sm:$0xf] %v2956
                %v2958 = vld [vmem:[%s2860 + $0xc0] sm:$0xf]
                %2959 = vst [vmem:[%s2861 + $0x180] sm:$0xf] %v2958
                %v2960 = vld [vmem:[%s2860 + $0xc4] sm:$0xf]
                %2961 = vst [vmem:[%s2861 + $0x184] sm:$0xf] %v2960
                %v2962 = vld [vmem:[%s2860 + $0xc8] sm:$0xf]
                %2963 = vst [vmem:[%s2861 + $0x188] sm:$0xf] %v2962
                %v2964 = vld [vmem:[%s2860 + $0xcc] sm:$0xf]
                %2965 = vst [vmem:[%s2861 + $0x18c] sm:$0xf] %v2964
                %v2966 = vld [vmem:[%s2860 + $0xd0] sm:$0xf]
                %2967 = vst [vmem:[%s2861 + $0x190] sm:$0xf] %v2966
                %v2968 = vld [vmem:[%s2860 + $0xd4] sm:$0xf]
                %2969 = vst [vmem:[%s2861 + $0x194] sm:$0xf] %v2968
                %v2970 = vld [vmem:[%s2860 + $0xd8] sm:$0xf]
                %2971 = vst [vmem:[%s2861 + $0x198] sm:$0xf] %v2970
                %v2972 = vld [vmem:[%s2860 + $0xdc] sm:$0xf]
                %2973 = vst [vmem:[%s2861 + $0x19c] sm:$0xf] %v2972
                %v2974 = vld [vmem:[%s2860 + $0xe0] sm:$0xf]
                %2975 = vst [vmem:[%s2861 + $0x1a0] sm:$0xf] %v2974
                %v2976 = vld [vmem:[%s2860 + $0xe4] sm:$0xf]
                %2977 = vst [vmem:[%s2861 + $0x1a4] sm:$0xf] %v2976
                %v2978 = vld [vmem:[%s2860 + $0xe8] sm:$0xf]
                %2979 = vst [vmem:[%s2861 + $0x1a8] sm:$0xf] %v2978
                %v2980 = vld [vmem:[%s2860 + $0xec] sm:$0xf]
                %2981 = vst [vmem:[%s2861 + $0x1ac] sm:$0xf] %v2980
                %v2982 = vld [vmem:[%s2860 + $0xf0] sm:$0xf]
                %2983 = vst [vmem:[%s2861 + $0x1b0] sm:$0xf] %v2982
                %v2984 = vld [vmem:[%s2860 + $0xf4] sm:$0xf]
                %2985 = vst [vmem:[%s2861 + $0x1b4] sm:$0xf] %v2984
                %v2986 = vld [vmem:[%s2860 + $0xf8] sm:$0xf]
                %2987 = vst [vmem:[%s2861 + $0x1b8] sm:$0xf] %v2986
                %v2988 = vld [vmem:[%s2860 + $0xfc] sm:$0xf]
                %2989 = vst [vmem:[%s2861 + $0x1bc] sm:$0xf] %v2988
              $region53: #{_upsample_conv.1} parent=47 // loop_footer
                %s2859 = sadd.s32 1, %s2855
              $region54: #{_upsample_conv.1} parent=47 // loop_footer_branch
                %2854 = sbr.rel target = $region50
              $region55: #{_upsample_conv.1} parent=47 // loop_exit
                _
            $region48: #{_upsample_conv.1} parent=39 // pred_fallthru
              _
          $region40: #{_upsample_conv.1} parent=35 // pred_fallthru
            _
          %3137 = vnop
        $region36: #{_upsample_conv.1} parent=31 // pred_fallthru
          _
      $region32: #{_upsample_conv.1} parent=5 // pred_fallthru
        _
      %p3138 = scmp.le.s32.totalorder 2, %s9
      // Predicated region
      $region74: #{_upsample_conv.1} parent=5 // pred_check
        %p3139 = pneg %p3138
      $region75: #{_upsample_conv.1} parent=5 // pred_check_branch
        %3141 = sbr.rel (%p3139) target = $region77
      $region76: #{_upsample_conv.1} parent=5 // pred_region
        %s3142 = ssub.s32 %s9, 2
        // Predicated region
        $region78: #{_upsample_conv.1} parent=76 // pred_check
          %p3143 = pneg %p120
        $region79: #{_upsample_conv.1} parent=76 // pred_check_branch
          %3145 = sbr.rel (%p3143) target = $region81
        $region80: #{_upsample_conv.1} parent=76 // pred_region
          %s3146 = sand.u32 %s105, 1
          %s3147 = sand.u32 %s105, 1
          %s3148 = smul.addr %s3147, 256
          %s3149 = scalar_lea.vmem [#allocation2], %s3148
        $region81: #{_upsample_conv.1} parent=76 // pred_fallthru
          _
      $region77: #{_upsample_conv.1} parent=5 // pred_fallthru
        _
    $region6: #{_upsample_conv.1} parent=1 // loop_footer
      %s13 = sadd.s32 1, %s9
    $region7: #{_upsample_conv.1} parent=1 // loop_footer_branch
      %8 = sbr.rel target = $region3
    $region8: #{_upsample_conv.1} parent=1 // loop_exit
      _

// kernel: _upsample_conv.1
$region0: #{_upsample_conv.1}
  #allocation0 [shape = 'u32[]', space=smem, size = 0x4, offset = 0x4, fixed_abs, tag = 'smem constant byte address 0x4 - core index']
  #allocation1 [shape = 'u32[144,128]{1,0:T(1,128)}', space=vmem, size = 0x12000, scoped, tag = 'internal scratch']
  %s0 = inlined_call_operand.vmem [shape: bf16[2,18,18,128], index: 0, kind: input, shape index: {}]
  %s1 = inlined_call_operand.vmem [shape: bf16[4,512,128], index: 1, kind: input, shape index: {}]
  %s2 = inlined_call_operand.vmem [shape: f32[1,128], index: 2, kind: input, shape index: {}]
  %s3 = inlined_call_operand.vmem [shape: bf16[2,4,16,16,128], index: 3, kind: output, shape index: {}]
  %s4 = sld [smem:[#allocation0]]
  $region82: #{_upsample_conv.1} parent=0
    _
  %s6 = ssub.s32 1, %s4
  %s7 = scalar_select 0, %s6, %s4
  $region1: #{_upsample_conv.1} parent=0
    #allocation2 [shape = 'u8[262144]{0}', space=vmem, size = 0x40000, scoped, tag = 'output window, operand 0']
    loop: start=0, step=1, limit=6
    $region2: #{_upsample_conv.1} parent=1 // loop_pre_header
      _
    $region3: #{_upsample_conv.1} parent=1 // loop_header
      %s9 = sphi 0, %s13
      %p10 = scmp.ge.s32.totalorder %s9, 6
      %s16 = sphi 0, %s28
      %s17 = sphi 0, %s24
      %s18 = sphi 0, %s16
      %s19 = sphi 0, %s17
      %s20 = sphi 0, %s18
      %s21 = sphi 0, %s19
      %s31 = sphi 0, %s33
      %s34 = sphi 0, %s31
      %s35 = sphi 0, %s34
      %s51 = sphi 0, %s35
      %s55 = sphi 0, %s55
      %s57 = sphi 0, %s55
      %s58 = sphi 0, %s57
      %s72 = sphi 0, %s58
      %s76 = sphi 0, %s76
      %s78 = sphi 0, %s76
      %s79 = sphi 0, %s78
      %s93 = sphi 0, %s79
      %s101 = sphi 0, %s103
      %s104 = sphi 0, %s101
      %s105 = sphi 0, %s104
      %s121 = sphi 0, %s105
    $region4: #{_upsample_conv.1} parent=1 // loop_header_branch
      %12 = sbr.rel (%p10) target = $region8
    $region5: #{_upsample_conv.1} parent=1 // loop_body
      %s14 = ssub.s32 %s9, 1
      %s15 = ssub.s32 %s9, 2
      %s22 = sadd.s32 1, %s17
      %p23 = scmp.ge.s32.totalorder %s22, 2
      %s24 = scalar_select %p23, 0, %s22
      %s25 = sadd.s32 1, %s16
      %s26 = scalar_select %p23, %s25, %s16
      %p27 = scmp.ge.s32.totalorder %s26, 2
      %s28 = scalar_select %p27, 0, %s26
      %s29 = ssub.s32 %s16, %s28
      %p30 = scmp.eq.s32.totalorder %s29, 0
      %s32 = sadd.s32 %s31, 1
      %s33 = scalar_select %p30, %s31, %s32
      %p36 = pneg %p30
      %p37 = scmp.eq.s32.totalorder %s9, 3
      %p38 = por %p36, %p37
      %p39 = scmp.ne.s32.totalorder %s31, %s34
      %p40 = scmp.eq.s32.totalorder %s9, 0
      %p41 = por %p39, %p40
      %p42 = scmp.ne.s32.totalorder %s31, %s34
      %p43 = scmp.eq.s32.totalorder %s14, 3
      %p44 = por %p42, %p43
      %p45 = scmp.ne.s32.totalorder %s34, %s35
      %p46 = scmp.eq.s32.totalorder %s14, 0
      %p47 = por %p45, %p46
      %p48 = scmp.ne.s32.totalorder %s34, %s35
      %p49 = scmp.eq.s32.totalorder %s15, 3
      %p50 = por %p48, %p49
      %p52 = scmp.ne.s32.totalorder %s35, %s51
      %p53 = scmp.eq.s32.totalorder %s15, 0
      %p54 = por %p52, %p53
      %s56 = sadd.s32 %s55, 1
      %p59 = scmp.eq.s32.totalorder %s9, 3
      %p60 = scmp.ne.s32.totalorder %s55, %s57
      %p61 = scmp.eq.s32.totalorder %s9, 0
      %p62 = por %p60, %p61
      %p63 = scmp.ne.s32.totalorder %s55, %s57
      %p64 = scmp.eq.s32.totalorder %s14, 3
      %p65 = por %p63, %p64
      %p66 = scmp.ne.s32.totalorder %s57, %s58
      %p67 = scmp.eq.s32.totalorder %s14, 0
      %p68 = por %p66, %p67
      %p69 = scmp.ne.s32.totalorder %s57, %s58
      %p70 = scmp.eq.s32.totalorder %s15, 3
      %p71 = por %p69, %p70
      %p73 = scmp.ne.s32.totalorder %s58, %s72
      %p74 = scmp.eq.s32.totalorder %s15, 0
      %p75 = por %p73, %p74
      %s77 = sadd.s32 %s76, 1
      %p80 = scmp.eq.s32.totalorder %s9, 3
      %p81 = scmp.ne.s32.totalorder %s76, %s78
      %p82 = scmp.eq.s32.totalorder %s9, 0
      %p83 = por %p81, %p82
      %p84 = scmp.ne.s32.totalorder %s76, %s78
      %p85 = scmp.eq.s32.totalorder %s14, 3
      %p86 = por %p84, %p85
      %p87 = scmp.ne.s32.totalorder %s78, %s79
      %p88 = scmp.eq.s32.totalorder %s14, 0
      %p89 = por %p87, %p88
      %p90 = scmp.ne.s32.totalorder %s78, %s79
      %p91 = scmp.eq.s32.totalorder %s15, 3
      %p92 = por %p90, %p91
      %p94 = scmp.ne.s32.totalorder %s79, %s93
      %p95 = scmp.eq.s32.totalorder %s15, 0
      %p96 = por %p94, %p95
      %s97 = ssub.s32 %s16, %s28
      %s98 = ssub.s32 %s17, %s24
      %s99 = sor.u32 %s97, %s98
      %p100 = scmp.eq.s32.totalorder %s99, 0
      %s102 = sadd.s32 %s101, 1
      %s103 = scalar_select %p100, %s101, %s102
      %p106 = pneg %p100
      %p107 = scmp.eq.s32.totalorder %s9, 3
      %p108 = por %p106, %p107
      %p109 = scmp.ne.s32.totalorder %s101, %s104
      %p110 = scmp.eq.s32.totalorder %s9, 0
      %p111 = por %p109, %p110
      %p112 = scmp.ne.s32.totalorder %s101, %s104
      %p113 = scmp.eq.s32.totalorder %s14, 3
      %p114 = por %p112, %p113
      %p115 = scmp.ne.s32.totalorder %s104, %s105
      %p116 = scmp.eq.s32.totalorder %s14, 0
      %p117 = por %p115, %p116
      %p118 = scmp.ne.s32.totalorder %s104, %s105
      %p119 = scmp.eq.s32.totalorder %s15, 3
      %p120 = por %p118, %p119
      %p122 = scmp.ne.s32.totalorder %s105, %s121
      %p123 = scmp.eq.s32.totalorder %s15, 0
      %p124 = por %p122, %p123
      %p125 = scmp.le.s32.totalorder 1, %s9
      %p126 = scmp.lt.s32.totalorder %s9, 5
      %p127 = pnand %p125, %p126
      %p128 = pneg %p127
      // Predicated region
      $region9: #{_upsample_conv.1} parent=5 // pred_check
        _
      $region10: #{_upsample_conv.1} parent=5 // pred_check_branch
        %130 = sbr.rel (%p127) target = $region12
      $region11: #{_upsample_conv.1} parent=5 // pred_region
        %s131 = ssub.s32 %s9, 1
        // Predicated region
        $region13: #{_upsample_conv.1} parent=11 // pred_check
          %p132 = pneg %p68
        $region14: #{_upsample_conv.1} parent=11 // pred_check_branch
          %134 = sbr.rel (%p132) target = $region16
        $region15: #{_upsample_conv.1} parent=11 // pred_region
          _
        $region16: #{_upsample_conv.1} parent=11 // pred_fallthru
          _
        // Predicated region
        $region17: #{_upsample_conv.1} parent=11 // pred_check
          %p135 = pneg %p89
        $region18: #{_upsample_conv.1} parent=11 // pred_check_branch
          %137 = sbr.rel (%p135) target = $region20
        $region19: #{_upsample_conv.1} parent=11 // pred_region
          _
        $region20: #{_upsample_conv.1} parent=11 // pred_fallthru
          _
      $region12: #{_upsample_conv.1} parent=5 // pred_fallthru
        _
      %p138 = scmp.lt.s32.totalorder %s9, 4
      // Predicated region
      $region21: #{_upsample_conv.1} parent=5 // pred_check
        %p139 = pneg %p138
      $region22: #{_upsample_conv.1} parent=5 // pred_check_branch
        %141 = sbr.rel (%p139) target = $region24
      $region23: #{_upsample_conv.1} parent=5 // pred_region
        // Predicated region
        $region25: #{_upsample_conv.1} parent=23 // pred_check
          %p142 = pneg %p41
        $region26: #{_upsample_conv.1} parent=23 // pred_check_branch
          %144 = sbr.rel (%p142) target = $region28
        $region27: #{_upsample_conv.1} parent=23 // pred_region
          %p145 = scmp.lt.s32.totalorder %s16, 1
          %s146 = scalar_select %p145, %s16, 1
          %s147 = smul.addr %s146, 54
          %s148 = smul.addr %s147, 4
          %s149 = scalar_lea.vmem %s0, %s148
        $region28: #{_upsample_conv.1} parent=23 // pred_fallthru
          _
      $region24: #{_upsample_conv.1} parent=5 // pred_fallthru
        _
      %p150 = scmp.le.s32.totalorder 1, %s9
      %p151 = scmp.lt.s32.totalorder %s9, 5
      %p152 = pnand %p150, %p151
      %p153 = pneg %p152
      // Predicated region
      $region29: #{_upsample_conv.1} parent=5 // pred_check
        _
      $region30: #{_upsample_conv.1} parent=5 // pred_check_branch
        %155 = sbr.rel (%p152) target = $region32
      $region31: #{_upsample_conv.1} parent=5 // pred_region
        %s156 = ssub.s32 %s9, 1
        %p157 = scmp.lt.s32.totalorder %s18, 1
        %s158 = scalar_select %p157, %s18, 1
        %s159 = smul.addr %s158, 54
        %s160 = smul.addr %s159, 4
        %s161 = scalar_lea.vmem %s0, %s160
        %p162 = pneg %p47
        %p163 = pneg %p44
        %p164 = pneg %p68
        %p165 = pneg %p65
        %p166 = pneg %p89
        %p167 = pneg %p86
        %p168 = pneg %p117
        %p169 = pneg %p114
        %s170 = sand.u32 %s104, 1
        %s171 = sand.u32 %s104, 1
        %s172 = smul.addr %s171, 256
        %s173 = scalar_lea.vmem [#allocation2], %s172
        %p174 = scmp.lt.s32.totalorder %s18, 1
        %s175 = scalar_select %p174, %s18, 1
        %s176 = smul.addr %s175, 54
        %s177 = smul.addr %s176, 4
        %s178 = scalar_lea.vmem %s0, %s177
        %s179 = smul.u32 8, %s19
        %s181 = smul.u32 %s19, 8
        %s182 = smul.u32 %s181, 3
        %s183 = smul.addr %s182, 4
        %s184 = scalar_lea.vmem %s178, %s183
        %v185 = vld [vmem:[%s184] sm:$0xf]
        %v186 = vld [vmem:[%s184 + $0x4] sm:$0xf]
        %v187 = vld [vmem:[%s184 + $0xc] sm:$0xf]
        %v188 = vld [vmem:[%s184 + $0x10] sm:$0xf]
        %v189 = vld [vmem:[%s184 + $0x18] sm:$0xf]
        %v190 = vld [vmem:[%s184 + $0x1c] sm:$0xf]
        %v191 = vld [vmem:[%s184 + $0x24] sm:$0xf]
        %v192 = vld [vmem:[%s184 + $0x28] sm:$0xf]
        %v193 = vld [vmem:[%s184 + $0x30] sm:$0xf]
        %v194 = vld [vmem:[%s184 + $0x34] sm:$0xf]
        %v195 = vld [vmem:[%s184 + $0x3c] sm:$0xf]
        %v196 = vld [vmem:[%s184 + $0x40] sm:$0xf]
        %v197 = vld [vmem:[%s184 + $0x48] sm:$0xf]
        %v198 = vld [vmem:[%s184 + $0x4c] sm:$0xf]
        %v199 = vld [vmem:[%s184 + $0x54] sm:$0xf]
        %v200 = vld [vmem:[%s184 + $0x58] sm:$0xf]
        %v201 = vld [vmem:[%s184 + $0x60] sm:$0xf]
        %v202 = vld [vmem:[%s184 + $0x64] sm:$0xf]
        %v203 = vld [vmem:[%s184 + $0x6c] sm:$0xf]
        %v204 = vld [vmem:[%s184 + $0x70] sm:$0xf]
        %v205 = vld [vmem:[%s184 + $0x8] sm:$0x1]
        %v206 = vld [vmem:[%s184 + $0x14] sm:$0x1]
        %v207 = vld [vmem:[%s184 + $0x20] sm:$0x1]
        %v208 = vld [vmem:[%s184 + $0x2c] sm:$0x1]
        %v209 = vld [vmem:[%s184 + $0x38] sm:$0x1]
        %v210 = vld [vmem:[%s184 + $0x44] sm:$0x1]
        %v211 = vld [vmem:[%s184 + $0x50] sm:$0x1]
        %v212 = vld [vmem:[%s184 + $0x5c] sm:$0x1]
        %v213 = vld [vmem:[%s184 + $0x68] sm:$0x1]
        %v214 = vld [vmem:[%s184 + $0x74] sm:$0x1]
        %v215 = vld [vmem:[%s184] sm:$0xe]
        %v216 = vld [vmem:[%s184 + $0xc] sm:$0xe]
        %v217 = vld [vmem:[%s184 + $0x18] sm:$0xe]
        %v218 = vld [vmem:[%s184 + $0x24] sm:$0xe]
        %v219 = vld [vmem:[%s184 + $0x30] sm:$0xe]
        %v220 = vld [vmem:[%s184 + $0x3c] sm:$0xe]
        %v221 = vld [vmem:[%s184 + $0x48] sm:$0xe]
        %v222 = vld [vmem:[%s184 + $0x54] sm:$0xe]
        %v223 = vld [vmem:[%s184 + $0x60] sm:$0xe]
        %v224 = vld [vmem:[%s184 + $0x6c] sm:$0xe]
        %v225 = vld [vmem:[%s2] sm:$0x1]
        %vm226 = vsmask.f32 3328
        %vm227 = vsmask.f32 7440
        %vm228 = vmor %vm226, %vm227
        %v230 = vshrl.u32 %v185, 16
        %v232 = vrot.slane %v230, 4
        %v233 = vshll.u32 %v185, 16
        %v235 = vrot.slane %v233, 5
        %v236 = vor.u32 %v232, %v235
        %v237 = vrot.slane %v236, 4
        %v239 = vshll.u32 %v186, 16
        %v241 = vrot.slane %v239, 5
        %v242 = vsel %vm228, %v237, %v241
        %v243 = vshrl.u32 %v186, 16
        %v245 = vrot.slane %v243, 4
        %v246 = vor.u32 %v245, %v241
        %v247 = vrot.slane %v246, 4
        %v249 = vshll.u32 %v205, 16
        %v251 = vrot.slane %v249, 5
        %v252 = vsel %vm228, %v247, %v251
        %v254 = vshrl.u32 %v187, 16
        %v256 = vrot.slane %v254, 4
        %v257 = vshll.u32 %v187, 16
        %v259 = vrot.slane %v257, 5
        %v260 = vor.u32 %v256, %v259
        %v261 = vrot.slane %v260, 4
        %v263 = vshll.u32 %v188, 16
        %v265 = vrot.slane %v263, 5
        %v266 = vsel %vm228, %v261, %v265
        %v267 = vshrl.u32 %v188, 16
        %v269 = vrot.slane %v267, 4
        %v270 = vor.u32 %v269, %v265
        %v271 = vrot.slane %v270, 4
        %v273 = vshll.u32 %v206, 16
        %v275 = vrot.slane %v273, 5
        %v276 = vsel %vm228, %v271, %v275
        %v278 = vshrl.u32 %v189, 16
        %v280 = vrot.slane %v278, 4
        %v281 = vshll.u32 %v189, 16
        %v283 = vrot.slane %v281, 5
        %v284 = vor.u32 %v280, %v283
        %v285 = vrot.slane %v284, 4
        %v287 = vshll.u32 %v190, 16
        %v289 = vrot.slane %v287, 5
        %v290 = vsel %vm228, %v285, %v289
        %v291 = vshrl.u32 %v190, 16
        %v293 = vrot.slane %v291, 4
        %v294 = vor.u32 %v293, %v289
        %v295 = vrot.slane %v294, 4
        %v297 = vshll.u32 %v207, 16
        %v299 = vrot.slane %v297, 5
        %v300 = vsel %vm228, %v295, %v299
        %v302 = vshrl.u32 %v191, 16
        %v304 = vrot.slane %v302, 4
        %v305 = vshll.u32 %v191, 16
        %v307 = vrot.slane %v305, 5
        %v308 = vor.u32 %v304, %v307
        %v309 = vrot.slane %v308, 4
        %v311 = vshll.u32 %v192, 16
        %v313 = vrot.slane %v311, 5
        %v314 = vsel %vm228, %v309, %v313
        %v315 = vshrl.u32 %v192, 16
        %v317 = vrot.slane %v315, 4
        %v318 = vor.u32 %v317, %v313
        %v319 = vrot.slane %v318, 4
        %v321 = vshll.u32 %v208, 16
        %v323 = vrot.slane %v321, 5
        %v324 = vsel %vm228, %v319, %v323
        %v326 = vshrl.u32 %v193, 16
        %v328 = vrot.slane %v326, 4
        %v329 = vshll.u32 %v193, 16
        %v331 = vrot.slane %v329, 5
        %v332 = vor.u32 %v328, %v331
        %v333 = vrot.slane %v332, 4
        %v335 = vshll.u32 %v194, 16
        %v337 = vrot.slane %v335, 5
        %v338 = vsel %vm228, %v333, %v337
        %v339 = vshrl.u32 %v194, 16
        %v341 = vrot.slane %v339, 4
        %v342 = vor.u32 %v341, %v337
        %v343 = vrot.slane %v342, 4
        %v345 = vshll.u32 %v209, 16
        %v347 = vrot.slane %v345, 5
        %v348 = vsel %vm228, %v343, %v347
        %v350 = vshrl.u32 %v195, 16
        %v352 = vrot.slane %v350, 4
        %v353 = vshll.u32 %v195, 16
        %v355 = vrot.slane %v353, 5
        %v356 = vor.u32 %v352, %v355
        %v357 = vrot.slane %v356, 4
        %v359 = vshll.u32 %v196, 16
        %v361 = vrot.slane %v359, 5
        %v362 = vsel %vm228, %v357, %v361
        %v363 = vshrl.u32 %v196, 16
        %v365 = vrot.slane %v363, 4
        %v366 = vor.u32 %v365, %v361
        %v367 = vrot.slane %v366, 4
        %v369 = vshll.u32 %v210, 16
        %v371 = vrot.slane %v369, 5
        %v372 = vsel %vm228, %v367, %v371
        %v374 = vshrl.u32 %v197, 16
        %v376 = vrot.slane %v374, 4
        %v377 = vshll.u32 %v197, 16
        %v379 = vrot.slane %v377, 5
        %v380 = vor.u32 %v376, %v379
        %v381 = vrot.slane %v380, 4
        %v383 = vshll.u32 %v198, 16
        %v385 = vrot.slane %v383, 5
        %v386 = vsel %vm228, %v381, %v385
        %v387 = vshrl.u32 %v198, 16
        %v389 = vrot.slane %v387, 4
        %v390 = vor.u32 %v389, %v385
        %v391 = vrot.slane %v390, 4
        %v393 = vshll.u32 %v211, 16
        %v395 = vrot.slane %v393, 5
        %v396 = vsel %vm228, %v391, %v395
        %v398 = vshrl.u32 %v199, 16
        %v400 = vrot.slane %v398, 4
        %v401 = vshll.u32 %v199, 16
        %v403 = vrot.slane %v401, 5
        %v404 = vor.u32 %v400, %v403
        %v405 = vrot.slane %v404, 4
        %v407 = vshll.u32 %v200, 16
        %v409 = vrot.slane %v407, 5
        %v410 = vsel %vm228, %v405, %v409
        %v411 = vshrl.u32 %v200, 16
        %v413 = vrot.slane %v411, 4
        %v414 = vor.u32 %v413, %v409
        %v415 = vrot.slane %v414, 4
        %v417 = vshll.u32 %v212, 16
        %v419 = vrot.slane %v417, 5
        %v420 = vsel %vm228, %v415, %v419
        %v422 = vshrl.u32 %v201, 16
        %v424 = vrot.slane %v422, 4
        %v425 = vshll.u32 %v201, 16
        %v427 = vrot.slane %v425, 5
        %v428 = vor.u32 %v424, %v427
        %v429 = vrot.slane %v428, 4
        %v431 = vshll.u32 %v202, 16
        %v433 = vrot.slane %v431, 5
        %v434 = vsel %vm228, %v429, %v433
        %v435 = vshrl.u32 %v202, 16
        %v437 = vrot.slane %v435, 4
        %v438 = vor.u32 %v437, %v433
        %v439 = vrot.slane %v438, 4
        %v441 = vshll.u32 %v213, 16
        %v443 = vrot.slane %v441, 5
        %v444 = vsel %vm228, %v439, %v443
        %v461 = vunpack.c.l.b16 %v185
        %v462 = vunpack.c.l.b16 %v186
        %v463 = vunpack.c.l.b16 %v187
        %v464 = vunpack.c.l.b16 %v188
        %v465 = vunpack.c.l.b16 %v189
        %v466 = vunpack.c.l.b16 %v190
        %v467 = vunpack.c.l.b16 %v191
        %v468 = vunpack.c.l.b16 %v192
        %v469 = vunpack.c.l.b16 %v193
        %v470 = vunpack.c.l.b16 %v194
        %v471 = vunpack.c.l.b16 %v195
        %v472 = vunpack.c.l.b16 %v196
        %v473 = vunpack.c.l.b16 %v197
        %v474 = vunpack.c.l.b16 %v198
        %v475 = vunpack.c.l.b16 %v199
        %v476 = vunpack.c.l.b16 %v200
        %v477 = vpack.c.b16 %v462, %v461
        %v478 = vpack.c.b16 %v464, %v463
        %v479 = vpack.c.b16 %v466, %v465
        %v480 = vpack.c.b16 %v468, %v467
        %v481 = vpack.c.b16 %v470, %v469
        %v482 = vpack.c.b16 %v472, %v471
        %v483 = vpack.c.b16 %v474, %v473
        %v484 = vpack.c.b16 %v476, %v475
        %v493 = vunpack.c.l.b16 %v242
        %v494 = vunpack.c.l.b16 %v252
        %v495 = vunpack.c.l.b16 %v266
        %v496 = vunpack.c.l.b16 %v276
        %v497 = vunpack.c.l.b16 %v290
        %v498 = vunpack.c.l.b16 %v300
        %v499 = vunpack.c.l.b16 %v314
        %v500 = vunpack.c.l.b16 %v324
        %v501 = vunpack.c.l.b16 %v338
        %v502 = vunpack.c.l.b16 %v348
        %v503 = vunpack.c.l.b16 %v362
        %v504 = vunpack.c.l.b16 %v372
        %v505 = vunpack.c.l.b16 %v386
        %v506 = vunpack.c.l.b16 %v396
        %v507 = vunpack.c.l.b16 %v410
        %v508 = vunpack.c.l.b16 %v420
        %v509 = vpack.c.b16 %v494, %v493
        %v510 = vpack.c.b16 %v496, %v495
        %v511 = vpack.c.b16 %v498, %v497
        %v512 = vpack.c.b16 %v500, %v499
        %v513 = vpack.c.b16 %v502, %v501
        %v514 = vpack.c.b16 %v504, %v503
        %v515 = vpack.c.b16 %v506, %v505
        %v516 = vpack.c.b16 %v508, %v507
        %v527 = vunpack.c.l.b16 %v201
        %v528 = vunpack.c.l.b16 %v202
        %v529 = vpack.c.b16 %v528, %v527
        %v531 = vunpack.c.l.b16 %v434
        %v532 = vunpack.c.l.b16 %v444
        %v533 = vpack.c.b16 %v532, %v531
        %v535 = vld [vmem:[%s1] sm:$0xf]
        %v536 = vld [vmem:[%s1 + $0x4] sm:$0xf]
        %v537 = vld [vmem:[%s1 + $0x8] sm:$0xf]
        %v538 = vld [vmem:[%s1 + $0xc] sm:$0xf]
        %v539 = vld [vmem:[%s1 + $0x10] sm:$0xf]
        %v540 = vld [vmem:[%s1 + $0x14] sm:$0xf]
        %v541 = vld [vmem:[%s1 + $0x18] sm:$0xf]
        %v542 = vld [vmem:[%s1 + $0x1c] sm:$0xf]
        %v543 = vld [vmem:[%s1 + $0x20] sm:$0xf]
        %v544 = vld [vmem:[%s1 + $0x24] sm:$0xf]
        %v545 = vld [vmem:[%s1 + $0x28] sm:$0xf]
        %v546 = vld [vmem:[%s1 + $0x2c] sm:$0xf]
        %v547 = vld [vmem:[%s1 + $0x30] sm:$0xf]
        %v548 = vld [vmem:[%s1 + $0x34] sm:$0xf]
        %v549 = vld [vmem:[%s1 + $0x38] sm:$0xf]
        %v550 = vld [vmem:[%s1 + $0x3c] sm:$0xf]
        %v551 = vld [vmem:[%s1 + $0x40] sm:$0xf]
        %v552 = vld [vmem:[%s1 + $0x44] sm:$0xf]
        %v553 = vld [vmem:[%s1 + $0x48] sm:$0xf]
        %v554 = vld [vmem:[%s1 + $0x4c] sm:$0xf]
        %v555 = vld [vmem:[%s1 + $0x50] sm:$0xf]
        %v556 = vld [vmem:[%s1 + $0x54] sm:$0xf]
        %v557 = vld [vmem:[%s1 + $0x58] sm:$0xf]
        %v558 = vld [vmem:[%s1 + $0x5c] sm:$0xf]
        %v559 = vld [vmem:[%s1 + $0x60] sm:$0xf]
        %v560 = vld [vmem:[%s1 + $0x64] sm:$0xf]
        %v561 = vld [vmem:[%s1 + $0x68] sm:$0xf]
        %v562 = vld [vmem:[%s1 + $0x6c] sm:$0xf]
        %v563 = vld [vmem:[%s1 + $0x70] sm:$0xf]
        %v564 = vld [vmem:[%s1 + $0x74] sm:$0xf]
        %v565 = vld [vmem:[%s1 + $0x78] sm:$0xf]
        %v566 = vld [vmem:[%s1 + $0x7c] sm:$0xf]
        %v567 = vld [vmem:[%s1 + $0x80] sm:$0xf]
        %v568 = vld [vmem:[%s1 + $0x84] sm:$0xf]
        %v569 = vld [vmem:[%s1 + $0x88] sm:$0xf]
        %v570 = vld [vmem:[%s1 + $0x8c] sm:$0xf]
        %v571 = vld [vmem:[%s1 + $0x90] sm:$0xf]
        %v572 = vld [vmem:[%s1 + $0x94] sm:$0xf]
        %v573 = vld [vmem:[%s1 + $0x98] sm:$0xf]
        %v574 = vld [vmem:[%s1 + $0x9c] sm:$0xf]
        %v575 = vld [vmem:[%s1 + $0xa0] sm:$0xf]
        %v576 = vld [vmem:[%s1 + $0xa4] sm:$0xf]
        %v577 = vld [vmem:[%s1 + $0xa8] sm:$0xf]
        %v578 = vld [vmem:[%s1 + $0xac] sm:$0xf]
        %v579 = vld [vmem:[%s1 + $0xb0] sm:$0xf]
        %v580 = vld [vmem:[%s1 + $0xb4] sm:$0xf]
        %v581 = vld [vmem:[%s1 + $0xb8] sm:$0xf]
        %v582 = vld [vmem:[%s1 + $0xbc] sm:$0xf]
        %v583 = vld [vmem:[%s1 + $0xc0] sm:$0xf]
        %v584 = vld [vmem:[%s1 + $0xc4] sm:$0xf]
        %v585 = vld [vmem:[%s1 + $0xc8] sm:$0xf]
        %v586 = vld [vmem:[%s1 + $0xcc] sm:$0xf]
        %v587 = vld [vmem:[%s1 + $0xd0] sm:$0xf]
        %v588 = vld [vmem:[%s1 + $0xd4] sm:$0xf]
        %v589 = vld [vmem:[%s1 + $0xd8] sm:$0xf]
        %v590 = vld [vmem:[%s1 + $0xdc] sm:$0xf]
        %v591 = vld [vmem:[%s1 + $0xe0] sm:$0xf]
        %v592 = vld [vmem:[%s1 + $0xe4] sm:$0xf]
        %v593 = vld [vmem:[%s1 + $0xe8] sm:$0xf]
        %v594 = vld [vmem:[%s1 + $0xec] sm:$0xf]
        %v595 = vld [vmem:[%s1 + $0xf0] sm:$0xf]
        %v596 = vld [vmem:[%s1 + $0xf4] sm:$0xf]
        %v597 = vld [vmem:[%s1 + $0xf8] sm:$0xf]
        %v598 = vld [vmem:[%s1 + $0xfc] sm:$0xf]
        %v600 = vlaneseq
        %v601 = vshrl.u32 %v600, 7
        %v602 = vsub.s32 0, %v601
        %v603 = vrot.slane %v225, %v602
        %v669 = vunpack.c.l.b16 %v535
        %v670 = vunpack.c.l.b16 %v536
        %v671 = vunpack.c.l.b16 %v537
        %v672 = vunpack.c.l.b16 %v538
        %v673 = vunpack.c.l.b16 %v539
        %v674 = vunpack.c.l.b16 %v540
        %v675 = vunpack.c.l.b16 %v541
        %v676 = vunpack.c.l.b16 %v542
        %v677 = vunpack.c.l.b16 %v543
        %v678 = vunpack.c.l.b16 %v544
        %v679 = vunpack.c.l.b16 %v545
        %v680 = vunpack.c.l.b16 %v546
        %v681 = vunpack.c.l.b16 %v547
        %v682 = vunpack.c.l.b16 %v548
        %v683 = vunpack.c.l.b16 %v549
        %v684 = vunpack.c.l.b16 %v550
        %v685 = vunpack.c.l.b16 %v551
        %v686 = vunpack.c.l.b16 %v552
        %v687 = vunpack.c.l.b16 %v553
        %v688 = vunpack.c.l.b16 %v554
        %v689 = vunpack.c.l.b16 %v555
        %v690 = vunpack.c.l.b16 %v556
        %v691 = vunpack.c.l.b16 %v557
        %v692 = vunpack.c.l.b16 %v558
        %v693 = vunpack.c.l.b16 %v559
        %v694 = vunpack.c.l.b16 %v560
        %v695 = vunpack.c.l.b16 %v561
        %v696 = vunpack.c.l.b16 %v562
        %v697 = vunpack.c.l.b16 %v563
        %v698 = vunpack.c.l.b16 %v564
        %v699 = vunpack.c.l.b16 %v565
        %v700 = vunpack.c.l.b16 %v566
        %v701 = vunpack.c.l.b16 %v567
        %v702 = vunpack.c.l.b16 %v568
        %v703 = vunpack.c.l.b16 %v569
        %v704 = vunpack.c.l.b16 %v570
        %v705 = vunpack.c.l.b16 %v571
        %v706 = vunpack.c.l.b16 %v572
        %v707 = vunpack.c.l.b16 %v573
        %v708 = vunpack.c.l.b16 %v574
        %v709 = vunpack.c.l.b16 %v575
        %v710 = vunpack.c.l.b16 %v576
        %v711 = vunpack.c.l.b16 %v577
        %v712 = vunpack.c.l.b16 %v578
        %v713 = vunpack.c.l.b16 %v579
        %v714 = vunpack.c.l.b16 %v580
        %v715 = vunpack.c.l.b16 %v581
        %v716 = vunpack.c.l.b16 %v582
        %v717 = vunpack.c.l.b16 %v583
        %v718 = vunpack.c.l.b16 %v584
        %v719 = vunpack.c.l.b16 %v585
        %v720 = vunpack.c.l.b16 %v586
        %v721 = vunpack.c.l.b16 %v587
        %v722 = vunpack.c.l.b16 %v588
        %v723 = vunpack.c.l.b16 %v589
        %v724 = vunpack.c.l.b16 %v590
        %v725 = vunpack.c.l.b16 %v591
        %v726 = vunpack.c.l.b16 %v592
        %v727 = vunpack.c.l.b16 %v593
        %v728 = vunpack.c.l.b16 %v594
        %v729 = vunpack.c.l.b16 %v595
        %v730 = vunpack.c.l.b16 %v596
        %v731 = vunpack.c.l.b16 %v597
        %v732 = vunpack.c.l.b16 %v598
        %v733 = vpack.c.b16 %v670, %v669
        %v734 = vpack.c.b16 %v672, %v671
        %v735 = vpack.c.b16 %v674, %v673
        %v736 = vpack.c.b16 %v676, %v675
        %v737 = vpack.c.b16 %v678, %v677
        %v738 = vpack.c.b16 %v680, %v679
        %v739 = vpack.c.b16 %v682, %v681
        %v740 = vpack.c.b16 %v684, %v683
        %v741 = vpack.c.b16 %v686, %v685
        %v742 = vpack.c.b16 %v688, %v687
        %v743 = vpack.c.b16 %v690, %v689
        %v744 = vpack.c.b16 %v692, %v691
        %v745 = vpack.c.b16 %v694, %v693
        %v746 = vpack.c.b16 %v696, %v695
        %v747 = vpack.c.b16 %v698, %v697
        %v748 = vpack.c.b16 %v700, %v699
        %v749 = vpack.c.b16 %v702, %v701
        %v750 = vpack.c.b16 %v704, %v703
        %v751 = vpack.c.b16 %v706, %v705
        %v752 = vpack.c.b16 %v708, %v707
        %v753 = vpack.c.b16 %v710, %v709
        %v754 = vpack.c.b16 %v712, %v711
        %v755 = vpack.c.b16 %v714, %v713
        %v756 = vpack.c.b16 %v716, %v715
        %v757 = vpack.c.b16 %v718, %v717
        %v758 = vpack.c.b16 %v720, %v719
        %v759 = vpack.c.b16 %v722, %v721
        %v760 = vpack.c.b16 %v724, %v723
        %v761 = vpack.c.b16 %v726, %v725
        %v762 = vpack.c.b16 %v728, %v727
        %v763 = vpack.c.b16 %v730, %v729
        %v764 = vpack.c.b16 %v732, %v731
        %797 = vmatprep.subr.bf16.mxu0 0
        %798 = vmatpush1.bf16.msra.mxu0 %v733
        %799 = vmatprep.subr.bf16.mxu0 0
        %800 = vmatpush1.bf16.msra.mxu0 %v734
        %801 = vmatprep.subr.bf16.mxu0 0
        %802 = vmatpush1.bf16.msra.mxu0 %v735
        %803 = vmatprep.subr.bf16.mxu0 0
        %804 = vmatpush1.bf16.msra.mxu0 %v736
        %805 = vmatprep.subr.bf16.mxu0 0
        %806 = vmatpush1.bf16.msra.mxu0 %v737
        %807 = vmatprep.subr.bf16.mxu0 0
        %808 = vmatpush1.bf16.msra.mxu0 %v738
        %809 = vmatprep.subr.bf16.mxu0 0
        %810 = vmatpush1.bf16.msra.mxu0 %v739
        %811 = vmatprep.subr.bf16.mxu0 0
        %812 = vmatpush1.bf16.msra.mxu0 %v740
        %813 = vmatprep.subr.bf16.mxu0 0
        %814 = vmatpush1.bf16.msra.mxu0 %v741
        %815 = vmatprep.subr.bf16.mxu0 0
        %816 = vmatpush1.bf16.msra.mxu0 %v742
        %817 = vmatprep.subr.bf16.mxu0 0
        %818 = vmatpush1.bf16.msra.mxu0 %v743
        %819 = vmatprep.subr.bf16.mxu0 0
        %820 = vmatpush1.bf16.msra.mxu0 %v744
        %821 = vmatprep.subr.bf16.mxu0 0
        %822 = vmatpush1.bf16.msra.mxu0 %v745
        %823 = vmatprep.subr.bf16.mxu0 0
        %824 = vmatpush1.bf16.msra.mxu0 %v746
        %825 = vmatprep.subr.bf16.mxu0 0
        %826 = vmatpush1.bf16.msra.mxu0 %v747
        %827 = vmatprep.subr.bf16.mxu0 0
        %828 = vmatpush1.bf16.msra.mxu0 %v748
        %829 = vmatprep.mubr.bf16.mxu0 %v509
        %830 = vmatmul.mubr.bf16.gmra.mrb[0].mxu0 %v477
        %v831 = vpop.f32.mrb[0].mxu0
        %v832 = vadd.f32 %v603, %v831
        %v833 = vpop.f32.mrb[0].mxu0
        %v834 = vpop.f32.mrb[0].mxu0
        %v835 = vadd.f32 %v603, %v834
        %v836 = vpop.f32.mrb[0].mxu0
        %837 = vmatprep.mubr.bf16.mxu0 %v510
        %838 = vmatmul.mubr.bf16.gmra.mrb[0].mxu0 %v478
        %v839 = vpop.f32.mrb[0].mxu0
        %v840 = vadd.f32 %v603, %v839
        %v841 = vpop.f32.mrb[0].mxu0
        %v842 = vpop.f32.mrb[0].mxu0
        %v843 = vadd.f32 %v603, %v842
        %v844 = vpop.f32.mrb[0].mxu0
        %845 = vmatprep.mubr.bf16.mxu0 %v511
        %846 = vmatmul.mubr.bf16.gmra.mrb[0].mxu0 %v479
        %v847 = vpop.f32.mrb[0].mxu0
        %v848 = vadd.f32 %v603, %v847
        %v849 = vpop.f32.mrb[0].mxu0
        %v850 = vpop.f32.mrb[0].mxu0
        %v851 = vadd.f32 %v603, %v850
        %v852 = vpop.f32.mrb[0].mxu0
        %853 = vmatprep.mubr.bf16.mxu0 %v512
        %854 = vmatmul.mubr.bf16.gmra.mrb[0].mxu0 %v480
        %v855 = vpop.f32.mrb[0].mxu0
        %v856 = vadd.f32 %v603, %v855
        %v857 = vpop.f32.mrb[0].mxu0
        %v858 = vpop.f32.mrb[0].mxu0
        %v859 = vadd.f32 %v603, %v858
        %v860 = vpop.f32.mrb[0].mxu0
        %861 = vmatprep.mubr.bf16.mxu0 %v513
        %862 = vmatmul.mubr.bf16.gmra.mrb[0].mxu0 %v481
        %v863 = vpop.f32.mrb[0].mxu0
        %v864 = vadd.f32 %v603, %v863
        %v865 = vpop.f32.mrb[0].mxu0
        %v866 = vpop.f32.mrb[0].mxu0
        %v867 = vadd.f32 %v603, %v866
        %v868 = vpop.f32.mrb[0].mxu0
        %869 = vmatprep.mubr.bf16.mxu0 %v514
        %870 = vmatmul.mubr.bf16.gmra.mrb[0].mxu0 %v482
        %v871 = vpop.f32.mrb[0].mxu0
        %v872 = vadd.f32 %v603, %v871
        %v873 = vpop.f32.mrb[0].mxu0
        %v874 = vpop.f32.mrb[0].mxu0
        %v875 = vadd.f32 %v603, %v874
        %v876 = vpop.f32.mrb[0].mxu0
        %877 = vmatprep.mubr.bf16.mxu0 %v515
        %878 = vmatmul.mubr.bf16.gmra.mrb[0].mxu0 %v483
        %v879 = vpop.f32.mrb[0].mxu0
        %v880 = vadd.f32 %v603, %v879
        %v881 = vpop.f32.mrb[0].mxu0
        %v882 = vpop.f32.mrb[0].mxu0
        %v883 = vadd.f32 %v603, %v882
        %v884 = vpop.f32.mrb[0].mxu0
        %885 = vmatprep.mubr.bf16.mxu0 %v516
        %886 = vmatmul.mubr.bf16.gmra.mrb[0].mxu0 %v484
        %v887 = vpop.f32.mrb[0].mxu0
        %v888 = vadd.f32 %v603, %v887
        %v889 = vpop.f32.mrb[0].mxu0
        %v890 = vpop.f32.mrb[0].mxu0
        %v891 = vadd.f32 %v603, %v890
        %v892 = vpop.f32.mrb[0].mxu0
        %893 = vdwg.mxu0
        %894 = vmatprep.subr.bf16.mxu0 0
        %895 = vmatpush1.bf16.msra.mxu0 %v749
        %896 = vmatprep.subr.bf16.mxu0 0
        %897 = vmatpush1.bf16.msra.mxu0 %v750
        %898 = vmatprep.subr.bf16.mxu0 0
        %899 = vmatpush1.bf16.msra.mxu0 %v751
        %900 = vmatprep.subr.bf16.mxu0 0
        %901 = vmatpush1.bf16.msra.mxu0 %v752
        %902 = vmatprep.subr.bf16.mxu0 0
        %903 = vmatpush1.bf16.msra.mxu0 %v753
        %904 = vmatprep.subr.bf16.mxu0 0
        %905 = vmatpush1.bf16.msra.mxu0 %v754
        %906 = vmatprep.subr.bf16.mxu0 0
        %907 = vmatpush1.bf16.msra.mxu0 %v755
        %908 = vmatprep.subr.bf16.mxu0 0
        %909 = vmatpush1.bf16.msra.mxu0 %v756
        %910 = vmatprep.subr.bf16.mxu0 0
        %911 = vmatpush1.bf16.msra.mxu0 %v757
        %912 = vmatprep.subr.bf16.mxu0 0
        %913 = vmatpush1.bf16.msra.mxu0 %v758
        %914 = vmatprep.subr.bf16.mxu0 0
        %915 = vmatpush1.bf16.msra.mxu0 %v759
        %916 = vmatprep.subr.bf16.mxu0 0
        %917 = vmatpush1.bf16.msra.mxu0 %v760
        %918 = vmatprep.subr.bf16.mxu0 0
        %919 = vmatpush1.bf16.msra.mxu0 %v761
        %920 = vmatprep.subr.bf16.mxu0 0
        %921 = vmatpush1.bf16.msra.mxu0 %v762
        %922 = vmatprep.subr.bf16.mxu0 0
        %923 = vmatpush1.bf16.msra.mxu0 %v763
        %924 = vmatprep.subr.bf16.mxu0 0
        %925 = vmatpush1.bf16.msra.mxu0 %v764
        %926 = vmatprep.mubr.bf16.mxu0 %v510
        %927 = vmatmul.mubr.bf16.gmra.mrb[0].mxu0 %v478
        %v928 = vpop.f32.mrb[0].mxu0
        %v929 = vadd.f32 %v832, %v928
        %v930 = vpop.f32.mrb[0].mxu0
        %v931 = vpop.f32.mrb[0].mxu0
        %v932 = vadd.f32 %v835, %v931
        %v933 = vpop.f32.mrb[0].mxu0
        %934 = vmatprep.mubr.bf16.mxu0 %v511
        %935 = vmatmul.mubr.bf16.gmra.mrb[0].mxu0 %v479
        %v936 = vpop.f32.mrb[0].mxu0
        %v937 = vadd.f32 %v840, %v936
        %v938 = vpop.f32.mrb[0].mxu0
        %v939 = vpop.f32.mrb[0].mxu0
        %v940 = vadd.f32 %v843, %v939
        %v941 = vpop.f32.mrb[0].mxu0
        %942 = vmatprep.mubr.bf16.mxu0 %v512
        %943 = vmatmul.mubr.bf16.gmra.mrb[0].mxu0 %v480
        %v944 = vpop.f32.mrb[0].mxu0
        %v945 = vadd.f32 %v848, %v944
        %v946 = vpop.f32.mrb[0].mxu0
        %v947 = vpop.f32.mrb[0].mxu0
        %v948 = vadd.f32 %v851, %v947
        %v949 = vpop.f32.mrb[0].mxu0
        %950 = vmatprep.mubr.bf16.mxu0 %v513
        %951 = vmatmul.mubr.bf16.gmra.mrb[0].mxu0 %v481
        %v952 = vpop.f32.mrb[0].mxu0
        %v953 = vadd.f32 %v856, %v952
        %v954 = vpop.f32.mrb[0].mxu0
        %v955 = vpop.f32.mrb[0].mxu0
        %v956 = vadd.f32 %v859, %v955
        %v957 = vpop.f32.mrb[0].mxu0
        %958 = vmatprep.mubr.bf16.mxu0 %v514
        %959 = vmatmul.mubr.bf16.gmra.mrb[0].mxu0 %v482
        %v960 = vpop.f32.mrb[0].mxu0
        %v961 = vadd.f32 %v864, %v960
        %v962 = vpop.f32.mrb[0].mxu0
        %v963 = vpop.f32.mrb[0].mxu0
        %v964 = vadd.f32 %v867, %v963
        %v965 = vpop.f32.mrb[0].mxu0
        %966 = vmatprep.mubr.bf16.mxu0 %v515
        %967 = vmatmul.mubr.bf16.gmra.mrb[0].mxu0 %v483
        %v968 = vpop.f32.mrb[0].mxu0
        %v969 = vadd.f32 %v872, %v968
        %v970 = vpop.f32.mrb[0].mxu0
        %v971 = vpop.f32.mrb[0].mxu0
        %v972 = vadd.f32 %v875, %v971
        %v973 = vpop.f32.mrb[0].mxu0
        %974 = vmatprep.mubr.bf16.mxu0 %v516
        %975 = vmatmul.mubr.bf16.gmra.mrb[0].mxu0 %v484
        %v976 = vpop.f32.mrb[0].mxu0
        %v977 = vadd.f32 %v880, %v976
        %v978 = vpop.f32.mrb[0].mxu0
        %v979 = vpop.f32.mrb[0].mxu0
        %v980 = vadd.f32 %v883, %v979
        %v981 = vpop.f32.mrb[0].mxu0
        %982 = vmatprep.mubr.bf16.mxu0 %v533
        %983 = vmatmul.mubr.bf16.gmra.mrb[0].mxu0 %v529
        %v984 = vpop.f32.mrb[0].mxu0
        %v985 = vadd.f32 %v888, %v984
        %v986 = vpop.f32.mrb[0].mxu0
        %v987 = vpop.f32.mrb[0].mxu0
        %v988 = vadd.f32 %v891, %v987
        %v989 = vpop.f32.mrb[0].mxu0
        %990 = vdwg.mxu0
        %v991 = vpack.c.bf16 %v932, %v929
        %v992 = vpack.c.bf16 %v940, %v937
        %v993 = vpack.c.bf16 %v948, %v945
        %v994 = vpack.c.bf16 %v956, %v953
        %v995 = vpack.c.bf16 %v964, %v961
        %v996 = vpack.c.bf16 %v972, %v969
        %v997 = vpack.c.bf16 %v980, %v977
        %v998 = vpack.c.bf16 %v988, %v985
        %v1007 = vunpack.c.l.b16 %v991
        %v1008 = vunpack.c.h.b16 %v991
        %v1009 = vunpack.c.l.b16 %v992
        %v1010 = vunpack.c.h.b16 %v992
        %v1011 = vunpack.c.l.b16 %v993
        %v1012 = vunpack.c.h.b16 %v993
        %v1013 = vunpack.c.l.b16 %v994
        %v1014 = vunpack.c.h.b16 %v994
        %v1015 = vunpack.c.l.b16 %v995
        %v1016 = vunpack.c.h.b16 %v995
        %v1017 = vunpack.c.l.b16 %v996
        %v1018 = vunpack.c.h.b16 %v996
        %v1019 = vunpack.c.l.b16 %v997
        %v1020 = vunpack.c.h.b16 %v997
        %v1021 = vunpack.c.l.b16 %v998
        %v1022 = vunpack.c.h.b16 %v998
        %v1023 = vpack.c.b16 %v1007, %v1007
        %v1024 = vpack.c.b16 %v1008, %v1008
        %v1025 = vpack.c.b16 %v1009, %v1009
        %v1026 = vpack.c.b16 %v1010, %v1010
        %v1027 = vpack.c.b16 %v1011, %v1011
        %v1028 = vpack.c.b16 %v1012, %v1012
        %v1029 = vpack.c.b16 %v1013, %v1013
        %v1030 = vpack.c.b16 %v1014, %v1014
        %v1031 = vpack.c.b16 %v1015, %v1015
        %v1032 = vpack.c.b16 %v1016, %v1016
        %v1033 = vpack.c.b16 %v1017, %v1017
        %v1034 = vpack.c.b16 %v1018, %v1018
        %v1035 = vpack.c.b16 %v1019, %v1019
        %v1036 = vpack.c.b16 %v1020, %v1020
        %v1037 = vpack.c.b16 %v1021, %v1021
        %v1038 = vpack.c.b16 %v1022, %v1022
        %1055 = vst [vmem:[%s173] sm:$0xf] %v1023
        %1056 = vst [vmem:[%s173 + $0x4] sm:$0xf] %v1024
        %1057 = vst [vmem:[%s173 + $0x8] sm:$0xf] %v1025
        %1058 = vst [vmem:[%s173 + $0xc] sm:$0xf] %v1026
        %1059 = vst [vmem:[%s173 + $0x10] sm:$0xf] %v1027
        %1060 = vst [vmem:[%s173 + $0x14] sm:$0xf] %v1028
        %1061 = vst [vmem:[%s173 + $0x18] sm:$0xf] %v1029
        %1062 = vst [vmem:[%s173 + $0x1c] sm:$0xf] %v1030
        %1063 = vst [vmem:[%s173 + $0x20] sm:$0xf] %v1031
        %1064 = vst [vmem:[%s173 + $0x24] sm:$0xf] %v1032
        %1065 = vst [vmem:[%s173 + $0x28] sm:$0xf] %v1033
        %1066 = vst [vmem:[%s173 + $0x2c] sm:$0xf] %v1034
        %1067 = vst [vmem:[%s173 + $0x30] sm:$0xf] %v1035
        %1068 = vst [vmem:[%s173 + $0x34] sm:$0xf] %v1036
        %1069 = vst [vmem:[%s173 + $0x38] sm:$0xf] %v1037
        %1070 = vst [vmem:[%s173 + $0x3c] sm:$0xf] %v1038
        %vm1087 = vcmask 1042432
        %vm1088 = vcmask 1046532
        %vm1089 = vmor %vm1087, %vm1088
        %v1090 = vrot.slane %v215, 5
        %v1091 = vrot.slane %v1090, 4
        %v1092 = vrot.slane %v186, 5
        %v1093 = vsel %vm1089, %v1091, %v1092
        %v1094 = vrot.slane %v1092, 4
        %v1095 = vrot.slane %v205, 5
        %v1096 = vsel %vm1089, %v1094, %v1095
        %v1097 = vrot.slane %v216, 5
        %v1098 = vrot.slane %v1097, 4
        %v1099 = vrot.slane %v188, 5
        %v1100 = vsel %vm1089, %v1098, %v1099
        %v1101 = vrot.slane %v1099, 4
        %v1102 = vrot.slane %v206, 5
        %v1103 = vsel %vm1089, %v1101, %v1102
        %v1104 = vrot.slane %v217, 5
        %v1105 = vrot.slane %v1104, 4
        %v1106 = vrot.slane %v190, 5
        %v1107 = vsel %vm1089, %v1105, %v1106
        %v1108 = vrot.slane %v1106, 4
        %v1109 = vrot.slane %v207, 5
        %v1110 = vsel %vm1089, %v1108, %v1109
        %v1111 = vrot.slane %v218, 5
        %v1112 = vrot.slane %v1111, 4
        %v1113 = vrot.slane %v192, 5
        %v1114 = vsel %vm1089, %v1112, %v1113
        %v1115 = vrot.slane %v1113, 4
        %v1116 = vrot.slane %v208, 5
        %v1117 = vsel %vm1089, %v1115, %v1116
        %v1118 = vrot.slane %v219, 5
        %v1119 = vrot.slane %v1118, 4
        %v1120 = vrot.slane %v194, 5
        %v1121 = vsel %vm1089, %v1119, %v1120
        %v1122 = vrot.slane %v1120, 4
        %v1123 = vrot.slane %v209, 5
        %v1124 = vsel %vm1089, %v1122, %v1123
        %v1125 = vrot.slane %v220, 5
        %v1126 = vrot.slane %v1125, 4
        %v1127 = vrot.slane %v196, 5
        %v1128 = vsel %vm1089, %v1126, %v1127
        %v1129 = vrot.slane %v1127, 4
        %v1130 = vrot.slane %v210, 5
        %v1131 = vsel %vm1089, %v1129, %v1130
        %v1132 = vrot.slane %v221, 5
        %v1133 = vrot.slane %v1132, 4
        %v1134 = vrot.slane %v198, 5
        %v1135 = vsel %vm1089, %v1133, %v1134
        %v1136 = vrot.slane %v1134, 4
        %v1137 = vrot.slane %v211, 5
        %v1138 = vsel %vm1089, %v1136, %v1137
        %v1139 = vrot.slane %v222, 5
        %v1140 = vrot.slane %v1139, 4
        %v1141 = vrot.slane %v200, 5
        %v1142 = vsel %vm1089, %v1140, %v1141
        %v1143 = vrot.slane %v1141, 4
        %v1144 = vrot.slane %v212, 5
        %v1145 = vsel %vm1089, %v1143, %v1144
        %v1148 = vrot.slane %v223, 5
        %v1149 = vrot.slane %v1148, 4
        %v1150 = vrot.slane %v202, 5
        %v1151 = vsel %vm1089, %v1149, %v1150
        %v1152 = vrot.slane %v1150, 4
        %v1153 = vrot.slane %v213, 5
        %v1154 = vsel %vm1089, %v1152, %v1153
        %v1155 = vunpack.c.l.b16 %v1093
        %v1156 = vunpack.c.l.b16 %v1096
        %v1157 = vunpack.c.l.b16 %v1100
        %v1158 = vunpack.c.l.b16 %v1103
        %v1159 = vunpack.c.l.b16 %v1107
        %v1160 = vunpack.c.l.b16 %v1110
        %v1161 = vunpack.c.l.b16 %v1114
        %v1162 = vunpack.c.l.b16 %v1117
        %v1163 = vunpack.c.l.b16 %v1121
        %v1164 = vunpack.c.l.b16 %v1124
        %v1165 = vunpack.c.l.b16 %v1128
        %v1166 = vunpack.c.l.b16 %v1131
        %v1167 = vunpack.c.l.b16 %v1135
        %v1168 = vunpack.c.l.b16 %v1138
        %v1169 = vunpack.c.l.b16 %v1142
        %v1170 = vunpack.c.l.b16 %v1145
        %v1171 = vpack.c.b16 %v1156, %v1155
        %v1172 = vpack.c.b16 %v1158, %v1157
        %v1173 = vpack.c.b16 %v1160, %v1159
        %v1174 = vpack.c.b16 %v1162, %v1161
        %v1175 = vpack.c.b16 %v1164, %v1163
        %v1176 = vpack.c.b16 %v1166, %v1165
        %v1177 = vpack.c.b16 %v1168, %v1167
        %v1178 = vpack.c.b16 %v1170, %v1169
        %v1187 = vunpack.c.l.b16 %v1151
        %v1188 = vunpack.c.l.b16 %v1154
        %v1189 = vpack.c.b16 %v1188, %v1187
        %s1191 = scalar_lea.vmem %s1, 256
        %v1192 = vld [vmem:[%s1191] sm:$0xf]
        %v1193 = vld [vmem:[%s1191 + $0x4] sm:$0xf]
        %v1194 = vld [vmem:[%s1191 + $0x8] sm:$0xf]
        %v1195 = vld [vmem:[%s1191 + $0xc] sm:$0xf]
        %v1196 = vld [vmem:[%s1191 + $0x10] sm:$0xf]
        %v1197 = vld [vmem:[%s1191 + $0x14] sm:$0xf]
        %v1198 = vld [vmem:[%s1191 + $0x18] sm:$0xf]
        %v1199 = vld [vmem:[%s1191 + $0x1c] sm:$0xf]
        %v1200 = vld [vmem:[%s1191 + $0x20] sm:$0xf]
        %v1201 = vld [vmem:[%s1191 + $0x24] sm:$0xf]
        %v1202 = vld [vmem:[%s1191 + $0x28] sm:$0xf]
        %v1203 = vld [vmem:[%s1191 + $0x2c] sm:$0xf]
        %v1204 = vld [vmem:[%s1191 + $0x30] sm:$0xf]
        %v1205 = vld [vmem:[%s1191 + $0x34] sm:$0xf]
        %v1206 = vld [vmem:[%s1191 + $0x38] sm:$0xf]
        %v1207 = vld [vmem:[%s1191 + $0x3c] sm:$0xf]
        %v1208 = vld [vmem:[%s1191 + $0x40] sm:$0xf]
        %v1209 = vld [vmem:[%s1191 + $0x44] sm:$0xf]
        %v1210 = vld [vmem:[%s1191 + $0x48] sm:$0xf]
        %v1211 = vld [vmem:[%s1191 + $0x4c] sm:$0xf]
        %v1212 = vld [vmem:[%s1191 + $0x50] sm:$0xf]
        %v1213 = vld [vmem:[%s1191 + $0x54] sm:$0xf]
        %v1214 = vld [vmem:[%s1191 + $0x58] sm:$0xf]
        %v1215 = vld [vmem:[%s1191 + $0x5c] sm:$0xf]
        %v1216 = vld [vmem:[%s1191 + $0x60] sm:$0xf]
        %v1217 = vld [vmem:[%s1191 + $0x64] sm:$0xf]
        %v1218 = vld [vmem:[%s1191 + $0x68] sm:$0xf]
        %v1219 = vld [vmem:[%s1191 + $0x6c] sm:$0xf]
        %v1220 = vld [vmem:[%s1191 + $0x70] sm:$0xf]
        %v1221 = vld [vmem:[%s1191 + $0x74] sm:$0xf]
        %v1222 = vld [vmem:[%s1191 + $0x78] sm:$0xf]
        %v1223 = vld [vmem:[%s1191 + $0x7c] sm:$0xf]
        %v1224 = vld [vmem:[%s1191 + $0x80] sm:$0xf]
        %v1225 = vld [vmem:[%s1191 + $0x84] sm:$0xf]
        %v1226 = vld [vmem:[%s1191 + $0x88] sm:$0xf]
        %v1227 = vld [vmem:[%s1191 + $0x8c] sm:$0xf]
        %v1228 = vld [vmem:[%s1191 + $0x90] sm:$0xf]
        %v1229 = vld [vmem:[%s1191 + $0x94] sm:$0xf]
        %v1230 = vld [vmem:[%s1191 + $0x98] sm:$0xf]
        %v1231 = vld [vmem:[%s1191 + $0x9c] sm:$0xf]
        %v1232 = vld [vmem:[%s1191 + $0xa0] sm:$0xf]
        %v1233 = vld [vmem:[%s1191 + $0xa4] sm:$0xf]
        %v1234 = vld [vmem:[%s1191 + $0xa8] sm:$0xf]
        %v1235 = vld [vmem:[%s1191 + $0xac] sm:$0xf]
        %v1236 = vld [vmem:[%s1191 + $0xb0] sm:$0xf]
        %v1237 = vld [vmem:[%s1191 + $0xb4] sm:$0xf]
        %v1238 = vld [vmem:[%s1191 + $0xb8] sm:$0xf]
        %v1239 = vld [vmem:[%s1191 + $0xbc] sm:$0xf]
        %v1240 = vld [vmem:[%s1191 + $0xc0] sm:$0xf]
        %v1241 = vld [vmem:[%s1191 + $0xc4] sm:$0xf]
        %v1242 = vld [vmem:[%s1191 + $0xc8] sm:$0xf]
        %v1243 = vld [vmem:[%s1191 + $0xcc] sm:$0xf]
        %v1244 = vld [vmem:[%s1191 + $0xd0] sm:$0xf]
        %v1245 = vld [vmem:[%s1191 + $0xd4] sm:$0xf]
        %v1246 = vld [vmem:[%s1191 + $0xd8] sm:$0xf]
        %v1247 = vld [vmem:[%s1191 + $0xdc] sm:$0xf]
        %v1248 = vld [vmem:[%s1191 + $0xe0] sm:$0xf]
        %v1249 = vld [vmem:[%s1191 + $0xe4] sm:$0xf]
        %v1250 = vld [vmem:[%s1191 + $0xe8] sm:$0xf]
        %v1251 = vld [vmem:[%s1191 + $0xec] sm:$0xf]
        %v1252 = vld [vmem:[%s1191 + $0xf0] sm:$0xf]
        %v1253 = vld [vmem:[%s1191 + $0xf4] sm:$0xf]
        %v1254 = vld [vmem:[%s1191 + $0xf8] sm:$0xf]
        %v1255 = vld [vmem:[%s1191 + $0xfc] sm:$0xf]
        %v1320 = vunpack.c.l.b16 %v1192
        %v1321 = vunpack.c.l.b16 %v1193
        %v1322 = vunpack.c.l.b16 %v1194
        %v1323 = vunpack.c.l.b16 %v1195
        %v1324 = vunpack.c.l.b16 %v1196
        %v1325 = vunpack.c.l.b16 %v1197
        %v1326 = vunpack.c.l.b16 %v1198
        %v1327 = vunpack.c.l.b16 %v1199
        %v1328 = vunpack.c.l.b16 %v1200
        %v1329 = vunpack.c.l.b16 %v1201
        %v1330 = vunpack.c.l.b16 %v1202
        %v1331 = vunpack.c.l.b16 %v1203
        %v1332 = vunpack.c.l.b16 %v1204
        %v1333 = vunpack.c.l.b16 %v1205
        %v1334 = vunpack.c.l.b16 %v1206
        %v1335 = vunpack.c.l.b16 %v1207
        %v1336 = vunpack.c.l.b16 %v1208
        %v1337 = vunpack.c.l.b16 %v1209
        %v1338 = vunpack.c.l.b16 %v1210
        %v1339 = vunpack.c.l.b16 %v1211
        %v1340 = vunpack.c.l.b16 %v1212
        %v1341 = vunpack.c.l.b16 %v1213
        %v1342 = vunpack.c.l.b16 %v1214
        %v1343 = vunpack.c.l.b16 %v1215
        %v1344 = vunpack.c.l.b16 %v1216
        %v1345 = vunpack.c.l.b16 %v1217
        %v1346 = vunpack.c.l.b16 %v1218
        %v1347 = vunpack.c.l.b16 %v1219
        %v1348 = vunpack.c.l.b16 %v1220
        %v1349 = vunpack.c.l.b16 %v1221
        %v1350 = vunpack.c.l.b16 %v1222
        %v1351 = vunpack.c.l.b16 %v1223
        %v1352 = vunpack.c.l.b16 %v1224
        %v1353 = vunpack.c.l.b16 %v1225
        %v1354 = vunpack.c.l.b16 %v1226
        %v1355 = vunpack.c.l.b16 %v1227
        %v1356 = vunpack.c.l.b16 %v1228
        %v1357 = vunpack.c.l.b16 %v1229
        %v1358 = vunpack.c.l.b16 %v1230
        %v1359 = vunpack.c.l.b16 %v1231
        %v1360 = vunpack.c.l.b16 %v1232
        %v1361 = vunpack.c.l.b16 %v1233
        %v1362 = vunpack.c.l.b16 %v1234
        %v1363 = vunpack.c.l.b16 %v1235
        %v1364 = vunpack.c.l.b16 %v1236
        %v1365 = vunpack.c.l.b16 %v1237
        %v1366 = vunpack.c.l.b16 %v1238
        %v1367 = vunpack.c.l.b16 %v1239
        %v1368 = vunpack.c.l.b16 %v1240
        %v1369 = vunpack.c.l.b16 %v1241
        %v1370 = vunpack.c.l.b16 %v1242
        %v1371 = vunpack.c.l.b16 %v1243
        %v1372 = vunpack.c.l.b16 %v1244
        %v1373 = vunpack.c.l.b16 %v1245
        %v1374 = vunpack.c.l.b16 %v1246
        %v1375 = vunpack.c.l.b16 %v1247
        %v1376 = vunpack.c.l.b16 %v1248
        %v1377 = vunpack.c.l.b16 %v1249
        %v1378 = vunpack.c.l.b16 %v1250
        %v1379 = vunpack.c.l.b16 %v1251
        %v1380 = vunpack.c.l.b16 %v1252
        %v1381 = vunpack.c.l.b16 %v1253
        %v1382 = vunpack.c.l.b16 %v1254
        %v1383 = vunpack.c.l.b16 %v1255
        %v1384 = vpack.c.b16 %v1321, %v1320
        %v1385 = vpack.c.b16 %v1323, %v1322
        %v1386 = vpack.c.b16 %v1325, %v1324
        %v1387 = vpack.c.b16 %v1327, %v1326
        %v1388 = vpack.c.b16 %v1329, %v1328
        %v1389 = vpack.c.b16 %v1331, %v1330
        %v1390 = vpack.c.b16 %v1333, %v1332
        %v1391 = vpack.c.b16 %v1335, %v1334
        %v1392 = vpack.c.b16 %v1337, %v1336
        %v1393 = vpack.c.b16 %v1339, %v1338
        %v1394 = vpack.c.b16 %v1341, %v1340
        %v1395 = vpack.c.b16 %v1343, %v1342
        %v1396 = vpack.c.b16 %v1345, %v1344
        %v1397 = vpack.c.b16 %v1347, %v1346
        %v1398 = vpack.c.b16 %v1349, %v1348
        %v1399 = vpack.c.b16 %v1351, %v1350
        %v1400 = vpack.c.b16 %v1353, %v1352
        %v1401 = vpack.c.b16 %v1355, %v1354
        %v1402 = vpack.c.b16 %v1357, %v1356
        %v1403 = vpack.c.b16 %v1359, %v1358
        %v1404 = vpack.c.b16 %v1361, %v1360
        %v1405 = vpack.c.b16 %v1363, %v1362
        %v1406 = vpack.c.b16 %v1365, %v1364
        %v1407 = vpack.c.b16 %v1367, %v1366
        %v1408 = vpack.c.b16 %v1369, %v1368
        %v1409 = vpack.c.b16 %v1371, %v1370
        %v1410 = vpack.c.b16 %v1373, %v1372
        %v1411 = vpack.c.b16 %v1375, %v1374
        %v1412 = vpack.c.b16 %v1377, %v1376
        %v1413 = vpack.c.b16 %v1379, %v1378
        %v1414 = vpack.c.b16 %v1381, %v1380
        %v1415 = vpack.c.b16 %v1383, %v1382
        %1448 = vmatprep.subr.bf16.mxu0 0
        %1449 = vmatpush1.bf16.msra.mxu0 %v1384
        %1450 = vmatprep.subr.bf16.mxu0 0
        %1451 = vmatpush1.bf16.msra.mxu0 %v1385
        %1452 = vmatprep.subr.bf16.mxu0 0
        %1453 = vmatpush1.bf16.msra.mxu0 %v1386
        %1454 = vmatprep.subr.bf16.mxu0 0
        %1455 = vmatpush1.bf16.msra.mxu0 %v1387
        %1456 = vmatprep.subr.bf16.mxu0 0
        %1457 = vmatpush1.bf16.msra.mxu0 %v1388
        %1458 = vmatprep.subr.bf16.mxu0 0
        %1459 = vmatpush1.bf16.msra.mxu0 %v1389
        %1460 = vmatprep.subr.bf16.mxu0 0
        %1461 = vmatpush1.bf16.msra.mxu0 %v1390
        %1462 = vmatprep.subr.bf16.mxu0 0
        %1463 = vmatpush1.bf16.msra.mxu0 %v1391
        %1464 = vmatprep.subr.bf16.mxu0 0
        %1465 = vmatpush1.bf16.msra.mxu0 %v1392
        %1466 = vmatprep.subr.bf16.mxu0 0
        %1467 = vmatpush1.bf16.msra.mxu0 %v1393
        %1468 = vmatprep.subr.bf16.mxu0 0
        %1469 = vmatpush1.bf16.msra.mxu0 %v1394
        %1470 = vmatprep.subr.bf16.mxu0 0
        %1471 = vmatpush1.bf16.msra.mxu0 %v1395
        %1472 = vmatprep.subr.bf16.mxu0 0
        %1473 = vmatpush1.bf16.msra.mxu0 %v1396
        %1474 = vmatprep.subr.bf16.mxu0 0
        %1475 = vmatpush1.bf16.msra.mxu0 %v1397
        %1476 = vmatprep.subr.bf16.mxu0 0
        %1477 = vmatpush1.bf16.msra.mxu0 %v1398
        %1478 = vmatprep.subr.bf16.mxu0 0
        %1479 = vmatpush1.bf16.msra.mxu0 %v1399
        %1480 = vmatprep.mubr.bf16.mxu0 %v1171
        %1481 = vmatmul.mubr.bf16.gmra.mrb[0].mxu0 %v509
        %v1482 = vpop.f32.mrb[0].mxu0
        %v1483 = vadd.f32 %v603, %v1482
        %v1484 = vpop.f32.mrb[0].mxu0
        %v1485 = vpop.f32.mrb[0].mxu0
        %v1486 = vadd.f32 %v603, %v1485
        %v1487 = vpop.f32.mrb[0].mxu0
        %1488 = vmatprep.mubr.bf16.mxu0 %v1172
        %1489 = vmatmul.mubr.bf16.gmra.mrb[0].mxu0 %v510
        %v1490 = vpop.f32.mrb[0].mxu0
        %v1491 = vadd.f32 %v603, %v1490
        %v1492 = vpop.f32.mrb[0].mxu0
        %v1493 = vpop.f32.mrb[0].mxu0
        %v1494 = vadd.f32 %v603, %v1493
        %v1495 = vpop.f32.mrb[0].mxu0
        %1496 = vmatprep.mubr.bf16.mxu0 %v1173
        %1497 = vmatmul.mubr.bf16.gmra.mrb[0].mxu0 %v511
        %v1498 = vpop.f32.mrb[0].mxu0
        %v1499 = vadd.f32 %v603, %v1498
        %v1500 = vpop.f32.mrb[0].mxu0
        %v1501 = vpop.f32.mrb[0].mxu0
        %v1502 = vadd.f32 %v603, %v1501
        %v1503 = vpop.f32.mrb[0].mxu0
        %1504 = vmatprep.mubr.bf16.mxu0 %v1174
        %1505 = vmatmul.mubr.bf16.gmra.mrb[0].mxu0 %v512
        %v1506 = vpop.f32.mrb[0].mxu0
        %v1507 = vadd.f32 %v603, %v1506
        %v1508 = vpop.f32.mrb[0].mxu0
        %v1509 = vpop.f32.mrb[0].mxu0
        %v1510 = vadd.f32 %v603, %v1509
        %v1511 = vpop.f32.mrb[0].mxu0
        %1512 = vmatprep.mubr.bf16.mxu0 %v1175
        %1513 = vmatmul.mubr.bf16.gmra.mrb[0].mxu0 %v513
        %v1514 = vpop.f32.mrb[0].mxu0
        %v1515 = vadd.f32 %v603, %v1514
        %v1516 = vpop.f32.mrb[0].mxu0
        %v1517 = vpop.f32.mrb[0].mxu0
        %v1518 = vadd.f32 %v603, %v1517
        %v1519 = vpop.f32.mrb[0].mxu0
        %1520 = vmatprep.mubr.bf16.mxu0 %v1176
        %1521 = vmatmul.mubr.bf16.gmra.mrb[0].mxu0 %v514
        %v1522 = vpop.f32.mrb[0].mxu0
        %v1523 = vadd.f32 %v603, %v1522
        %v1524 = vpop.f32.mrb[0].mxu0
        %v1525 = vpop.f32.mrb[0].mxu0
        %v1526 = vadd.f32 %v603, %v1525
        %v1527 = vpop.f32.mrb[0].mxu0
        %1528 = vmatprep.mubr.bf16.mxu0 %v1177
        %1529 = vmatmul.mubr.bf16.gmra.mrb[0].mxu0 %v515
        %v1530 = vpop.f32.mrb[0].mxu0
        %v1531 = vadd.f32 %v603, %v1530
        %v1532 = vpop.f32.mrb[0].mxu0
        %v1533 = vpop.f32.mrb[0].mxu0
        %v1534 = vadd.f32 %v603, %v1533
        %v1535 = vpop.f32.mrb[0].mxu0
        %1536 = vmatprep.mubr.bf16.mxu0 %v1178
        %1537 = vmatmul.mubr.bf16.gmra.mrb[0].mxu0 %v516
        %v1538 = vpop.f32.mrb[0].mxu0
        %v1539 = vadd.f32 %v603, %v1538
        %v1540 = vpop.f32.mrb[0].mxu0
        %v1541 = vpop.f32.mrb[0].mxu0
        %v1542 = vadd.f32 %v603, %v1541
        %v1543 = vpop.f32.mrb[0].mxu0
        %1544 = vdwg.mxu0
        %1545 = vmatprep.subr.bf16.mxu0 0
        %1546 = vmatpush1.bf16.msra.mxu0 %v1400
        %1547 = vmatprep.subr.bf16.mxu0 0
        %1548 = vmatpush1.bf16.msra.mxu0 %v1401
        %1549 = vmatprep.subr.bf16.mxu0 0
        %1550 = vmatpush1.bf16.msra.mxu0 %v1402
        %1551 = vmatprep.subr.bf16.mxu0 0
        %1552 = vmatpush1.bf16.msra.mxu0 %v1403
        %1553 = vmatprep.subr.bf16.mxu0 0
        %1554 = vmatpush1.bf16.msra.mxu0 %v1404
        %1555 = vmatprep.subr.bf16.mxu0 0
        %1556 = vmatpush1.bf16.msra.mxu0 %v1405
        %1557 = vmatprep.subr.bf16.mxu0 0
        %1558 = vmatpush1.bf16.msra.mxu0 %v1406
        %1559 = vmatprep.subr.bf16.mxu0 0
        %1560 = vmatpush1.bf16.msra.mxu0 %v1407
        %1561 = vmatprep.subr.bf16.mxu0 0
        %1562 = vmatpush1.bf16.msra.mxu0 %v1408
        %1563 = vmatprep.subr.bf16.mxu0 0
        %1564 = vmatpush1.bf16.msra.mxu0 %v1409
        %1565 = vmatprep.subr.bf16.mxu0 0
        %1566 = vmatpush1.bf16.msra.mxu0 %v1410
        %1567 = vmatprep.subr.bf16.mxu0 0
        %1568 = vmatpush1.bf16.msra.mxu0 %v1411
        %1569 = vmatprep.subr.bf16.mxu0 0
        %1570 = vmatpush1.bf16.msra.mxu0 %v1412
        %1571 = vmatprep.subr.bf16.mxu0 0
        %1572 = vmatpush1.bf16.msra.mxu0 %v1413
        %1573 = vmatprep.subr.bf16.mxu0 0
        %1574 = vmatpush1.bf16.msra.mxu0 %v1414
        %1575 = vmatprep.subr.bf16.mxu0 0
        %1576 = vmatpush1.bf16.msra.mxu0 %v1415
        %1577 = vmatprep.mubr.bf16.mxu0 %v1172
        %1578 = vmatmul.mubr.bf16.gmra.mrb[0].mxu0 %v510
        %v1579 = vpop.f32.mrb[0].mxu0
        %v1580 = vadd.f32 %v1483, %v1579
        %v1581 = vpop.f32.mrb[0].mxu0
        %v1582 = vpop.f32.mrb[0].mxu0
        %v1583 = vadd.f32 %v1486, %v1582
        %v1584 = vpop.f32.mrb[0].mxu0
        %1585 = vmatprep.mubr.bf16.mxu0 %v1173
        %1586 = vmatmul.mubr.bf16.gmra.mrb[0].mxu0 %v511
        %v1587 = vpop.f32.mrb[0].mxu0
        %v1588 = vadd.f32 %v1491, %v1587
        %v1589 = vpop.f32.mrb[0].mxu0
        %v1590 = vpop.f32.mrb[0].mxu0
        %v1591 = vadd.f32 %v1494, %v1590
        %v1592 = vpop.f32.mrb[0].mxu0
        %1593 = vmatprep.mubr.bf16.mxu0 %v1174
        %1594 = vmatmul.mubr.bf16.gmra.mrb[0].mxu0 %v512
        %v1595 = vpop.f32.mrb[0].mxu0
        %v1596 = vadd.f32 %v1499, %v1595
        %v1597 = vpop.f32.mrb[0].mxu0
        %v1598 = vpop.f32.mrb[0].mxu0
        %v1599 = vadd.f32 %v1502, %v1598
        %v1600 = vpop.f32.mrb[0].mxu0
        %1601 = vmatprep.mubr.bf16.mxu0 %v1175
        %1602 = vmatmul.mubr.bf16.gmra.mrb[0].mxu0 %v513
        %v1603 = vpop.f32.mrb[0].mxu0
        %v1604 = vadd.f32 %v1507, %v1603
        %v1605 = vpop.f32.mrb[0].mxu0
        %v1606 = vpop.f32.mrb[0].mxu0
        %v1607 = vadd.f32 %v1510, %v1606
        %v1608 = vpop.f32.mrb[0].mxu0
        %1609 = vmatprep.mubr.bf16.mxu0 %v1176
        %1610 = vmatmul.mubr.bf16.gmra.mrb[0].mxu0 %v514
        %v1611 = vpop.f32.mrb[0].mxu0
        %v1612 = vadd.f32 %v1515, %v1611
        %v1613 = vpop.f32.mrb[0].mxu0
        %v1614 = vpop.f32.mrb[0].mxu0
        %v1615 = vadd.f32 %v1518, %v1614
        %v1616 = vpop.f32.mrb[0].mxu0
        %1617 = vmatprep.mubr.bf16.mxu0 %v1177
        %1618 = vmatmul.mubr.bf16.gmra.mrb[0].mxu0 %v515
        %v1619 = vpop.f32.mrb[0].mxu0
        %v1620 = vadd.f32 %v1523, %v1619
        %v1621 = vpop.f32.mrb[0].mxu0
        %v1622 = vpop.f32.mrb[0].mxu0
        %v1623 = vadd.f32 %v1526, %v1622
        %v1624 = vpop.f32.mrb[0].mxu0
        %1625 = vmatprep.mubr.bf16.mxu0 %v1178
        %1626 = vmatmul.mubr.bf16.gmra.mrb[0].mxu0 %v516
        %v1627 = vpop.f32.mrb[0].mxu0
        %v1628 = vadd.f32 %v1531, %v1627
        %v1629 = vpop.f32.mrb[0].mxu0
        %v1630 = vpop.f32.mrb[0].mxu0
        %v1631 = vadd.f32 %v1534, %v1630
        %v1632 = vpop.f32.mrb[0].mxu0
        %1633 = vmatprep.mubr.bf16.mxu0 %v1189
        %1634 = vmatmul.mubr.bf16.gmra.mrb[0].mxu0 %v533
        %v1635 = vpop.f32.mrb[0].mxu0
        %v1636 = vadd.f32 %v1539, %v1635
        %v1637 = vpop.f32.mrb[0].mxu0
        %v1638 = vpop.f32.mrb[0].mxu0
        %v1639 = vadd.f32 %v1542, %v1638
        %v1640 = vpop.f32.mrb[0].mxu0
        %1641 = vdwg.mxu0
        %v1642 = vpack.c.bf16 %v1583, %v1580
        %v1643 = vpack.c.bf16 %v1591, %v1588
        %v1644 = vpack.c.bf16 %v1599, %v1596
        %v1645 = vpack.c.bf16 %v1607, %v1604
        %v1646 = vpack.c.bf16 %v1615, %v1612
        %v1647 = vpack.c.bf16 %v1623, %v1620
        %v1648 = vpack.c.bf16 %v1631, %v1628
        %v1649 = vpack.c.bf16 %v1639, %v1636
        %v1658 = vunpack.c.l.b16 %v1642
        %v1659 = vunpack.c.h.b16 %v1642
        %v1660 = vunpack.c.l.b16 %v1643
        %v1661 = vunpack.c.h.b16 %v1643
        %v1662 = vunpack.c.l.b16 %v1644
        %v1663 = vunpack.c.h.b16 %v1644
        %v1664 = vunpack.c.l.b16 %v1645
        %v1665 = vunpack.c.h.b16 %v1645
        %v1666 = vunpack.c.l.b16 %v1646
        %v1667 = vunpack.c.h.b16 %v1646
        %v1668 = vunpack.c.l.b16 %v1647
        %v1669 = vunpack.c.h.b16 %v1647
        %v1670 = vunpack.c.l.b16 %v1648
        %v1671 = vunpack.c.h.b16 %v1648
        %v1672 = vunpack.c.l.b16 %v1649
        %v1673 = vunpack.c.h.b16 %v1649
        %v1674 = vpack.c.b16 %v1658, %v1658
        %v1675 = vpack.c.b16 %v1659, %v1659
        %v1676 = vpack.c.b16 %v1660, %v1660
        %v1677 = vpack.c.b16 %v1661, %v1661
        %v1678 = vpack.c.b16 %v1662, %v1662
        %v1679 = vpack.c.b16 %v1663, %v1663
        %v1680 = vpack.c.b16 %v1664, %v1664
        %v1681 = vpack.c.b16 %v1665, %v1665
        %v1682 = vpack.c.b16 %v1666, %v1666
        %v1683 = vpack.c.b16 %v1667, %v1667
        %v1684 = vpack.c.b16 %v1668, %v1668
        %v1685 = vpack.c.b16 %v1669, %v1669
        %v1686 = vpack.c.b16 %v1670, %v1670
        %v1687 = vpack.c.b16 %v1671, %v1671
        %v1688 = vpack.c.b16 %v1672, %v1672
        %v1689 = vpack.c.b16 %v1673, %v1673
        %s1706 = scalar_lea.vmem %s173, 64 [#allocation2]
        %1707 = vst [vmem:[%s1706] sm:$0xf] %v1674
        %1708 = vst [vmem:[%s1706 + $0x4] sm:$0xf] %v1675
        %1709 = vst [vmem:[%s1706 + $0x8] sm:$0xf] %v1676
        %1710 = vst [vmem:[%s1706 + $0xc] sm:$0xf] %v1677
        %1711 = vst [vmem:[%s1706 + $0x10] sm:$0xf] %v1678
        %1712 = vst [vmem:[%s1706 + $0x14] sm:$0xf] %v1679
        %1713 = vst [vmem:[%s1706 + $0x18] sm:$0xf] %v1680
        %1714 = vst [vmem:[%s1706 + $0x1c] sm:$0xf] %v1681
        %1715 = vst [vmem:[%s1706 + $0x20] sm:$0xf] %v1682
        %1716 = vst [vmem:[%s1706 + $0x24] sm:$0xf] %v1683
        %1717 = vst [vmem:[%s1706 + $0x28] sm:$0xf] %v1684
        %1718 = vst [vmem:[%s1706 + $0x2c] sm:$0xf] %v1685
        %1719 = vst [vmem:[%s1706 + $0x30] sm:$0xf] %v1686
        %1720 = vst [vmem:[%s1706 + $0x34] sm:$0xf] %v1687
        %1721 = vst [vmem:[%s1706 + $0x38] sm:$0xf] %v1688
        %1722 = vst [vmem:[%s1706 + $0x3c] sm:$0xf] %v1689
        %v1724 = vshrl.u32 %v203, 16
        %v1726 = vrot.slane %v1724, 4
        %v1727 = vshll.u32 %v203, 16
        %v1729 = vrot.slane %v1727, 5
        %v1730 = vor.u32 %v1726, %v1729
        %v1731 = vrot.slane %v1730, 4
        %v1733 = vshll.u32 %v204, 16
        %v1735 = vrot.slane %v1733, 5
        %v1736 = vsel %vm228, %v1731, %v1735
        %v1737 = vshrl.u32 %v204, 16
        %v1739 = vrot.slane %v1737, 4
        %v1740 = vor.u32 %v1739, %v1735
        %v1741 = vrot.slane %v1740, 4
        %v1743 = vshll.u32 %v214, 16
        %v1745 = vrot.slane %v1743, 5
        %v1746 = vsel %vm228, %v1741, %v1745
        %v1749 = vunpack.c.l.b16 %v203
        %v1750 = vunpack.c.l.b16 %v204
        %v1751 = vpack.c.b16 %v1750, %v1749
        %v1753 = vunpack.c.l.b16 %v1736
        %v1754 = vunpack.c.l.b16 %v1746
        %v1755 = vpack.c.b16 %v1754, %v1753
        %s1757 = scalar_lea.vmem %s1, 512
        %v1758 = vld [vmem:[%s1757] sm:$0xf]
        %v1759 = vld [vmem:[%s1757 + $0x4] sm:$0xf]
        %v1760 = vld [vmem:[%s1757 + $0x8] sm:$0xf]
        %v1761 = vld [vmem:[%s1757 + $0xc] sm:$0xf]
        %v1762 = vld [vmem:[%s1757 + $0x10] sm:$0xf]
        %v1763 = vld [vmem:[%s1757 + $0x14] sm:$0xf]
        %v1764 = vld [vmem:[%s1757 + $0x18] sm:$0xf]
        %v1765 = vld [vmem:[%s1757 + $0x1c] sm:$0xf]
        %v1766 = vld [vmem:[%s1757 + $0x20] sm:$0xf]
        %v1767 = vld [vmem:[%s1757 + $0x24] sm:$0xf]
        %v1768 = vld [vmem:[%s1757 + $0x28] sm:$0xf]
        %v1769 = vld [vmem:[%s1757 + $0x2c] sm:$0xf]
        %v1770 = vld [vmem:[%s1757 + $0x30] sm:$0xf]
        %v1771 = vld [vmem:[%s1757 + $0x34] sm:$0xf]
        %v1772 = vld [vmem:[%s1757 + $0x38] sm:$0xf]
        %v1773 = vld [vmem:[%s1757 + $0x3c] sm:$0xf]
        %v1774 = vld [vmem:[%s1757 + $0x40] sm:$0xf]
        %v1775 = vld [vmem:[%s1757 + $0x44] sm:$0xf]
        %v1776 = vld [vmem:[%s1757 + $0x48] sm:$0xf]
        %v1777 = vld [vmem:[%s1757 + $0x4c] sm:$0xf]
        %v1778 = vld [vmem:[%s1757 + $0x50] sm:$0xf]
        %v1779 = vld [vmem:[%s1757 + $0x54] sm:$0xf]
        %v1780 = vld [vmem:[%s1757 + $0x58] sm:$0xf]
        %v1781 = vld [vmem:[%s1757 + $0x5c] sm:$0xf]
        %v1782 = vld [vmem:[%s1757 + $0x60] sm:$0xf]
        %v1783 = vld [vmem:[%s1757 + $0x64] sm:$0xf]
        %v1784 = vld [vmem:[%s1757 + $0x68] sm:$0xf]
        %v1785 = vld [vmem:[%s1757 + $0x6c] sm:$0xf]
        %v1786 = vld [vmem:[%s1757 + $0x70] sm:$0xf]
        %v1787 = vld [vmem:[%s1757 + $0x74] sm:$0xf]
        %v1788 = vld [vmem:[%s1757 + $0x78] sm:$0xf]
        %v1789 = vld [vmem:[%s1757 + $0x7c] sm:$0xf]
        %v1790 = vld [vmem:[%s1757 + $0x80] sm:$0xf]
        %v1791 = vld [vmem:[%s1757 + $0x84] sm:$0xf]
        %v1792 = vld [vmem:[%s1757 + $0x88] sm:$0xf]
        %v1793 = vld [vmem:[%s1757 + $0x8c] sm:$0xf]
        %v1794 = vld [vmem:[%s1757 + $0x90] sm:$0xf]
        %v1795 = vld [vmem:[%s1757 + $0x94] sm:$0xf]
        %v1796 = vld [vmem:[%s1757 + $0x98] sm:$0xf]
        %v1797 = vld [vmem:[%s1757 + $0x9c] sm:$0xf]
        %v1798 = vld [vmem:[%s1757 + $0xa0] sm:$0xf]
        %v1799 = vld [vmem:[%s1757 + $0xa4] sm:$0xf]
        %v1800 = vld [vmem:[%s1757 + $0xa8] sm:$0xf]
        %v1801 = vld [vmem:[%s1757 + $0xac] sm:$0xf]
        %v1802 = vld [vmem:[%s1757 + $0xb0] sm:$0xf]
        %v1803 = vld [vmem:[%s1757 + $0xb4] sm:$0xf]
        %v1804 = vld [vmem:[%s1757 + $0xb8] sm:$0xf]
        %v1805 = vld [vmem:[%s1757 + $0xbc] sm:$0xf]
        %v1806 = vld [vmem:[%s1757 + $0xc0] sm:$0xf]
        %v1807 = vld [vmem:[%s1757 + $0xc4] sm:$0xf]
        %v1808 = vld [vmem:[%s1757 + $0xc8] sm:$0xf]
        %v1809 = vld [vmem:[%s1757 + $0xcc] sm:$0xf]
        %v1810 = vld [vmem:[%s1757 + $0xd0] sm:$0xf]
        %v1811 = vld [vmem:[%s1757 + $0xd4] sm:$0xf]
        %v1812 = vld [vmem:[%s1757 + $0xd8] sm:$0xf]
        %v1813 = vld [vmem:[%s1757 + $0xdc] sm:$0xf]
        %v1814 = vld [vmem:[%s1757 + $0xe0] sm:$0xf]
        %v1815 = vld [vmem:[%s1757 + $0xe4] sm:$0xf]
        %v1816 = vld [vmem:[%s1757 + $0xe8] sm:$0xf]
        %v1817 = vld [vmem:[%s1757 + $0xec] sm:$0xf]
        %v1818 = vld [vmem:[%s1757 + $0xf0] sm:$0xf]
        %v1819 = vld [vmem:[%s1757 + $0xf4] sm:$0xf]
        %v1820 = vld [vmem:[%s1757 + $0xf8] sm:$0xf]
        %v1821 = vld [vmem:[%s1757 + $0xfc] sm:$0xf]
        %v1886 = vunpack.c.l.b16 %v1758
        %v1887 = vunpack.c.l.b16 %v1759
        %v1888 = vunpack.c.l.b16 %v1760
        %v1889 = vunpack.c.l.b16 %v1761
        %v1890 = vunpack.c.l.b16 %v1762
        %v1891 = vunpack.c.l.b16 %v1763
        %v1892 = vunpack.c.l.b16 %v1764
        %v1893 = vunpack.c.l.b16 %v1765
        %v1894 = vunpack.c.l.b16 %v1766
        %v1895 = vunpack.c.l.b16 %v1767
        %v1896 = vunpack.c.l.b16 %v1768
        %v1897 = vunpack.c.l.b16 %v1769
        %v1898 = vunpack.c.l.b16 %v1770
        %v1899 = vunpack.c.l.b16 %v1771
        %v1900 = vunpack.c.l.b16 %v1772
        %v1901 = vunpack.c.l.b16 %v1773
        %v1902 = vunpack.c.l.b16 %v1774
        %v1903 = vunpack.c.l.b16 %v1775
        %v1904 = vunpack.c.l.b16 %v1776
        %v1905 = vunpack.c.l.b16 %v1777
        %v1906 = vunpack.c.l.b16 %v1778
        %v1907 = vunpack.c.l.b16 %v1779
        %v1908 = vunpack.c.l.b16 %v1780
        %v1909 = vunpack.c.l.b16 %v1781
        %v1910 = vunpack.c.l.b16 %v1782
        %v1911 = vunpack.c.l.b16 %v1783
        %v1912 = vunpack.c.l.b16 %v1784
        %v1913 = vunpack.c.l.b16 %v1785
        %v1914 = vunpack.c.l.b16 %v1786
        %v1915 = vunpack.c.l.b16 %v1787
        %v1916 = vunpack.c.l.b16 %v1788
        %v1917 = vunpack.c.l.b16 %v1789
        %v1918 = vunpack.c.l.b16 %v1790
        %v1919 = vunpack.c.l.b16 %v1791
        %v1920 = vunpack.c.l.b16 %v1792
        %v1921 = vunpack.c.l.b16 %v1793
        %v1922 = vunpack.c.l.b16 %v1794
        %v1923 = vunpack.c.l.b16 %v1795
        %v1924 = vunpack.c.l.b16 %v1796
        %v1925 = vunpack.c.l.b16 %v1797
        %v1926 = vunpack.c.l.b16 %v1798
        %v1927 = vunpack.c.l.b16 %v1799
        %v1928 = vunpack.c.l.b16 %v1800
        %v1929 = vunpack.c.l.b16 %v1801
        %v1930 = vunpack.c.l.b16 %v1802
        %v1931 = vunpack.c.l.b16 %v1803
        %v1932 = vunpack.c.l.b16 %v1804
        %v1933 = vunpack.c.l.b16 %v1805
        %v1934 = vunpack.c.l.b16 %v1806
        %v1935 = vunpack.c.l.b16 %v1807
        %v1936 = vunpack.c.l.b16 %v1808
        %v1937 = vunpack.c.l.b16 %v1809
        %v1938 = vunpack.c.l.b16 %v1810
        %v1939 = vunpack.c.l.b16 %v1811
        %v1940 = vunpack.c.l.b16 %v1812
        %v1941 = vunpack.c.l.b16 %v1813
        %v1942 = vunpack.c.l.b16 %v1814
        %v1943 = vunpack.c.l.b16 %v1815
        %v1944 = vunpack.c.l.b16 %v1816
        %v1945 = vunpack.c.l.b16 %v1817
        %v1946 = vunpack.c.l.b16 %v1818
        %v1947 = vunpack.c.l.b16 %v1819
        %v1948 = vunpack.c.l.b16 %v1820
        %v1949 = vunpack.c.l.b16 %v1821
        %v1950 = vpack.c.b16 %v1887, %v1886
        %v1951 = vpack.c.b16 %v1889, %v1888
        %v1952 = vpack.c.b16 %v1891, %v1890
        %v1953 = vpack.c.b16 %v1893, %v1892
        %v1954 = vpack.c.b16 %v1895, %v1894
        %v1955 = vpack.c.b16 %v1897, %v1896
        %v1956 = vpack.c.b16 %v1899, %v1898
        %v1957 = vpack.c.b16 %v1901, %v1900
        %v1958 = vpack.c.b16 %v1903, %v1902
        %v1959 = vpack.c.b16 %v1905, %v1904
        %v1960 = vpack.c.b16 %v1907, %v1906
        %v1961 = vpack.c.b16 %v1909, %v1908
        %v1962 = vpack.c.b16 %v1911, %v1910
        %v1963 = vpack.c.b16 %v1913, %v1912
        %v1964 = vpack.c.b16 %v1915, %v1914
        %v1965 = vpack.c.b16 %v1917, %v1916
        %v1966 = vpack.c.b16 %v1919, %v1918
        %v1967 = vpack.c.b16 %v1921, %v1920
        %v1968 = vpack.c.b16 %v1923, %v1922
        %v1969 = vpack.c.b16 %v1925, %v1924
        %v1970 = vpack.c.b16 %v1927, %v1926
        %v1971 = vpack.c.b16 %v1929, %v1928
        %v1972 = vpack.c.b16 %v1931, %v1930
        %v1973 = vpack.c.b16 %v1933, %v1932
        %v1974 = vpack.c.b16 %v1935, %v1934
        %v1975 = vpack.c.b16 %v1937, %v1936
        %v1976 = vpack.c.b16 %v1939, %v1938
        %v1977 = vpack.c.b16 %v1941, %v1940
        %v1978 = vpack.c.b16 %v1943, %v1942
        %v1979 = vpack.c.b16 %v1945, %v1944
        %v1980 = vpack.c.b16 %v1947, %v1946
        %v1981 = vpack.c.b16 %v1949, %v1948
        %2014 = vmatprep.subr.bf16.mxu0 0
        %2015 = vmatpush1.bf16.msra.mxu0 %v1950
        %2016 = vmatprep.subr.bf16.mxu0 0
        %2017 = vmatpush1.bf16.msra.mxu0 %v1951
        %2018 = vmatprep.subr.bf16.mxu0 0
        %2019 = vmatpush1.bf16.msra.mxu0 %v1952
        %2020 = vmatprep.subr.bf16.mxu0 0
        %2021 = vmatpush1.bf16.msra.mxu0 %v1953
        %2022 = vmatprep.subr.bf16.mxu0 0
        %2023 = vmatpush1.bf16.msra.mxu0 %v1954
        %2024 = vmatprep.subr.bf16.mxu0 0
        %2025 = vmatpush1.bf16.msra.mxu0 %v1955
        %2026 = vmatprep.subr.bf16.mxu0 0
        %2027 = vmatpush1.bf16.msra.mxu0 %v1956
        %2028 = vmatprep.subr.bf16.mxu0 0
        %2029 = vmatpush1.bf16.msra.mxu0 %v1957
        %2030 = vmatprep.subr.bf16.mxu0 0
        %2031 = vmatpush1.bf16.msra.mxu0 %v1958
        %2032 = vmatprep.subr.bf16.mxu0 0
        %2033 = vmatpush1.bf16.msra.mxu0 %v1959
        %2034 = vmatprep.subr.bf16.mxu0 0
        %2035 = vmatpush1.bf16.msra.mxu0 %v1960
        %2036 = vmatprep.subr.bf16.mxu0 0
        %2037 = vmatpush1.bf16.msra.mxu0 %v1961
        %2038 = vmatprep.subr.bf16.mxu0 0
        %2039 = vmatpush1.bf16.msra.mxu0 %v1962
        %2040 = vmatprep.subr.bf16.mxu0 0
        %2041 = vmatpush1.bf16.msra.mxu0 %v1963
        %2042 = vmatprep.subr.bf16.mxu0 0
        %2043 = vmatpush1.bf16.msra.mxu0 %v1964
        %2044 = vmatprep.subr.bf16.mxu0 0
        %2045 = vmatpush1.bf16.msra.mxu0 %v1965
        %2046 = vmatprep.mubr.bf16.mxu0 %v510
        %2047 = vmatmul.mubr.bf16.gmra.mrb[0].mxu0 %v478
        %v2048 = vpop.f32.mrb[0].mxu0
        %v2049 = vadd.f32 %v603, %v2048
        %v2050 = vpop.f32.mrb[0].mxu0
        %v2051 = vpop.f32.mrb[0].mxu0
        %v2052 = vadd.f32 %v603, %v2051
        %v2053 = vpop.f32.mrb[0].mxu0
        %2054 = vmatprep.mubr.bf16.mxu0 %v511
        %2055 = vmatmul.mubr.bf16.gmra.mrb[0].mxu0 %v479
        %v2056 = vpop.f32.mrb[0].mxu0
        %v2057 = vadd.f32 %v603, %v2056
        %v2058 = vpop.f32.mrb[0].mxu0
        %v2059 = vpop.f32.mrb[0].mxu0
        %v2060 = vadd.f32 %v603, %v2059
        %v2061 = vpop.f32.mrb[0].mxu0
        %2062 = vmatprep.mubr.bf16.mxu0 %v512
        %2063 = vmatmul.mubr.bf16.gmra.mrb[0].mxu0 %v480
        %v2064 = vpop.f32.mrb[0].mxu0
        %v2065 = vadd.f32 %v603, %v2064
        %v2066 = vpop.f32.mrb[0].mxu0
        %v2067 = vpop.f32.mrb[0].mxu0
        %v2068 = vadd.f32 %v603, %v2067
        %v2069 = vpop.f32.mrb[0].mxu0
        %2070 = vmatprep.mubr.bf16.mxu0 %v513
        %2071 = vmatmul.mubr.bf16.gmra.mrb[0].mxu0 %v481
        %v2072 = vpop.f32.mrb[0].mxu0
        %v2073 = vadd.f32 %v603, %v2072
        %v2074 = vpop.f32.mrb[0].mxu0
        %v2075 = vpop.f32.mrb[0].mxu0
        %v2076 = vadd.f32 %v603, %v2075
        %v2077 = vpop.f32.mrb[0].mxu0
        %2078 = vmatprep.mubr.bf16.mxu0 %v514
        %2079 = vmatmul.mubr.bf16.gmra.mrb[0].mxu0 %v482
        %v2080 = vpop.f32.mrb[0].mxu0
        %v2081 = vadd.f32 %v603, %v2080
        %v2082 = vpop.f32.mrb[0].mxu0
        %v2083 = vpop.f32.mrb[0].mxu0
        %v2084 = vadd.f32 %v603, %v2083
        %v2085 = vpop.f32.mrb[0].mxu0
        %2086 = vmatprep.mubr.bf16.mxu0 %v515
        %2087 = vmatmul.mubr.bf16.gmra.mrb[0].mxu0 %v483
        %v2088 = vpop.f32.mrb[0].mxu0
        %v2089 = vadd.f32 %v603, %v2088
        %v2090 = vpop.f32.mrb[0].mxu0
        %v2091 = vpop.f32.mrb[0].mxu0
        %v2092 = vadd.f32 %v603, %v2091
        %v2093 = vpop.f32.mrb[0].mxu0
        %2094 = vmatprep.mubr.bf16.mxu0 %v516
        %2095 = vmatmul.mubr.bf16.gmra.mrb[0].mxu0 %v484
        %v2096 = vpop.f32.mrb[0].mxu0
        %v2097 = vadd.f32 %v603, %v2096
        %v2098 = vpop.f32.mrb[0].mxu0
        %v2099 = vpop.f32.mrb[0].mxu0
        %v2100 = vadd.f32 %v603, %v2099
        %v2101 = vpop.f32.mrb[0].mxu0
        %2102 = vmatprep.mubr.bf16.mxu0 %v533
        %2103 = vmatmul.mubr.bf16.gmra.mrb[0].mxu0 %v529
        %v2104 = vpop.f32.mrb[0].mxu0
        %v2105 = vadd.f32 %v603, %v2104
        %v2106 = vpop.f32.mrb[0].mxu0
        %v2107 = vpop.f32.mrb[0].mxu0
        %v2108 = vadd.f32 %v603, %v2107
        %v2109 = vpop.f32.mrb[0].mxu0
        %2110 = vdwg.mxu0
        %2111 = vmatprep.subr.bf16.mxu0 0
        %2112 = vmatpush1.bf16.msra.mxu0 %v1966
        %2113 = vmatprep.subr.bf16.mxu0 0
        %2114 = vmatpush1.bf16.msra.mxu0 %v1967
        %2115 = vmatprep.subr.bf16.mxu0 0
        %2116 = vmatpush1.bf16.msra.mxu0 %v1968
        %2117 = vmatprep.subr.bf16.mxu0 0
        %2118 = vmatpush1.bf16.msra.mxu0 %v1969
        %2119 = vmatprep.subr.bf16.mxu0 0
        %2120 = vmatpush1.bf16.msra.mxu0 %v1970
        %2121 = vmatprep.subr.bf16.mxu0 0
        %2122 = vmatpush1.bf16.msra.mxu0 %v1971
        %2123 = vmatprep.subr.bf16.mxu0 0
        %2124 = vmatpush1.bf16.msra.mxu0 %v1972
        %2125 = vmatprep.subr.bf16.mxu0 0
        %2126 = vmatpush1.bf16.msra.mxu0 %v1973
        %2127 = vmatprep.subr.bf16.mxu0 0
        %2128 = vmatpush1.bf16.msra.mxu0 %v1974
        %2129 = vmatprep.subr.bf16.mxu0 0
        %2130 = vmatpush1.bf16.msra.mxu0 %v1975
        %2131 = vmatprep.subr.bf16.mxu0 0
        %2132 = vmatpush1.bf16.msra.mxu0 %v1976
        %2133 = vmatprep.subr.bf16.mxu0 0
        %2134 = vmatpush1.bf16.msra.mxu0 %v1977
        %2135 = vmatprep.subr.bf16.mxu0 0
        %2136 = vmatpush1.bf16.msra.mxu0 %v1978
        %2137 = vmatprep.subr.bf16.mxu0 0
        %2138 = vmatpush1.bf16.msra.mxu0 %v1979
        %2139 = vmatprep.subr.bf16.mxu0 0
        %2140 = vmatpush1.bf16.msra.mxu0 %v1980
        %2141 = vmatprep.subr.bf16.mxu0 0
        %2142 = vmatpush1.bf16.msra.mxu0 %v1981
        %2143 = vmatprep.mubr.bf16.mxu0 %v511
        %2144 = vmatmul.mubr.bf16.gmra.mrb[0].mxu0 %v479
        %v2145 = vpop.f32.mrb[0].mxu0
        %v2146 = vadd.f32 %v2049, %v2145
        %v2147 = vpop.f32.mrb[0].mxu0
        %v2148 = vpop.f32.mrb[0].mxu0
        %v2149 = vadd.f32 %v2052, %v2148
        %v2150 = vpop.f32.mrb[0].mxu0
        %2151 = vmatprep.mubr.bf16.mxu0 %v512
        %2152 = vmatmul.mubr.bf16.gmra.mrb[0].mxu0 %v480
        %v2153 = vpop.f32.mrb[0].mxu0
        %v2154 = vadd.f32 %v2057, %v2153
        %v2155 = vpop.f32.mrb[0].mxu0
        %v2156 = vpop.f32.mrb[0].mxu0
        %v2157 = vadd.f32 %v2060, %v2156
        %v2158 = vpop.f32.mrb[0].mxu0
        %2159 = vmatprep.mubr.bf16.mxu0 %v513
        %2160 = vmatmul.mubr.bf16.gmra.mrb[0].mxu0 %v481
        %v2161 = vpop.f32.mrb[0].mxu0
        %v2162 = vadd.f32 %v2065, %v2161
        %v2163 = vpop.f32.mrb[0].mxu0
        %v2164 = vpop.f32.mrb[0].mxu0
        %v2165 = vadd.f32 %v2068, %v2164
        %v2166 = vpop.f32.mrb[0].mxu0
        %2167 = vmatprep.mubr.bf16.mxu0 %v514
        %2168 = vmatmul.mubr.bf16.gmra.mrb[0].mxu0 %v482
        %v2169 = vpop.f32.mrb[0].mxu0
        %v2170 = vadd.f32 %v2073, %v2169
        %v2171 = vpop.f32.mrb[0].mxu0
        %v2172 = vpop.f32.mrb[0].mxu0
        %v2173 = vadd.f32 %v2076, %v2172
        %v2174 = vpop.f32.mrb[0].mxu0
        %2175 = vmatprep.mubr.bf16.mxu0 %v515
        %2176 = vmatmul.mubr.bf16.gmra.mrb[0].mxu0 %v483
        %v2177 = vpop.f32.mrb[0].mxu0
        %v2178 = vadd.f32 %v2081, %v2177
        %v2179 = vpop.f32.mrb[0].mxu0
        %v2180 = vpop.f32.mrb[0].mxu0
        %v2181 = vadd.f32 %v2084, %v2180
        %v2182 = vpop.f32.mrb[0].mxu0
        %2183 = vmatprep.mubr.bf16.mxu0 %v516
        %2184 = vmatmul.mubr.bf16.gmra.mrb[0].mxu0 %v484
        %v2185 = vpop.f32.mrb[0].mxu0
        %v2186 = vadd.f32 %v2089, %v2185
        %v2187 = vpop.f32.mrb[0].mxu0
        %v2188 = vpop.f32.mrb[0].mxu0
        %v2189 = vadd.f32 %v2092, %v2188
        %v2190 = vpop.f32.mrb[0].mxu0
        %2191 = vmatprep.mubr.bf16.mxu0 %v533
        %2192 = vmatmul.mubr.bf16.gmra.mrb[0].mxu0 %v529
        %v2193 = vpop.f32.mrb[0].mxu0
        %v2194 = vadd.f32 %v2097, %v2193
        %v2195 = vpop.f32.mrb[0].mxu0
        %v2196 = vpop.f32.mrb[0].mxu0
        %v2197 = vadd.f32 %v2100, %v2196
        %v2198 = vpop.f32.mrb[0].mxu0
        %2199 = vmatprep.mubr.bf16.mxu0 %v1755
        %2200 = vmatmul.mubr.bf16.gmra.mrb[0].mxu0 %v1751
        %v2201 = vpop.f32.mrb[0].mxu0
        %v2202 = vadd.f32 %v2105, %v2201
        %v2203 = vpop.f32.mrb[0].mxu0
        %v2204 = vpop.f32.mrb[0].mxu0
        %v2205 = vadd.f32 %v2108, %v2204
        %v2206 = vpop.f32.mrb[0].mxu0
        %2207 = vdwg.mxu0
        %v2208 = vpack.c.bf16 %v2149, %v2146
        %v2209 = vpack.c.bf16 %v2157, %v2154
        %v2210 = vpack.c.bf16 %v2165, %v2162
        %v2211 = vpack.c.bf16 %v2173, %v2170
        %v2212 = vpack.c.bf16 %v2181, %v2178
        %v2213 = vpack.c.bf16 %v2189, %v2186
        %v2214 = vpack.c.bf16 %v2197, %v2194
        %v2215 = vpack.c.bf16 %v2205, %v2202
        %v2224 = vunpack.c.l.b16 %v2208
        %v2225 = vunpack.c.h.b16 %v2208
        %v2226 = vunpack.c.l.b16 %v2209
        %v2227 = vunpack.c.h.b16 %v2209
        %v2228 = vunpack.c.l.b16 %v2210
        %v2229 = vunpack.c.h.b16 %v2210
        %v2230 = vunpack.c.l.b16 %v2211
        %v2231 = vunpack.c.h.b16 %v2211
        %v2232 = vunpack.c.l.b16 %v2212
        %v2233 = vunpack.c.h.b16 %v2212
        %v2234 = vunpack.c.l.b16 %v2213
        %v2235 = vunpack.c.h.b16 %v2213
        %v2236 = vunpack.c.l.b16 %v2214
        %v2237 = vunpack.c.h.b16 %v2214
        %v2238 = vunpack.c.l.b16 %v2215
        %v2239 = vunpack.c.h.b16 %v2215
        %v2240 = vpack.c.b16 %v2224, %v2224
        %v2241 = vpack.c.b16 %v2225, %v2225
        %v2242 = vpack.c.b16 %v2226, %v2226
        %v2243 = vpack.c.b16 %v2227, %v2227
        %v2244 = vpack.c.b16 %v2228, %v2228
        %v2245 = vpack.c.b16 %v2229, %v2229
        %v2246 = vpack.c.b16 %v2230, %v2230
        %v2247 = vpack.c.b16 %v2231, %v2231
        %v2248 = vpack.c.b16 %v2232, %v2232
        %v2249 = vpack.c.b16 %v2233, %v2233
        %v2250 = vpack.c.b16 %v2234, %v2234
        %v2251 = vpack.c.b16 %v2235, %v2235
        %v2252 = vpack.c.b16 %v2236, %v2236
        %v2253 = vpack.c.b16 %v2237, %v2237
        %v2254 = vpack.c.b16 %v2238, %v2238
        %v2255 = vpack.c.b16 %v2239, %v2239
        %s2272 = scalar_lea.vmem %s173, 128 [#allocation2]
        %2273 = vst [vmem:[%s2272] sm:$0xf] %v2240
        %2274 = vst [vmem:[%s2272 + $0x4] sm:$0xf] %v2241
        %2275 = vst [vmem:[%s2272 + $0x8] sm:$0xf] %v2242
        %2276 = vst [vmem:[%s2272 + $0xc] sm:$0xf] %v2243
        %2277 = vst [vmem:[%s2272 + $0x10] sm:$0xf] %v2244
        %2278 = vst [vmem:[%s2272 + $0x14] sm:$0xf] %v2245
        %2279 = vst [vmem:[%s2272 + $0x18] sm:$0xf] %v2246
        %2280 = vst [vmem:[%s2272 + $0x1c] sm:$0xf] %v2247
        %2281 = vst [vmem:[%s2272 + $0x20] sm:$0xf] %v2248
        %2282 = vst [vmem:[%s2272 + $0x24] sm:$0xf] %v2249
        %2283 = vst [vmem:[%s2272 + $0x28] sm:$0xf] %v2250
        %2284 = vst [vmem:[%s2272 + $0x2c] sm:$0xf] %v2251
        %2285 = vst [vmem:[%s2272 + $0x30] sm:$0xf] %v2252
        %2286 = vst [vmem:[%s2272 + $0x34] sm:$0xf] %v2253
        %2287 = vst [vmem:[%s2272 + $0x38] sm:$0xf] %v2254
        %2288 = vst [vmem:[%s2272 + $0x3c] sm:$0xf] %v2255
        %v2291 = vrot.slane %v224, 5
        %v2292 = vrot.slane %v2291, 4
        %v2293 = vrot.slane %v204, 5
        %v2294 = vsel %vm1089, %v2292, %v2293
        %v2295 = vrot.slane %v2293, 4
        %v2296 = vrot.slane %v214, 5
        %v2297 = vsel %vm1089, %v2295, %v2296
        %v2298 = vunpack.c.l.b16 %v2294
        %v2299 = vunpack.c.l.b16 %v2297
        %v2300 = vpack.c.b16 %v2299, %v2298
        %s2302 = scalar_lea.vmem %s1, 768
        %v2303 = vld [vmem:[%s2302] sm:$0xf]
        %v2304 = vld [vmem:[%s2302 + $0x4] sm:$0xf]
        %v2305 = vld [vmem:[%s2302 + $0x8] sm:$0xf]
        %v2306 = vld [vmem:[%s2302 + $0xc] sm:$0xf]
        %v2307 = vld [vmem:[%s2302 + $0x10] sm:$0xf]
        %v2308 = vld [vmem:[%s2302 + $0x14] sm:$0xf]
        %v2309 = vld [vmem:[%s2302 + $0x18] sm:$0xf]
        %v2310 = vld [vmem:[%s2302 + $0x1c] sm:$0xf]
        %v2311 = vld [vmem:[%s2302 + $0x20] sm:$0xf]
        %v2312 = vld [vmem:[%s2302 + $0x24] sm:$0xf]
        %v2313 = vld [vmem:[%s2302 + $0x28] sm:$0xf]
        %v2314 = vld [vmem:[%s2302 + $0x2c] sm:$0xf]
        %v2315 = vld [vmem:[%s2302 + $0x30] sm:$0xf]
        %v2316 = vld [vmem:[%s2302 + $0x34] sm:$0xf]
        %v2317 = vld [vmem:[%s2302 + $0x38] sm:$0xf]
        %v2318 = vld [vmem:[%s2302 + $0x3c] sm:$0xf]
        %v2319 = vld [vmem:[%s2302 + $0x40] sm:$0xf]
        %v2320 = vld [vmem:[%s2302 + $0x44] sm:$0xf]
        %v2321 = vld [vmem:[%s2302 + $0x48] sm:$0xf]
        %v2322 = vld [vmem:[%s2302 + $0x4c] sm:$0xf]
        %v2323 = vld [vmem:[%s2302 + $0x50] sm:$0xf]
        %v2324 = vld [vmem:[%s2302 + $0x54] sm:$0xf]
        %v2325 = vld [vmem:[%s2302 + $0x58] sm:$0xf]
        %v2326 = vld [vmem:[%s2302 + $0x5c] sm:$0xf]
        %v2327 = vld [vmem:[%s2302 + $0x60] sm:$0xf]
        %v2328 = vld [vmem:[%s2302 + $0x64] sm:$0xf]
        %v2329 = vld [vmem:[%s2302 + $0x68] sm:$0xf]
        %v2330 = vld [vmem:[%s2302 + $0x6c] sm:$0xf]
        %v2331 = vld [vmem:[%s2302 + $0x70] sm:$0xf]
        %v2332 = vld [vmem:[%s2302 + $0x74] sm:$0xf]
        %v2333 = vld [vmem:[%s2302 + $0x78] sm:$0xf]
        %v2334 = vld [vmem:[%s2302 + $0x7c] sm:$0xf]
        %v2335 = vld [vmem:[%s2302 + $0x80] sm:$0xf]
        %v2336 = vld [vmem:[%s2302 + $0x84] sm:$0xf]
        %v2337 = vld [vmem:[%s2302 + $0x88] sm:$0xf]
        %v2338 = vld [vmem:[%s2302 + $0x8c] sm:$0xf]
        %v2339 = vld [vmem:[%s2302 + $0x90] sm:$0xf]
        %v2340 = vld [vmem:[%s2302 + $0x94] sm:$0xf]
        %v2341 = vld [vmem:[%s2302 + $0x98] sm:$0xf]
        %v2342 = vld [vmem:[%s2302 + $0x9c] sm:$0xf]
        %v2343 = vld [vmem:[%s2302 + $0xa0] sm:$0xf]
        %v2344 = vld [vmem:[%s2302 + $0xa4] sm:$0xf]
        %v2345 = vld [vmem:[%s2302 + $0xa8] sm:$0xf]
        %v2346 = vld [vmem:[%s2302 + $0xac] sm:$0xf]
        %v2347 = vld [vmem:[%s2302 + $0xb0] sm:$0xf]
        %v2348 = vld [vmem:[%s2302 + $0xb4] sm:$0xf]
        %v2349 = vld [vmem:[%s2302 + $0xb8] sm:$0xf]
        %v2350 = vld [vmem:[%s2302 + $0xbc] sm:$0xf]
        %v2351 = vld [vmem:[%s2302 + $0xc0] sm:$0xf]
        %v2352 = vld [vmem:[%s2302 + $0xc4] sm:$0xf]
        %v2353 = vld [vmem:[%s2302 + $0xc8] sm:$0xf]
        %v2354 = vld [vmem:[%s2302 + $0xcc] sm:$0xf]
        %v2355 = vld [vmem:[%s2302 + $0xd0] sm:$0xf]
        %v2356 = vld [vmem:[%s2302 + $0xd4] sm:$0xf]
        %v2357 = vld [vmem:[%s2302 + $0xd8] sm:$0xf]
        %v2358 = vld [vmem:[%s2302 + $0xdc] sm:$0xf]
        %v2359 = vld [vmem:[%s2302 + $0xe0] sm:$0xf]
        %v2360 = vld [vmem:[%s2302 + $0xe4] sm:$0xf]
        %v2361 = vld [vmem:[%s2302 + $0xe8] sm:$0xf]
        %v2362 = vld [vmem:[%s2302 + $0xec] sm:$0xf]
        %v2363 = vld [vmem:[%s2302 + $0xf0] sm:$0xf]
        %v2364 = vld [vmem:[%s2302 + $0xf4] sm:$0xf]
        %v2365 = vld [vmem:[%s2302 + $0xf8] sm:$0xf]
        %v2366 = vld [vmem:[%s2302 + $0xfc] sm:$0xf]
        %v2431 = vunpack.c.l.b16 %v2303
        %v2432 = vunpack.c.l.b16 %v2304
        %v2433 = vunpack.c.l.b16 %v2305
        %v2434 = vunpack.c.l.b16 %v2306
        %v2435 = vunpack.c.l.b16 %v2307
        %v2436 = vunpack.c.l.b16 %v2308
        %v2437 = vunpack.c.l.b16 %v2309
        %v2438 = vunpack.c.l.b16 %v2310
        %v2439 = vunpack.c.l.b16 %v2311
        %v2440 = vunpack.c.l.b16 %v2312
        %v2441 = vunpack.c.l.b16 %v2313
        %v2442 = vunpack.c.l.b16 %v2314
        %v2443 = vunpack.c.l.b16 %v2315
        %v2444 = vunpack.c.l.b16 %v2316
        %v2445 = vunpack.c.l.b16 %v2317
        %v2446 = vunpack.c.l.b16 %v2318
        %v2447 = vunpack.c.l.b16 %v2319
        %v2448 = vunpack.c.l.b16 %v2320
        %v2449 = vunpack.c.l.b16 %v2321
        %v2450 = vunpack.c.l.b16 %v2322
        %v2451 = vunpack.c.l.b16 %v2323
        %v2452 = vunpack.c.l.b16 %v2324
        %v2453 = vunpack.c.l.b16 %v2325
        %v2454 = vunpack.c.l.b16 %v2326
        %v2455 = vunpack.c.l.b16 %v2327
        %v2456 = vunpack.c.l.b16 %v2328
        %v2457 = vunpack.c.l.b16 %v2329
        %v2458 = vunpack.c.l.b16 %v2330
        %v2459 = vunpack.c.l.b16 %v2331
        %v2460 = vunpack.c.l.b16 %v2332
        %v2461 = vunpack.c.l.b16 %v2333
        %v2462 = vunpack.c.l.b16 %v2334
        %v2463 = vunpack.c.l.b16 %v2335
        %v2464 = vunpack.c.l.b16 %v2336
        %v2465 = vunpack.c.l.b16 %v2337
        %v2466 = vunpack.c.l.b16 %v2338
        %v2467 = vunpack.c.l.b16 %v2339
        %v2468 = vunpack.c.l.b16 %v2340
        %v2469 = vunpack.c.l.b16 %v2341
        %v2470 = vunpack.c.l.b16 %v2342
        %v2471 = vunpack.c.l.b16 %v2343
        %v2472 = vunpack.c.l.b16 %v2344
        %v2473 = vunpack.c.l.b16 %v2345
        %v2474 = vunpack.c.l.b16 %v2346
        %v2475 = vunpack.c.l.b16 %v2347
        %v2476 = vunpack.c.l.b16 %v2348
        %v2477 = vunpack.c.l.b16 %v2349
        %v2478 = vunpack.c.l.b16 %v2350
        %v2479 = vunpack.c.l.b16 %v2351
        %v2480 = vunpack.c.l.b16 %v2352
        %v2481 = vunpack.c.l.b16 %v2353
        %v2482 = vunpack.c.l.b16 %v2354
        %v2483 = vunpack.c.l.b16 %v2355
        %v2484 = vunpack.c.l.b16 %v2356
        %v2485 = vunpack.c.l.b16 %v2357
        %v2486 = vunpack.c.l.b16 %v2358
        %v2487 = vunpack.c.l.b16 %v2359
        %v2488 = vunpack.c.l.b16 %v2360
        %v2489 = vunpack.c.l.b16 %v2361
        %v2490 = vunpack.c.l.b16 %v2362
        %v2491 = vunpack.c.l.b16 %v2363
        %v2492 = vunpack.c.l.b16 %v2364
        %v2493 = vunpack.c.l.b16 %v2365
        %v2494 = vunpack.c.l.b16 %v2366
        %v2495 = vpack.c.b16 %v2432, %v2431
        %v2496 = vpack.c.b16 %v2434, %v2433
        %v2497 = vpack.c.b16 %v2436, %v2435
        %v2498 = vpack.c.b16 %v2438, %v2437
        %v2499 = vpack.c.b16 %v2440, %v2439
        %v2500 = vpack.c.b16 %v2442, %v2441
        %v2501 = vpack.c.b16 %v2444, %v2443
        %v2502 = vpack.c.b16 %v2446, %v2445
        %v2503 = vpack.c.b16 %v2448, %v2447
        %v2504 = vpack.c.b16 %v2450, %v2449
        %v2505 = vpack.c.b16 %v2452, %v2451
        %v2506 = vpack.c.b16 %v2454, %v2453
        %v2507 = vpack.c.b16 %v2456, %v2455
        %v2508 = vpack.c.b16 %v2458, %v2457
        %v2509 = vpack.c.b16 %v2460, %v2459
        %v2510 = vpack.c.b16 %v2462, %v2461
        %v2511 = vpack.c.b16 %v2464, %v2463
        %v2512 = vpack.c.b16 %v2466, %v2465
        %v2513 = vpack.c.b16 %v2468, %v2467
        %v2514 = vpack.c.b16 %v2470, %v2469
        %v2515 = vpack.c.b16 %v2472, %v2471
        %v2516 = vpack.c.b16 %v2474, %v2473
        %v2517 = vpack.c.b16 %v2476, %v2475
        %v2518 = vpack.c.b16 %v2478, %v2477
        %v2519 = vpack.c.b16 %v2480, %v2479
        %v2520 = vpack.c.b16 %v2482, %v2481
        %v2521 = vpack.c.b16 %v2484, %v2483
        %v2522 = vpack.c.b16 %v2486, %v2485
        %v2523 = vpack.c.b16 %v2488, %v2487
        %v2524 = vpack.c.b16 %v2490, %v2489
        %v2525 = vpack.c.b16 %v2492, %v2491
        %v2526 = vpack.c.b16 %v2494, %v2493
        %2559 = vmatprep.subr.bf16.mxu0 0
        %2560 = vmatpush1.bf16.msra.mxu0 %v2495
        %2561 = vmatprep.subr.bf16.mxu0 0
        %2562 = vmatpush1.bf16.msra.mxu0 %v2496
        %2563 = vmatprep.subr.bf16.mxu0 0
        %2564 = vmatpush1.bf16.msra.mxu0 %v2497
        %2565 = vmatprep.subr.bf16.mxu0 0
        %2566 = vmatpush1.bf16.msra.mxu0 %v2498
        %2567 = vmatprep.subr.bf16.mxu0 0
        %2568 = vmatpush1.bf16.msra.mxu0 %v2499
        %2569 = vmatprep.subr.bf16.mxu0 0
        %2570 = vmatpush1.bf16.msra.mxu0 %v2500
        %2571 = vmatprep.subr.bf16.mxu0 0
        %2572 = vmatpush1.bf16.msra.mxu0 %v2501
        %2573 = vmatprep.subr.bf16.mxu0 0
        %2574 = vmatpush1.bf16.msra.mxu0 %v2502
        %2575 = vmatprep.subr.bf16.mxu0 0
        %2576 = vmatpush1.bf16.msra.mxu0 %v2503
        %2577 = vmatprep.subr.bf16.mxu0 0
        %2578 = vmatpush1.bf16.msra.mxu0 %v2504
        %2579 = vmatprep.subr.bf16.mxu0 0
        %2580 = vmatpush1.bf16.msra.mxu0 %v2505
        %2581 = vmatprep.subr.bf16.mxu0 0
        %2582 = vmatpush1.bf16.msra.mxu0 %v2506
        %2583 = vmatprep.subr.bf16.mxu0 0
        %2584 = vmatpush1.bf16.msra.mxu0 %v2507
        %2585 = vmatprep.subr.bf16.mxu0 0
        %2586 = vmatpush1.bf16.msra.mxu0 %v2508
        %2587 = vmatprep.subr.bf16.mxu0 0
        %2588 = vmatpush1.bf16.msra.mxu0 %v2509
        %2589 = vmatprep.subr.bf16.mxu0 0
        %2590 = vmatpush1.bf16.msra.mxu0 %v2510
        %2591 = vmatprep.mubr.bf16.mxu0 %v1172
        %2592 = vmatmul.mubr.bf16.gmra.mrb[0].mxu0 %v510
        %v2593 = vpop.f32.mrb[0].mxu0
        %v2594 = vadd.f32 %v603, %v2593
        %v2595 = vpop.f32.mrb[0].mxu0
        %v2596 = vpop.f32.mrb[0].mxu0
        %v2597 = vadd.f32 %v603, %v2596
        %v2598 = vpop.f32.mrb[0].mxu0
        %2599 = vmatprep.mubr.bf16.mxu0 %v1173
        %2600 = vmatmul.mubr.bf16.gmra.mrb[0].mxu0 %v511
        %v2601 = vpop.f32.mrb[0].mxu0
        %v2602 = vadd.f32 %v603, %v2601
        %v2603 = vpop.f32.mrb[0].mxu0
        %v2604 = vpop.f32.mrb[0].mxu0
        %v2605 = vadd.f32 %v603, %v2604
        %v2606 = vpop.f32.mrb[0].mxu0
        %2607 = vmatprep.mubr.bf16.mxu0 %v1174
        %2608 = vmatmul.mubr.bf16.gmra.mrb[0].mxu0 %v512
        %v2609 = vpop.f32.mrb[0].mxu0
        %v2610 = vadd.f32 %v603, %v2609
        %v2611 = vpop.f32.mrb[0].mxu0
        %v2612 = vpop.f32.mrb[0].mxu0
        %v2613 = vadd.f32 %v603, %v2612
        %v2614 = vpop.f32.mrb[0].mxu0
        %2615 = vmatprep.mubr.bf16.mxu0 %v1175
        %2616 = vmatmul.mubr.bf16.gmra.mrb[0].mxu0 %v513
        %v2617 = vpop.f32.mrb[0].mxu0
        %v2618 = vadd.f32 %v603, %v2617
        %v2619 = vpop.f32.mrb[0].mxu0
        %v2620 = vpop.f32.mrb[0].mxu0
        %v2621 = vadd.f32 %v603, %v2620
        %v2622 = vpop.f32.mrb[0].mxu0
        %2623 = vmatprep.mubr.bf16.mxu0 %v1176
        %2624 = vmatmul.mubr.bf16.gmra.mrb[0].mxu0 %v514
        %v2625 = vpop.f32.mrb[0].mxu0
        %v2626 = vadd.f32 %v603, %v2625
        %v2627 = vpop.f32.mrb[0].mxu0
        %v2628 = vpop.f32.mrb[0].mxu0
        %v2629 = vadd.f32 %v603, %v2628
        %v2630 = vpop.f32.mrb[0].mxu0
        %2631 = vmatprep.mubr.bf16.mxu0 %v1177
        %2632 = vmatmul.mubr.bf16.gmra.mrb[0].mxu0 %v515
        %v2633 = vpop.f32.mrb[0].mxu0
        %v2634 = vadd.f32 %v603, %v2633
        %v2635 = vpop.f32.mrb[0].mxu0
        %v2636 = vpop.f32.mrb[0].mxu0
        %v2637 = vadd.f32 %v603, %v2636
        %v2638 = vpop.f32.mrb[0].mxu0
        %2639 = vmatprep.mubr.bf16.mxu0 %v1178
        %2640 = vmatmul.mubr.bf16.gmra.mrb[0].mxu0 %v516
        %v2641 = vpop.f32.mrb[0].mxu0
        %v2642 = vadd.f32 %v603, %v2641
        %v2643 = vpop.f32.mrb[0].mxu0
        %v2644 = vpop.f32.mrb[0].mxu0
        %v2645 = vadd.f32 %v603, %v2644
        %v2646 = vpop.f32.mrb[0].mxu0
        %2647 = vmatprep.mubr.bf16.mxu0 %v1189
        %2648 = vmatmul.mubr.bf16.gmra.mrb[0].mxu0 %v533
        %v2649 = vpop.f32.mrb[0].mxu0
        %v2650 = vadd.f32 %v603, %v2649
        %v2651 = vpop.f32.mrb[0].mxu0
        %v2652 = vpop.f32.mrb[0].mxu0
        %v2653 = vadd.f32 %v603, %v2652
        %v2654 = vpop.f32.mrb[0].mxu0
        %2655 = vdwg.mxu0
        %2656 = vmatprep.subr.bf16.mxu0 0
        %2657 = vmatpush1.bf16.msra.mxu0 %v2511
        %2658 = vmatprep.subr.bf16.mxu0 0
        %2659 = vmatpush1.bf16.msra.mxu0 %v2512
        %2660 = vmatprep.subr.bf16.mxu0 0
        %2661 = vmatpush1.bf16.msra.mxu0 %v2513
        %2662 = vmatprep.subr.bf16.mxu0 0
        %2663 = vmatpush1.bf16.msra.mxu0 %v2514
        %2664 = vmatprep.subr.bf16.mxu0 0
        %2665 = vmatpush1.bf16.msra.mxu0 %v2515
        %2666 = vmatprep.subr.bf16.mxu0 0
        %2667 = vmatpush1.bf16.msra.mxu0 %v2516
        %2668 = vmatprep.subr.bf16.mxu0 0
        %2669 = vmatpush1.bf16.msra.mxu0 %v2517
        %2670 = vmatprep.subr.bf16.mxu0 0
        %2671 = vmatpush1.bf16.msra.mxu0 %v2518
        %2672 = vmatprep.subr.bf16.mxu0 0
        %2673 = vmatpush1.bf16.msra.mxu0 %v2519
        %2674 = vmatprep.subr.bf16.mxu0 0
        %2675 = vmatpush1.bf16.msra.mxu0 %v2520
        %2676 = vmatprep.subr.bf16.mxu0 0
        %2677 = vmatpush1.bf16.msra.mxu0 %v2521
        %2678 = vmatprep.subr.bf16.mxu0 0
        %2679 = vmatpush1.bf16.msra.mxu0 %v2522
        %2680 = vmatprep.subr.bf16.mxu0 0
        %2681 = vmatpush1.bf16.msra.mxu0 %v2523
        %2682 = vmatprep.subr.bf16.mxu0 0
        %2683 = vmatpush1.bf16.msra.mxu0 %v2524
        %2684 = vmatprep.subr.bf16.mxu0 0
        %2685 = vmatpush1.bf16.msra.mxu0 %v2525
        %2686 = vmatprep.subr.bf16.mxu0 0
        %2687 = vmatpush1.bf16.msra.mxu0 %v2526
        %2688 = vmatprep.mubr.bf16.mxu0 %v1173
        %2689 = vmatmul.mubr.bf16.gmra.mrb[0].mxu0 %v511
        %v2690 = vpop.f32.mrb[0].mxu0
        %v2691 = vadd.f32 %v2594, %v2690
        %v2692 = vpop.f32.mrb[0].mxu0
        %v2693 = vpop.f32.mrb[0].mxu0
        %v2694 = vadd.f32 %v2597, %v2693
        %v2695 = vpop.f32.mrb[0].mxu0
        %2696 = vmatprep.mubr.bf16.mxu0 %v1174
        %2697 = vmatmul.mubr.bf16.gmra.mrb[0].mxu0 %v512
        %v2698 = vpop.f32.mrb[0].mxu0
        %v2699 = vadd.f32 %v2602, %v2698
        %v2700 = vpop.f32.mrb[0].mxu0
        %v2701 = vpop.f32.mrb[0].mxu0
        %v2702 = vadd.f32 %v2605, %v2701
        %v2703 = vpop.f32.mrb[0].mxu0
        %2704 = vmatprep.mubr.bf16.mxu0 %v1175
        %2705 = vmatmul.mubr.bf16.gmra.mrb[0].mxu0 %v513
        %v2706 = vpop.f32.mrb[0].mxu0
        %v2707 = vadd.f32 %v2610, %v2706
        %v2708 = vpop.f32.mrb[0].mxu0
        %v2709 = vpop.f32.mrb[0].mxu0
        %v2710 = vadd.f32 %v2613, %v2709
        %v2711 = vpop.f32.mrb[0].mxu0
        %2712 = vmatprep.mubr.bf16.mxu0 %v1176
        %2713 = vmatmul.mubr.bf16.gmra.mrb[0].mxu0 %v514
        %v2714 = vpop.f32.mrb[0].mxu0
        %v2715 = vadd.f32 %v2618, %v2714
        %v2716 = vpop.f32.mrb[0].mxu0
        %v2717 = vpop.f32.mrb[0].mxu0
        %v2718 = vadd.f32 %v2621, %v2717
        %v2719 = vpop.f32.mrb[0].mxu0
        %2720 = vmatprep.mubr.bf16.mxu0 %v1177
        %2721 = vmatmul.mubr.bf16.gmra.mrb[0].mxu0 %v515
        %v2722 = vpop.f32.mrb[0].mxu0
        %v2723 = vadd.f32 %v2626, %v2722
        %v2724 = vpop.f32.mrb[0].mxu0
        %v2725 = vpop.f32.mrb[0].mxu0
        %v2726 = vadd.f32 %v2629, %v2725
        %v2727 = vpop.f32.mrb[0].mxu0
        %2728 = vmatprep.mubr.bf16.mxu0 %v1178
        %2729 = vmatmul.mubr.bf16.gmra.mrb[0].mxu0 %v516
        %v2730 = vpop.f32.mrb[0].mxu0
        %v2731 = vadd.f32 %v2634, %v2730
        %v2732 = vpop.f32.mrb[0].mxu0
        %v2733 = vpop.f32.mrb[0].mxu0
        %v2734 = vadd.f32 %v2637, %v2733
        %v2735 = vpop.f32.mrb[0].mxu0
        %2736 = vmatprep.mubr.bf16.mxu0 %v1189
        %2737 = vmatmul.mubr.bf16.gmra.mrb[0].mxu0 %v533
        %v2738 = vpop.f32.mrb[0].mxu0
        %v2739 = vadd.f32 %v2642, %v2738
        %v2740 = vpop.f32.mrb[0].mxu0
        %v2741 = vpop.f32.mrb[0].mxu0
        %v2742 = vadd.f32 %v2645, %v2741
        %v2743 = vpop.f32.mrb[0].mxu0
        %2744 = vmatprep.mubr.bf16.mxu0 %v2300
        %2745 = vmatmul.mubr.bf16.gmra.mrb[0].mxu0 %v1755
        %v2746 = vpop.f32.mrb[0].mxu0
        %v2747 = vadd.f32 %v2650, %v2746
        %v2748 = vpop.f32.mrb[0].mxu0
        %v2749 = vpop.f32.mrb[0].mxu0
        %v2750 = vadd.f32 %v2653, %v2749
        %v2751 = vpop.f32.mrb[0].mxu0
        %2752 = vdwg.mxu0
        %v2753 = vpack.c.bf16 %v2694, %v2691
        %v2754 = vpack.c.bf16 %v2702, %v2699
        %v2755 = vpack.c.bf16 %v2710, %v2707
        %v2756 = vpack.c.bf16 %v2718, %v2715
        %v2757 = vpack.c.bf16 %v2726, %v2723
        %v2758 = vpack.c.bf16 %v2734, %v2731
        %v2759 = vpack.c.bf16 %v2742, %v2739
        %v2760 = vpack.c.bf16 %v2750, %v2747
        %v2769 = vunpack.c.l.b16 %v2753
        %v2770 = vunpack.c.h.b16 %v2753
        %v2771 = vunpack.c.l.b16 %v2754
        %v2772 = vunpack.c.h.b16 %v2754
        %v2773 = vunpack.c.l.b16 %v2755
        %v2774 = vunpack.c.h.b16 %v2755
        %v2775 = vunpack.c.l.b16 %v2756
        %v2776 = vunpack.c.h.b16 %v2756
        %v2777 = vunpack.c.l.b16 %v2757
        %v2778 = vunpack.c.h.b16 %v2757
        %v2779 = vunpack.c.l.b16 %v2758
        %v2780 = vunpack.c.h.b16 %v2758
        %v2781 = vunpack.c.l.b16 %v2759
        %v2782 = vunpack.c.h.b16 %v2759
        %v2783 = vunpack.c.l.b16 %v2760
        %v2784 = vunpack.c.h.b16 %v2760
        %v2785 = vpack.c.b16 %v2769, %v2769
        %v2786 = vpack.c.b16 %v2770, %v2770
        %v2787 = vpack.c.b16 %v2771, %v2771
        %v2788 = vpack.c.b16 %v2772, %v2772
        %v2789 = vpack.c.b16 %v2773, %v2773
        %v2790 = vpack.c.b16 %v2774, %v2774
        %v2791 = vpack.c.b16 %v2775, %v2775
        %v2792 = vpack.c.b16 %v2776, %v2776
        %v2793 = vpack.c.b16 %v2777, %v2777
        %v2794 = vpack.c.b16 %v2778, %v2778
        %v2795 = vpack.c.b16 %v2779, %v2779
        %v2796 = vpack.c.b16 %v2780, %v2780
        %v2797 = vpack.c.b16 %v2781, %v2781
        %v2798 = vpack.c.b16 %v2782, %v2782
        %v2799 = vpack.c.b16 %v2783, %v2783
        %v2800 = vpack.c.b16 %v2784, %v2784
        %s2817 = scalar_lea.vmem %s173, 192 [#allocation2]
        %2818 = vst [vmem:[%s2817] sm:$0xf] %v2785
        %2819 = vst [vmem:[%s2817 + $0x4] sm:$0xf] %v2786
        %2820 = vst [vmem:[%s2817 + $0x8] sm:$0xf] %v2787
        %2821 = vst [vmem:[%s2817 + $0xc] sm:$0xf] %v2788
        %2822 = vst [vmem:[%s2817 + $0x10] sm:$0xf] %v2789
        %2823 = vst [vmem:[%s2817 + $0x14] sm:$0xf] %v2790
        %2824 = vst [vmem:[%s2817 + $0x18] sm:$0xf] %v2791
        %2825 = vst [vmem:[%s2817 + $0x1c] sm:$0xf] %v2792
        %2826 = vst [vmem:[%s2817 + $0x20] sm:$0xf] %v2793
        %2827 = vst [vmem:[%s2817 + $0x24] sm:$0xf] %v2794
        %2828 = vst [vmem:[%s2817 + $0x28] sm:$0xf] %v2795
        %2829 = vst [vmem:[%s2817 + $0x2c] sm:$0xf] %v2796
        %2830 = vst [vmem:[%s2817 + $0x30] sm:$0xf] %v2797
        %2831 = vst [vmem:[%s2817 + $0x34] sm:$0xf] %v2798
        %2832 = vst [vmem:[%s2817 + $0x38] sm:$0xf] %v2799
        %2833 = vst [vmem:[%s2817 + $0x3c] sm:$0xf] %v2800
        %s2834 = sand.u32 %s104, 1
        %s2835 = sand.u32 %s104, 1
        %s2836 = smul.addr %s2835, 256
        %s2837 = scalar_lea.vmem [#allocation2], %s2836
        // Predicated region
        $region33: #{_upsample_conv.1} parent=31 // pred_check
          %p2838 = pneg %p114
        $region34: #{_upsample_conv.1} parent=31 // pred_check_branch
          %2840 = sbr.rel (%p2838) target = $region36
        $region35: #{_upsample_conv.1} parent=31 // pred_region
          %s2841 = smul.u32 8, %s19
          %s2842 = smul.addr %s2841, 2
          %s2843 = smul.addr %s18, 128
          %s2844 = sadd.s32 %s2842, %s2843
          %s2845 = smul.addr %s2844, 4
          %s2846 = scalar_lea.vmem %s3, %s2845
          // Predicated region
          $region37: #{_upsample_conv.1} parent=35 // pred_check
            _
          $region38: #{_upsample_conv.1} parent=35 // pred_check_branch
            %2848 = sbr.rel (0) target = $region40
          $region39: #{_upsample_conv.1} parent=35 // pred_region
            // Predicated region
            $region41: #{_upsample_conv.1} parent=39 // pred_check
              _
            $region42: #{_upsample_conv.1} parent=39 // pred_check_branch
              %2850 = sbr.rel target = $region44
            $region43: #{_upsample_conv.1} parent=39 // pred_region
              // Predicated region
              $region56: #{_upsample_conv.1} parent=43 // pred_check
                _
              $region57: #{_upsample_conv.1} parent=43 // pred_check_branch
                %2991 = sbr.rel (0) target = $region59
              $region58: #{_upsample_conv.1} parent=43 // pred_region
                loop: start=0, step=1, limit=1
                $region60: #{_upsample_conv.1} parent=58 // loop_pre_header
                  _
                $region61: #{_upsample_conv.1} parent=58 // loop_header
                  %s2993 = sphi 0, %s2997
                  %p2994 = scmp.ge.s32.totalorder %s2993, 1
                  %s2998 = sphi %s2837, %s2837
                  %s2999 = sphi %s2846, %s2846
                $region62: #{_upsample_conv.1} parent=58 // loop_header_branch
                  %2996 = sbr.rel (%p2994) target = $region66
                $region63: #{_upsample_conv.1} parent=58 // loop_body
                  _
                $region64: #{_upsample_conv.1} parent=58 // loop_footer
                  %s2997 = sadd.s32 1, %s2993
                $region65: #{_upsample_conv.1} parent=58 // loop_footer_branch
                  %2992 = sbr.rel target = $region61
                $region66: #{_upsample_conv.1} parent=58 // loop_exit
                  _
                loop: start=0, step=1, limit=1
                $region67: #{_upsample_conv.1} parent=58 // loop_pre_header
                  _
                $region68: #{_upsample_conv.1} parent=58 // loop_header
                  %s3002 = sphi 0, %s3006
                  %p3003 = scmp.ge.s32.totalorder %s3002, 1
                  %s3007 = sphi %s2837, %s2837
                  %s3008 = sphi %s2846, %s2846
                $region69: #{_upsample_conv.1} parent=58 // loop_header_branch
                  %3005 = sbr.rel (%p3003) target = $region73
                $region70: #{_upsample_conv.1} parent=58 // loop_body
                  %v3009 = vld [vmem:[%s3007] sm:$0xf]
                  %3010 = vst [vmem:[%s3008] sm:$0xf] %v3009
                  %v3011 = vld [vmem:[%s3007 + $0x4] sm:$0xf]
                  %3012 = vst [vmem:[%s3008 + $0x4] sm:$0xf] %v3011
                  %v3013 = vld [vmem:[%s3007 + $0x8] sm:$0xf]
                  %3014 = vst [vmem:[%s3008 + $0x8] sm:$0xf] %v3013
                  %v3015 = vld [vmem:[%s3007 + $0xc] sm:$0xf]
                  %3016 = vst [vmem:[%s3008 + $0xc] sm:$0xf] %v3015
                  %v3017 = vld [vmem:[%s3007 + $0x10] sm:$0xf]
                  %3018 = vst [vmem:[%s3008 + $0x10] sm:$0xf] %v3017
                  %v3019 = vld [vmem:[%s3007 + $0x14] sm:$0xf]
                  %3020 = vst [vmem:[%s3008 + $0x14] sm:$0xf] %v3019
                  %v3021 = vld [vmem:[%s3007 + $0x18] sm:$0xf]
                  %3022 = vst [vmem:[%s3008 + $0x18] sm:$0xf] %v3021
                  %v3023 = vld [vmem:[%s3007 + $0x1c] sm:$0xf]
                  %3024 = vst [vmem:[%s3008 + $0x1c] sm:$0xf] %v3023
                  %v3025 = vld [vmem:[%s3007 + $0x20] sm:$0xf]
                  %3026 = vst [vmem:[%s3008 + $0x20] sm:$0xf] %v3025
                  %v3027 = vld [vmem:[%s3007 + $0x24] sm:$0xf]
                  %3028 = vst [vmem:[%s3008 + $0x24] sm:$0xf] %v3027
                  %v3029 = vld [vmem:[%s3007 + $0x28] sm:$0xf]
                  %3030 = vst [vmem:[%s3008 + $0x28] sm:$0xf] %v3029
                  %v3031 = vld [vmem:[%s3007 + $0x2c] sm:$0xf]
                  %3032 = vst [vmem:[%s3008 + $0x2c] sm:$0xf] %v3031
                  %v3033 = vld [vmem:[%s3007 + $0x30] sm:$0xf]
                  %3034 = vst [vmem:[%s3008 + $0x30] sm:$0xf] %v3033
                  %v3035 = vld [vmem:[%s3007 + $0x34] sm:$0xf]
                  %3036 = vst [vmem:[%s3008 + $0x34] sm:$0xf] %v3035
                  %v3037 = vld [vmem:[%s3007 + $0x38] sm:$0xf]
                  %3038 = vst [vmem:[%s3008 + $0x38] sm:$0xf] %v3037
                  %v3039 = vld [vmem:[%s3007 + $0x3c] sm:$0xf]
                  %3040 = vst [vmem:[%s3008 + $0x3c] sm:$0xf] %v3039
                  %v3041 = vld [vmem:[%s3007 + $0x40] sm:$0xf]
                  %3042 = vst [vmem:[%s3008 + $0x80] sm:$0xf] %v3041
                  %v3043 = vld [vmem:[%s3007 + $0x44] sm:$0xf]
                  %3044 = vst [vmem:[%s3008 + $0x84] sm:$0xf] %v3043
                  %v3045 = vld [vmem:[%s3007 + $0x48] sm:$0xf]
                  %3046 = vst [vmem:[%s3008 + $0x88] sm:$0xf] %v3045
                  %v3047 = vld [vmem:[%s3007 + $0x4c] sm:$0xf]
                  %3048 = vst [vmem:[%s3008 + $0x8c] sm:$0xf] %v3047
                  %v3049 = vld [vmem:[%s3007 + $0x50] sm:$0xf]
                  %3050 = vst [vmem:[%s3008 + $0x90] sm:$0xf] %v3049
                  %v3051 = vld [vmem:[%s3007 + $0x54] sm:$0xf]
                  %3052 = vst [vmem:[%s3008 + $0x94] sm:$0xf] %v3051
                  %v3053 = vld [vmem:[%s3007 + $0x58] sm:$0xf]
                  %3054 = vst [vmem:[%s3008 + $0x98] sm:$0xf] %v3053
                  %v3055 = vld [vmem:[%s3007 + $0x5c] sm:$0xf]
                  %3056 = vst [vmem:[%s3008 + $0x9c] sm:$0xf] %v3055
                  %v3057 = vld [vmem:[%s3007 + $0x60] sm:$0xf]
                  %3058 = vst [vmem:[%s3008 + $0xa0] sm:$0xf] %v3057
                  %v3059 = vld [vmem:[%s3007 + $0x64] sm:$0xf]
                  %3060 = vst [vmem:[%s3008 + $0xa4] sm:$0xf] %v3059
                  %v3061 = vld [vmem:[%s3007 + $0x68] sm:$0xf]
                  %3062 = vst [vmem:[%s3008 + $0xa8] sm:$0xf] %v3061
                  %v3063 = vld [vmem:[%s3007 + $0x6c] sm:$0xf]
                  %3064 = vst [vmem:[%s3008 + $0xac] sm:$0xf] %v3063
                  %v3065 = vld [vmem:[%s3007 + $0x70] sm:$0xf]
                  %3066 = vst [vmem:[%s3008 + $0xb0] sm:$0xf] %v3065
                  %v3067 = vld [vmem:[%s3007 + $0x74] sm:$0xf]
                  %3068 = vst [vmem:[%s3008 + $0xb4] sm:$0xf] %v3067
                  %v3069 = vld [vmem:[%s3007 + $0x78] sm:$0xf]
                  %3070 = vst [vmem:[%s3008 + $0xb8] sm:$0xf] %v3069
                  %v3071 = vld [vmem:[%s3007 + $0x7c] sm:$0xf]
                  %3072 = vst [vmem:[%s3008 + $0xbc] sm:$0xf] %v3071
                  %v3073 = vld [vmem:[%s3007 + $0x80] sm:$0xf]
                  %3074 = vst [vmem:[%s3008 + $0x100] sm:$0xf] %v3073
                  %v3075 = vld [vmem:[%s3007 + $0x84] sm:$0xf]
                  %3076 = vst [vmem:[%s3008 + $0x104] sm:$0xf] %v3075
                  %v3077 = vld [vmem:[%s3007 + $0x88] sm:$0xf]
                  %3078 = vst [vmem:[%s3008 + $0x108] sm:$0xf] %v3077
                  %v3079 = vld [vmem:[%s3007 + $0x8c] sm:$0xf]
                  %3080 = vst [vmem:[%s3008 + $0x10c] sm:$0xf] %v3079
                  %v3081 = vld [vmem:[%s3007 + $0x90] sm:$0xf]
                  %3082 = vst [vmem:[%s3008 + $0x110] sm:$0xf] %v3081
                  %v3083 = vld [vmem:[%s3007 + $0x94] sm:$0xf]
                  %3084 = vst [vmem:[%s3008 + $0x114] sm:$0xf] %v3083
                  %v3085 = vld [vmem:[%s3007 + $0x98] sm:$0xf]
                  %3086 = vst [vmem:[%s3008 + $0x118] sm:$0xf] %v3085
                  %v3087 = vld [vmem:[%s3007 + $0x9c] sm:$0xf]
                  %3088 = vst [vmem:[%s3008 + $0x11c] sm:$0xf] %v3087
                  %v3089 = vld [vmem:[%s3007 + $0xa0] sm:$0xf]
                  %3090 = vst [vmem:[%s3008 + $0x120] sm:$0xf] %v3089
                  %v3091 = vld [vmem:[%s3007 + $0xa4] sm:$0xf]
                  %3092 = vst [vmem:[%s3008 + $0x124] sm:$0xf] %v3091
                  %v3093 = vld [vmem:[%s3007 + $0xa8] sm:$0xf]
                  %3094 = vst [vmem:[%s3008 + $0x128] sm:$0xf] %v3093
                  %v3095 = vld [vmem:[%s3007 + $0xac] sm:$0xf]
                  %3096 = vst [vmem:[%s3008 + $0x12c] sm:$0xf] %v3095
                  %v3097 = vld [vmem:[%s3007 + $0xb0] sm:$0xf]
                  %3098 = vst [vmem:[%s3008 + $0x130] sm:$0xf] %v3097
                  %v3099 = vld [vmem:[%s3007 + $0xb4] sm:$0xf]
                  %3100 = vst [vmem:[%s3008 + $0x134] sm:$0xf] %v3099
                  %v3101 = vld [vmem:[%s3007 + $0xb8] sm:$0xf]
                  %3102 = vst [vmem:[%s3008 + $0x138] sm:$0xf] %v3101
                  %v3103 = vld [vmem:[%s3007 + $0xbc] sm:$0xf]
                  %3104 = vst [vmem:[%s3008 + $0x13c] sm:$0xf] %v3103
                  %v3105 = vld [vmem:[%s3007 + $0xc0] sm:$0xf]
                  %3106 = vst [vmem:[%s3008 + $0x180] sm:$0xf] %v3105
                  %v3107 = vld [vmem:[%s3007 + $0xc4] sm:$0xf]
                  %3108 = vst [vmem:[%s3008 + $0x184] sm:$0xf] %v3107
                  %v3109 = vld [vmem:[%s3007 + $0xc8] sm:$0xf]
                  %3110 = vst [vmem:[%s3008 + $0x188] sm:$0xf] %v3109
                  %v3111 = vld [vmem:[%s3007 + $0xcc] sm:$0xf]
                  %3112 = vst [vmem:[%s3008 + $0x18c] sm:$0xf] %v3111
                  %v3113 = vld [vmem:[%s3007 + $0xd0] sm:$0xf]
                  %3114 = vst [vmem:[%s3008 + $0x190] sm:$0xf] %v3113
                  %v3115 = vld [vmem:[%s3007 + $0xd4] sm:$0xf]
                  %3116 = vst [vmem:[%s3008 + $0x194] sm:$0xf] %v3115
                  %v3117 = vld [vmem:[%s3007 + $0xd8] sm:$0xf]
                  %3118 = vst [vmem:[%s3008 + $0x198] sm:$0xf] %v3117
                  %v3119 = vld [vmem:[%s3007 + $0xdc] sm:$0xf]
                  %3120 = vst [vmem:[%s3008 + $0x19c] sm:$0xf] %v3119
                  %v3121 = vld [vmem:[%s3007 + $0xe0] sm:$0xf]
                  %3122 = vst [vmem:[%s3008 + $0x1a0] sm:$0xf] %v3121
                  %v3123 = vld [vmem:[%s3007 + $0xe4] sm:$0xf]
                  %3124 = vst [vmem:[%s3008 + $0x1a4] sm:$0xf] %v3123
                  %v3125 = vld [vmem:[%s3007 + $0xe8] sm:$0xf]
                  %3126 = vst [vmem:[%s3008 + $0x1a8] sm:$0xf] %v3125
                  %v3127 = vld [vmem:[%s3007 + $0xec] sm:$0xf]
                  %3128 = vst [vmem:[%s3008 + $0x1ac] sm:$0xf] %v3127
                  %v3129 = vld [vmem:[%s3007 + $0xf0] sm:$0xf]
                  %3130 = vst [vmem:[%s3008 + $0x1b0] sm:$0xf] %v3129
                  %v3131 = vld [vmem:[%s3007 + $0xf4] sm:$0xf]
                  %3132 = vst [vmem:[%s3008 + $0x1b4] sm:$0xf] %v3131
                  %v3133 = vld [vmem:[%s3007 + $0xf8] sm:$0xf]
                  %3134 = vst [vmem:[%s3008 + $0x1b8] sm:$0xf] %v3133
                  %v3135 = vld [vmem:[%s3007 + $0xfc] sm:$0xf]
                  %3136 = vst [vmem:[%s3008 + $0x1bc] sm:$0xf] %v3135
                $region71: #{_upsample_conv.1} parent=58 // loop_footer
                  %s3006 = sadd.s32 1, %s3002
                $region72: #{_upsample_conv.1} parent=58 // loop_footer_branch
                  %3001 = sbr.rel target = $region68
                $region73: #{_upsample_conv.1} parent=58 // loop_exit
                  _
              $region59: #{_upsample_conv.1} parent=43 // pred_fallthru
                _
            $region44: #{_upsample_conv.1} parent=39 // pred_fallthru
              _
            // Predicated region
            $region45: #{_upsample_conv.1} parent=39 // pred_check
              _
            $region46: #{_upsample_conv.1} parent=39 // pred_check_branch
              %2852 = sbr.rel (0) target = $region48
            $region47: #{_upsample_conv.1} parent=39 // pred_region
              loop: start=0, step=1, limit=1
              $region49: #{_upsample_conv.1} parent=47 // loop_pre_header
                _
              $region50: #{_upsample_conv.1} parent=47 // loop_header
                %s2855 = sphi 0, %s2859
                %p2856 = scmp.ge.s32.totalorder %s2855, 1
                %s2860 = sphi %s2837, %s2837
                %s2861 = sphi %s2846, %s2846
              $region51: #{_upsample_conv.1} parent=47 // loop_header_branch
                %2858 = sbr.rel (%p2856) target = $region55
              $region52: #{_upsample_conv.1} parent=47 // loop_body
                %v2862 = vld [vmem:[%s2860] sm:$0xf]
                %2863 = vst [vmem:[%s2861] sm:$0xf] %v2862
                %v2864 = vld [vmem:[%s2860 + $0x4] sm:$0xf]
                %2865 = vst [vmem:[%s2861 + $0x4] sm:$0xf] %v2864
                %v2866 = vld [vmem:[%s2860 + $0x8] sm:$0xf]
                %2867 = vst [vmem:[%s2861 + $0x8] sm:$0xf] %v2866
                %v2868 = vld [vmem:[%s2860 + $0xc] sm:$0xf]
                %2869 = vst [vmem:[%s2861 + $0xc] sm:$0xf] %v2868
                %v2870 = vld [vmem:[%s2860 + $0x10] sm:$0xf]
                %2871 = vst [vmem:[%s2861 + $0x10] sm:$0xf] %v2870
                %v2872 = vld [vmem:[%s2860 + $0x14] sm:$0xf]
                %2873 = vst [vmem:[%s2861 + $0x14] sm:$0xf] %v2872
                %v2874 = vld [vmem:[%s2860 + $0x18] sm:$0xf]
                %2875 = vst [vmem:[%s2861 + $0x18] sm:$0xf] %v2874
                %v2876 = vld [vmem:[%s2860 + $0x1c] sm:$0xf]
                %2877 = vst [vmem:[%s2861 + $0x1c] sm:$0xf] %v2876
                %v2878 = vld [vmem:[%s2860 + $0x20] sm:$0xf]
                %2879 = vst [vmem:[%s2861 + $0x20] sm:$0xf] %v2878
                %v2880 = vld [vmem:[%s2860 + $0x24] sm:$0xf]
                %2881 = vst [vmem:[%s2861 + $0x24] sm:$0xf] %v2880
                %v2882 = vld [vmem:[%s2860 + $0x28] sm:$0xf]
                %2883 = vst [vmem:[%s2861 + $0x28] sm:$0xf] %v2882
                %v2884 = vld [vmem:[%s2860 + $0x2c] sm:$0xf]
                %2885 = vst [vmem:[%s2861 + $0x2c] sm:$0xf] %v2884
                %v2886 = vld [vmem:[%s2860 + $0x30] sm:$0xf]
                %2887 = vst [vmem:[%s2861 + $0x30] sm:$0xf] %v2886
                %v2888 = vld [vmem:[%s2860 + $0x34] sm:$0xf]
                %2889 = vst [vmem:[%s2861 + $0x34] sm:$0xf] %v2888
                %v2890 = vld [vmem:[%s2860 + $0x38] sm:$0xf]
                %2891 = vst [vmem:[%s2861 + $0x38] sm:$0xf] %v2890
                %v2892 = vld [vmem:[%s2860 + $0x3c] sm:$0xf]
                %2893 = vst [vmem:[%s2861 + $0x3c] sm:$0xf] %v2892
                %v2894 = vld [vmem:[%s2860 + $0x40] sm:$0xf]
                %2895 = vst [vmem:[%s2861 + $0x80] sm:$0xf] %v2894
                %v2896 = vld [vmem:[%s2860 + $0x44] sm:$0xf]
                %2897 = vst [vmem:[%s2861 + $0x84] sm:$0xf] %v2896
                %v2898 = vld [vmem:[%s2860 + $0x48] sm:$0xf]
                %2899 = vst [vmem:[%s2861 + $0x88] sm:$0xf] %v2898
                %v2900 = vld [vmem:[%s2860 + $0x4c] sm:$0xf]
                %2901 = vst [vmem:[%s2861 + $0x8c] sm:$0xf] %v2900
                %v2902 = vld [vmem:[%s2860 + $0x50] sm:$0xf]
                %2903 = vst [vmem:[%s2861 + $0x90] sm:$0xf] %v2902
                %v2904 = vld [vmem:[%s2860 + $0x54] sm:$0xf]
                %2905 = vst [vmem:[%s2861 + $0x94] sm:$0xf] %v2904
                %v2906 = vld [vmem:[%s2860 + $0x58] sm:$0xf]
                %2907 = vst [vmem:[%s2861 + $0x98] sm:$0xf] %v2906
                %v2908 = vld [vmem:[%s2860 + $0x5c] sm:$0xf]
                %2909 = vst [vmem:[%s2861 + $0x9c] sm:$0xf] %v2908
                %v2910 = vld [vmem:[%s2860 + $0x60] sm:$0xf]
                %2911 = vst [vmem:[%s2861 + $0xa0] sm:$0xf] %v2910
                %v2912 = vld [vmem:[%s2860 + $0x64] sm:$0xf]
                %2913 = vst [vmem:[%s2861 + $0xa4] sm:$0xf] %v2912
                %v2914 = vld [vmem:[%s2860 + $0x68] sm:$0xf]
                %2915 = vst [vmem:[%s2861 + $0xa8] sm:$0xf] %v2914
                %v2916 = vld [vmem:[%s2860 + $0x6c] sm:$0xf]
                %2917 = vst [vmem:[%s2861 + $0xac] sm:$0xf] %v2916
                %v2918 = vld [vmem:[%s2860 + $0x70] sm:$0xf]
                %2919 = vst [vmem:[%s2861 + $0xb0] sm:$0xf] %v2918
                %v2920 = vld [vmem:[%s2860 + $0x74] sm:$0xf]
                %2921 = vst [vmem:[%s2861 + $0xb4] sm:$0xf] %v2920
                %v2922 = vld [vmem:[%s2860 + $0x78] sm:$0xf]
                %2923 = vst [vmem:[%s2861 + $0xb8] sm:$0xf] %v2922
                %v2924 = vld [vmem:[%s2860 + $0x7c] sm:$0xf]
                %2925 = vst [vmem:[%s2861 + $0xbc] sm:$0xf] %v2924
                %v2926 = vld [vmem:[%s2860 + $0x80] sm:$0xf]
                %2927 = vst [vmem:[%s2861 + $0x100] sm:$0xf] %v2926
                %v2928 = vld [vmem:[%s2860 + $0x84] sm:$0xf]
                %2929 = vst [vmem:[%s2861 + $0x104] sm:$0xf] %v2928
                %v2930 = vld [vmem:[%s2860 + $0x88] sm:$0xf]
                %2931 = vst [vmem:[%s2861 + $0x108] sm:$0xf] %v2930
                %v2932 = vld [vmem:[%s2860 + $0x8c] sm:$0xf]
                %2933 = vst [vmem:[%s2861 + $0x10c] sm:$0xf] %v2932
                %v2934 = vld [vmem:[%s2860 + $0x90] sm:$0xf]
                %2935 = vst [vmem:[%s2861 + $0x110] sm:$0xf] %v2934
                %v2936 = vld [vmem:[%s2860 + $0x94] sm:$0xf]
                %2937 = vst [vmem:[%s2861 + $0x114] sm:$0xf] %v2936
                %v2938 = vld [vmem:[%s2860 + $0x98] sm:$0xf]
                %2939 = vst [vmem:[%s2861 + $0x118] sm:$0xf] %v2938
                %v2940 = vld [vmem:[%s2860 + $0x9c] sm:$0xf]
                %2941 = vst [vmem:[%s2861 + $0x11c] sm:$0xf] %v2940
                %v2942 = vld [vmem:[%s2860 + $0xa0] sm:$0xf]
                %2943 = vst [vmem:[%s2861 + $0x120] sm:$0xf] %v2942
                %v2944 = vld [vmem:[%s2860 + $0xa4] sm:$0xf]
                %2945 = vst [vmem:[%s2861 + $0x124] sm:$0xf] %v2944
                %v2946 = vld [vmem:[%s2860 + $0xa8] sm:$0xf]
                %2947 = vst [vmem:[%s2861 + $0x128] sm:$0xf] %v2946
                %v2948 = vld [vmem:[%s2860 + $0xac] sm:$0xf]
                %2949 = vst [vmem:[%s2861 + $0x12c] sm:$0xf] %v2948
                %v2950 = vld [vmem:[%s2860 + $0xb0] sm:$0xf]
                %2951 = vst [vmem:[%s2861 + $0x130] sm:$0xf] %v2950
                %v2952 = vld [vmem:[%s2860 + $0xb4] sm:$0xf]
                %2953 = vst [vmem:[%s2861 + $0x134] sm:$0xf] %v2952
                %v2954 = vld [vmem:[%s2860 + $0xb8] sm:$0xf]
                %2955 = vst [vmem:[%s2861 + $0x138] sm:$0xf] %v2954
                %v2956 = vld [vmem:[%s2860 + $0xbc] sm:$0xf]
                %2957 = vst [vmem:[%s2861 + $0x13c] sm:$0xf] %v2956
                %v2958 = vld [vmem:[%s2860 + $0xc0] sm:$0xf]
                %2959 = vst [vmem:[%s2861 + $0x180] sm:$0xf] %v2958
                %v2960 = vld [vmem:[%s2860 + $0xc4] sm:$0xf]
                %2961 = vst [vmem:[%s2861 + $0x184] sm:$0xf] %v2960
                %v2962 = vld [vmem:[%s2860 + $0xc8] sm:$0xf]
                %2963 = vst [vmem:[%s2861 + $0x188] sm:$0xf] %v2962
                %v2964 = vld [vmem:[%s2860 + $0xcc] sm:$0xf]
                %2965 = vst [vmem:[%s2861 + $0x18c] sm:$0xf] %v2964
                %v2966 = vld [vmem:[%s2860 + $0xd0] sm:$0xf]
                %2967 = vst [vmem:[%s2861 + $0x190] sm:$0xf] %v2966
                %v2968 = vld [vmem:[%s2860 + $0xd4] sm:$0xf]
                %2969 = vst [vmem:[%s2861 + $0x194] sm:$0xf] %v2968
                %v2970 = vld [vmem:[%s2860 + $0xd8] sm:$0xf]
                %2971 = vst [vmem:[%s2861 + $0x198] sm:$0xf] %v2970
                %v2972 = vld [vmem:[%s2860 + $0xdc] sm:$0xf]
                %2973 = vst [vmem:[%s2861 + $0x19c] sm:$0xf] %v2972
                %v2974 = vld [vmem:[%s2860 + $0xe0] sm:$0xf]
                %2975 = vst [vmem:[%s2861 + $0x1a0] sm:$0xf] %v2974
                %v2976 = vld [vmem:[%s2860 + $0xe4] sm:$0xf]
                %2977 = vst [vmem:[%s2861 + $0x1a4] sm:$0xf] %v2976
                %v2978 = vld [vmem:[%s2860 + $0xe8] sm:$0xf]
                %2979 = vst [vmem:[%s2861 + $0x1a8] sm:$0xf] %v2978
                %v2980 = vld [vmem:[%s2860 + $0xec] sm:$0xf]
                %2981 = vst [vmem:[%s2861 + $0x1ac] sm:$0xf] %v2980
                %v2982 = vld [vmem:[%s2860 + $0xf0] sm:$0xf]
                %2983 = vst [vmem:[%s2861 + $0x1b0] sm:$0xf] %v2982
                %v2984 = vld [vmem:[%s2860 + $0xf4] sm:$0xf]
                %2985 = vst [vmem:[%s2861 + $0x1b4] sm:$0xf] %v2984
                %v2986 = vld [vmem:[%s2860 + $0xf8] sm:$0xf]
                %2987 = vst [vmem:[%s2861 + $0x1b8] sm:$0xf] %v2986
                %v2988 = vld [vmem:[%s2860 + $0xfc] sm:$0xf]
                %2989 = vst [vmem:[%s2861 + $0x1bc] sm:$0xf] %v2988
              $region53: #{_upsample_conv.1} parent=47 // loop_footer
                %s2859 = sadd.s32 1, %s2855
              $region54: #{_upsample_conv.1} parent=47 // loop_footer_branch
                %2854 = sbr.rel target = $region50
              $region55: #{_upsample_conv.1} parent=47 // loop_exit
                _
            $region48: #{_upsample_conv.1} parent=39 // pred_fallthru
              _
          $region40: #{_upsample_conv.1} parent=35 // pred_fallthru
            _
          %3137 = vnop
        $region36: #{_upsample_conv.1} parent=31 // pred_fallthru
          _
      $region32: #{_upsample_conv.1} parent=5 // pred_fallthru
        _
      %p3138 = scmp.le.s32.totalorder 2, %s9
      // Predicated region
      $region74: #{_upsample_conv.1} parent=5 // pred_check
        %p3139 = pneg %p3138
      $region75: #{_upsample_conv.1} parent=5 // pred_check_branch
        %3141 = sbr.rel (%p3139) target = $region77
      $region76: #{_upsample_conv.1} parent=5 // pred_region
        %s3142 = ssub.s32 %s9, 2
        // Predicated region
        $region78: #{_upsample_conv.1} parent=76 // pred_check
          %p3143 = pneg %p120
        $region79: #{_upsample_conv.1} parent=76 // pred_check_branch
          %3145 = sbr.rel (%p3143) target = $region81
        $region80: #{_upsample_conv.1} parent=76 // pred_region
          %s3146 = sand.u32 %s105, 1
          %s3147 = sand.u32 %s105, 1
          %s3148 = smul.addr %s3147, 256
          %s3149 = scalar_lea.vmem [#allocation2], %s3148
        $region81: #{_upsample_conv.1} parent=76 // pred_fallthru
          _
      $region77: #{_upsample_conv.1} parent=5 // pred_fallthru
        _
    $region6: #{_upsample_conv.1} parent=1 // loop_footer
      %s13 = sadd.s32 1, %s9
    $region7: #{_upsample_conv.1} parent=1 // loop_footer_branch
      %8 = sbr.rel target = $region3
    $region8: #{_upsample_conv.1} parent=1 // loop_exit
      _

</llo_original>
